<compile_context>
chip_gen: v7x
topology: tpu7x:2x2x1
jax: 0.10.0
libtpu: 0.0.40
codegen_flags: <defaults>
</compile_context>

<pallas_src>
import jax
import jax.numpy as jnp
from jax.experimental import pallas as pl
from jax.experimental.pallas import tpu as pltpu

IN_CHAN = 1
LATENT_DIM = 1
IN_FEATS = 55 * 74            # 4070
H1 = 1000 * IN_CHAN
H2 = 100 * IN_CHAN


def _round_up(x, m):
    return ((x + m - 1) // m) * m


# Padded (lane/sublane aligned) sizes.
IN_P = _round_up(IN_FEATS, 128)      # 4096
H1_P = _round_up(H1, 128)            # 1024
H2_P = _round_up(H2, 128)            # 128
OUT_P = _round_up(LATENT_DIM, 128)   # 128
TK = 1024                            # layer-1 contraction tile (divides IN_P)


def _mlp_kernel(x_ref, w1_ref, b1_ref, w2_ref, b2_ref, w3_ref, b3_ref,
                o_ref, acc_ref):
    k = pl.program_id(1)

    @pl.when(k == 0)
    def _():
        acc_ref[...] = jnp.zeros_like(acc_ref)

    # layer 1 partial: (TM, TK)bf16 @ (TK, H1_P)bf16 -> f32 accumulator
    acc_ref[...] += jnp.dot(x_ref[...], w1_ref[...],
                            preferred_element_type=jnp.float32)

    @pl.when(k == pl.num_programs(1) - 1)
    def _():
        # finish layer 1
        h1 = jnp.maximum(acc_ref[...] + b1_ref[...], 0.0)
        # layer 2: (TM, 1024) @ (1024, 128) + b2 -> relu   (tiny, kept f32)
        h2 = jnp.dot(h1, w2_ref[...], preferred_element_type=jnp.float32)
        h2 = jnp.maximum(h2 + b2_ref[...], 0.0)
        # layer 3: (TM, 128) @ (128, 128) + b3             (no activation)
        h3 = jnp.dot(h2, w3_ref[...], preferred_element_type=jnp.float32)
        o_ref[...] = (h3 + b3_ref[...]).astype(o_ref.dtype)


def encoder_mlp_dp_forward(x, padded_params):
    """x: (B, C, H, W) float32. Returns (B, LATENT_DIM) float32."""
    w1, b1, w2, b2, w3, b3 = padded_params
    B = x.shape[0]
    x2d = x.reshape(B, -1).astype(jnp.float32)       # (B, 4070)

    # Batch tiling: 128-row tiles for big batches, one padded tile otherwise.
    if B >= 128:
        tm = 128
    else:
        tm = max(8, _round_up(B, 8))
    b_pad = _round_up(B, tm)

    x_p = jnp.pad(x2d, ((0, b_pad - B), (0, IN_P - IN_FEATS))).astype(jnp.bfloat16)

    n_b = b_pad // tm
    n_k = IN_P // TK

    grid_spec = pltpu.PrefetchScalarGridSpec(
        num_scalar_prefetch=0,
        grid=(n_b, n_k),
        in_specs=[
            pl.BlockSpec((tm, TK), lambda i, k: (i, k)),        # x    (bf16)
            pl.BlockSpec((TK, H1_P), lambda i, k: (k, 0)),      # W1   (bf16)
            pl.BlockSpec((1, H1_P), lambda i, k: (0, 0)),       # b1   (f32)
            pl.BlockSpec((H1_P, H2_P), lambda i, k: (0, 0)),    # W2   (f32)
            pl.BlockSpec((1, H2_P), lambda i, k: (0, 0)),       # b2   (f32)
            pl.BlockSpec((H2_P, OUT_P), lambda i, k: (0, 0)),   # W3   (f32)
            pl.BlockSpec((1, OUT_P), lambda i, k: (0, 0)),      # b3   (f32)
        ],
        out_specs=pl.BlockSpec((tm, OUT_P), lambda i, k: (i, 0)),
        scratch_shapes=[pltpu.VMEM((tm, H1_P), jnp.float32)],
    )

    out = pl.pallas_call(
        _mlp_kernel,
        out_shape=jax.ShapeDtypeStruct((b_pad, OUT_P), jnp.float32),
        grid_spec=grid_spec,
        compiler_params=pltpu.CompilerParams(
            dimension_semantics=("parallel", "arbitrary"),
            vmem_limit_bytes=48 * 1024 * 1024,
        ),
    )(x_p, w1, b1, w2, b2, w3, b3)

    return out[:B, :LATENT_DIM]


def init_params(key):
    """Deterministic init matching the PyTorch module's shapes.

    Weights: kaiming_normal_ (std = sqrt(2 / fan_in), fan_in = in_features).
    Biases:  PyTorch Linear default uniform(-1/sqrt(fan_in), 1/sqrt(fan_in)).
    Weights are stored transposed as (in, out); biases as (1, out).
    """
    ks = jax.random.split(key, 6)

    def kaiming_w(k, fan_in, fan_out):
        std = (2.0 / fan_in) ** 0.5
        return jax.random.normal(k, (fan_in, fan_out), jnp.float32) * std

    def bias(k, fan_in, fan_out):
        bound = 1.0 / (fan_in ** 0.5)
        return jax.random.uniform(k, (1, fan_out), jnp.float32, -bound, bound)

    w1 = kaiming_w(ks[0], IN_FEATS, H1)
    b1 = bias(ks[1], IN_FEATS, H1)
    w2 = kaiming_w(ks[2], H1, H2)
    b2 = bias(ks[3], H1, H2)
    w3 = kaiming_w(ks[4], H2, LATENT_DIM)
    b3 = bias(ks[5], H2, LATENT_DIM)
    return (w1, b1, w2, b2, w3, b3)


def _pad_to(a, shape):
    return jnp.pad(a, [(0, t - s) for s, t in zip(a.shape, shape)])


def prepare_params(params):
    """Zero-pad to aligned sizes; W1 (the big one) is cast to bf16."""
    w1, b1, w2, b2, w3, b3 = params
    w1p = _pad_to(w1, (IN_P, H1_P)).astype(jnp.bfloat16)
    b1p = _pad_to(b1, (1, H1_P)).astype(jnp.float32)
    w2p = _pad_to(w2, (H1_P, H2_P)).astype(jnp.float32)
    b2p = _pad_to(b2, (1, H2_P)).astype(jnp.float32)
    w3p = _pad_to(w3, (H2_P, OUT_P)).astype(jnp.float32)
    b3p = _pad_to(b3, (1, OUT_P)).astype(jnp.float32)
    return (w1p, b1p, w2p, b2p, w3p, b3p)


def reference_forward(x, params):
    """Pure-JAX reference, with the same bf16 cast of x / W1 as the kernel."""
    w1, b1, w2, b2, w3, b3 = params
    h = x.reshape(x.shape[0], -1)
    h1 = jnp.dot(h.astype(jnp.bfloat16), w1.astype(jnp.bfloat16),
                 preferred_element_type=jnp.float32)
    h1 = jnp.maximum(h1 + b1, 0.0)
    h2 = jnp.maximum(h1 @ w2 + b2, 0.0)
    return h2 @ w3 + b3


if __name__ == "__main__":
    key = jax.random.PRNGKey(0)
    k_x, k_p = jax.random.split(key)

    # input consistent with the forward's flatten to 55*74 features: NCHW
    B = 2
    x = jax.random.normal(k_x, (B, IN_CHAN, 55, 74), jnp.float32)

    params = init_params(k_p)
    padded_params = prepare_params(params)

    out = encoder_mlp_dp_forward(x, padded_params)
    out = jax.block_until_ready(out)

    ref = reference_forward(x, params)
    assert out.shape == (B, LATENT_DIM), out.shape
    assert jnp.allclose(out, ref, atol=1e-2, rtol=1e-2), (out, ref)

    print("KERNEL_OK")
</pallas_src>

<mosaic_0001>
module attributes {stable_mosaic.version = 11 : i64} {
  func.func @_mlp_kernel(%arg0: i32, %arg1: i32, %arg2: memref<8x1024xbf16, #tpu.memory_space<vmem>>, %arg3: memref<1024x1024xbf16, #tpu.memory_space<vmem>>, %arg4: memref<1x1024xf32, #tpu.memory_space<vmem>>, %arg5: memref<1024x128xf32, #tpu.memory_space<vmem>>, %arg6: memref<1x128xf32, #tpu.memory_space<vmem>>, %arg7: memref<128x128xf32, #tpu.memory_space<vmem>>, %arg8: memref<1x128xf32, #tpu.memory_space<vmem>>, %arg9: memref<8x128xf32, #tpu.memory_space<vmem>>, %arg10: memref<8x1024xf32, #tpu.memory_space<vmem>>) attributes {dimension_semantics = [#tpu.dimension_semantics<parallel>, #tpu.dimension_semantics<arbitrary>], iteration_bounds = array<i64: 1, 4>, scalar_prefetch = 0 : i64, scratch_operands = 1 : i64, tpu.core_type = #tpu.core_type<tc>, window_params = [{transform_indices = @transform_0, window_bounds = array<i64: 8, 1024>}, {transform_indices = @transform_1, window_bounds = array<i64: 1024, 1024>}, {pipeline_mode = #tpu.pipeline_mode<synchronous>, transform_indices = @transform_2, window_bounds = array<i64: 1, 1024>}, {pipeline_mode = #tpu.pipeline_mode<synchronous>, transform_indices = @transform_3, window_bounds = array<i64: 1024, 128>}, {pipeline_mode = #tpu.pipeline_mode<synchronous>, transform_indices = @transform_4, window_bounds = array<i64: 1, 128>}, {pipeline_mode = #tpu.pipeline_mode<synchronous>, transform_indices = @transform_5, window_bounds = array<i64: 128, 128>}, {pipeline_mode = #tpu.pipeline_mode<synchronous>, transform_indices = @transform_6, window_bounds = array<i64: 1, 128>}, {transform_indices = @transform_7, window_bounds = array<i64: 8, 128>}]} {
    %c0_i32 = arith.constant 0 : i32
    %0 = arith.cmpi eq, %arg1, %c0_i32 : i32
    %1 = arith.extui %0 : i1 to i32
    %c0_i32_0 = arith.constant 0 : i32
    %2 = arith.cmpi ne, %1, %c0_i32_0 : i32
    scf.if %2 {
      %cst_9 = arith.constant 0.000000e+00 : f32
      %12 = vector.broadcast %cst_9 : f32 to vector<8x1024xf32>
      %c0_10 = arith.constant 0 : index
      %c0_11 = arith.constant 0 : index
      %13 = vector.load %arg10[%c0_10, %c0_11] : memref<8x1024xf32, #tpu.memory_space<vmem>>, vector<8x1024xf32>
      tpu.vector_store %arg10[%c0_10, %c0_11], %12 {strides = array<i32>} : memref<8x1024xf32, #tpu.memory_space<vmem>>, vector<8x1024xf32>,
    } else {
    }
    %c0 = arith.constant 0 : index
    %c0_1 = arith.constant 0 : index
    %3 = vector.load %arg10[%c0, %c0_1] : memref<8x1024xf32, #tpu.memory_space<vmem>>, vector<8x1024xf32>
    %c0_2 = arith.constant 0 : index
    %c0_3 = arith.constant 0 : index
    %4 = vector.load %arg2[%c0_2, %c0_3] : memref<8x1024xbf16, #tpu.memory_space<vmem>>, vector<8x1024xbf16>
    %c0_4 = arith.constant 0 : index
    %c0_5 = arith.constant 0 : index
    %5 = vector.load %arg3[%c0_4, %c0_5] : memref<1024x1024xbf16, #tpu.memory_space<vmem>>, vector<1024x1024xbf16>
    %cst = arith.constant dense<0.000000e+00> : vector<8x1024xf32>
    %6 = tpu.matmul %4, %5, %cst {dimension_numbers = #tpu.dot_dimension_numbers<[1], [0], [0], [1], [0, 0, 1, 1], [], []>} : vector<8x1024xbf16>, vector<1024x1024xbf16>, vector<8x1024xf32> -> vector<8x1024xf32>
    %7 = arith.addf %3, %6 : vector<8x1024xf32>
    %c0_6 = arith.constant 0 : index
    %c0_7 = arith.constant 0 : index
    %8 = vector.load %arg10[%c0_6, %c0_7] : memref<8x1024xf32, #tpu.memory_space<vmem>>, vector<8x1024xf32>
    tpu.vector_store %arg10[%c0_6, %c0_7], %7 {strides = array<i32>} : memref<8x1024xf32, #tpu.memory_space<vmem>>, vector<8x1024xf32>,
    %c3_i32 = arith.constant 3 : i32
    %9 = arith.cmpi eq, %arg1, %c3_i32 : i32
    %10 = arith.extui %9 : i1 to i32
    %c0_i32_8 = arith.constant 0 : i32
    %11 = arith.cmpi ne, %10, %c0_i32_8 : i32
    scf.if %11 {
      %c0_9 = arith.constant 0 : index
      %c0_10 = arith.constant 0 : index
      %12 = vector.load %arg10[%c0_9, %c0_10] : memref<8x1024xf32, #tpu.memory_space<vmem>>, vector<8x1024xf32>
      %c0_11 = arith.constant 0 : index
      %c0_12 = arith.constant 0 : index
      %13 = vector.load %arg4[%c0_11, %c0_12] : memref<1x1024xf32, #tpu.memory_space<vmem>>, vector<1x1024xf32>
      %14 = vector.broadcast %13 : vector<1x1024xf32> to vector<8x1024xf32>
      %15 = arith.addf %12, %14 : vector<8x1024xf32>
      %cst_13 = arith.constant 0.000000e+00 : f32
      %16 = vector.broadcast %cst_13 : f32 to vector<8x1024xf32>
      %17 = arith.maximumf %15, %16 : vector<8x1024xf32>
      %c0_14 = arith.constant 0 : index
      %c0_15 = arith.constant 0 : index
      %18 = vector.load %arg5[%c0_14, %c0_15] : memref<1024x128xf32, #tpu.memory_space<vmem>>, vector<1024x128xf32>
      %cst_16 = arith.constant dense<0.000000e+00> : vector<8x128xf32>
      %19 = tpu.matmul %17, %18, %cst_16 {dimension_numbers = #tpu.dot_dimension_numbers<[1], [0], [0], [1], [0, 0, 1, 1], [], []>} : vector<8x1024xf32>, vector<1024x128xf32>, vector<8x128xf32> -> vector<8x128xf32>
      %c0_17 = arith.constant 0 : index
      %c0_18 = arith.constant 0 : index
      %20 = vector.load %arg6[%c0_17, %c0_18] : memref<1x128xf32, #tpu.memory_space<vmem>>, vector<1x128xf32>
      %21 = vector.broadcast %20 : vector<1x128xf32> to vector<8x128xf32>
      %22 = arith.addf %19, %21 : vector<8x128xf32>
      %cst_19 = arith.constant 0.000000e+00 : f32
      %23 = vector.broadcast %cst_19 : f32 to vector<8x128xf32>
      %24 = arith.maximumf %22, %23 : vector<8x128xf32>
      %c0_20 = arith.constant 0 : index
      %c0_21 = arith.constant 0 : index
      %25 = vector.load %arg7[%c0_20, %c0_21] : memref<128x128xf32, #tpu.memory_space<vmem>>, vector<128x128xf32>
      %cst_22 = arith.constant dense<0.000000e+00> : vector<8x128xf32>
      %26 = tpu.matmul %24, %25, %cst_22 {dimension_numbers = #tpu.dot_dimension_numbers<[1], [0], [0], [1], [0, 0, 1, 1], [], []>} : vector<8x128xf32>, vector<128x128xf32>, vector<8x128xf32> -> vector<8x128xf32>
      %c0_23 = arith.constant 0 : index
      %c0_24 = arith.constant 0 : index
      %27 = vector.load %arg8[%c0_23, %c0_24] : memref<1x128xf32, #tpu.memory_space<vmem>>, vector<1x128xf32>
      %28 = vector.broadcast %27 : vector<1x128xf32> to vector<8x128xf32>
      %29 = arith.addf %26, %28 : vector<8x128xf32>
      %c0_25 = arith.constant 0 : index
      %c0_26 = arith.constant 0 : index
      %30 = vector.load %arg9[%c0_25, %c0_26] : memref<8x128xf32, #tpu.memory_space<vmem>>, vector<8x128xf32>
      tpu.vector_store %arg9[%c0_25, %c0_26], %29 {strides = array<i32>} : memref<8x128xf32, #tpu.memory_space<vmem>>, vector<8x128xf32>,
    } else {
    }
    return
  }
  func.func @transform_0(%arg0: i32, %arg1: i32) -> (i32, i32) {
    %c0_i32 = arith.constant 0 : i32
    return %arg0, %arg1 : i32, i32
  }
  func.func @transform_1(%arg0: i32, %arg1: i32) -> (i32, i32) {
    %c0_i32 = arith.constant 0 : i32
    %c0_i32_0 = arith.constant 0 : i32
    return %arg1, %c0_i32 : i32, i32
  }
  func.func @transform_2(%arg0: i32, %arg1: i32) -> (i32, i32) {
    %c0_i32 = arith.constant 0 : i32
    %c0_i32_0 = arith.constant 0 : i32
    %c0_i32_1 = arith.constant 0 : i32
    return %c0_i32, %c0_i32_0 : i32, i32
  }
  func.func @transform_3(%arg0: i32, %arg1: i32) -> (i32, i32) {
    %c0_i32 = arith.constant 0 : i32
    %c0_i32_0 = arith.constant 0 : i32
    %c0_i32_1 = arith.constant 0 : i32
    return %c0_i32, %c0_i32_0 : i32, i32
  }
  func.func @transform_4(%arg0: i32, %arg1: i32) -> (i32, i32) {
    %c0_i32 = arith.constant 0 : i32
    %c0_i32_0 = arith.constant 0 : i32
    %c0_i32_1 = arith.constant 0 : i32
    return %c0_i32, %c0_i32_0 : i32, i32
  }
  func.func @transform_5(%arg0: i32, %arg1: i32) -> (i32, i32) {
    %c0_i32 = arith.constant 0 : i32
    %c0_i32_0 = arith.constant 0 : i32
    %c0_i32_1 = arith.constant 0 : i32
    return %c0_i32, %c0_i32_0 : i32, i32
  }
  func.func @transform_6(%arg0: i32, %arg1: i32) -> (i32, i32) {
    %c0_i32 = arith.constant 0 : i32
    %c0_i32_0 = arith.constant 0 : i32
    %c0_i32_1 = arith.constant 0 : i32
    return %c0_i32, %c0_i32_0 : i32, i32
  }
  func.func @transform_7(%arg0: i32, %arg1: i32) -> (i32, i32) {
    %c0_i32 = arith.constant 0 : i32
    %c0_i32_0 = arith.constant 0 : i32
    return %arg0, %c0_i32 : i32, i32
  }
}

</mosaic_0001>

<llo_original>
// kernel: tpu_custom_call.1
$region0: #{tpu_custom_call.1}
  #allocation0 [shape = 'u32[]', space=smem, size = 0x4, offset = 0x4, fixed_abs, tag = 'smem constant byte address 0x4 - core index']
  #allocation1 [shape = 'u32[144,128]{1,0:T(1,128)}', space=vmem, size = 0x12000, scoped, tag = 'internal scratch']
  #allocation2 [shape = 'f32[8,1024]{1,0:T(8,128)}', space=vmem, size = 0x8000, scoped, tag = 'scratch operand']
  %s0 = inlined_call_operand.hbm [shape: bf16[8,4096], index: 0, kind: input, shape index: {}]
  %s1 = inlined_call_operand.hbm [shape: bf16[4096,1024], index: 1, kind: input, shape index: {}]
  %s2 = inlined_call_operand.hbm [shape: f32[1,1024], index: 2, kind: input, shape index: {}]
  %s3 = inlined_call_operand.hbm [shape: f32[1024,128], index: 3, kind: input, shape index: {}]
  %s4 = inlined_call_operand.hbm [shape: f32[1,128], index: 4, kind: input, shape index: {}]
  %s5 = inlined_call_operand.hbm [shape: f32[128,128], index: 5, kind: input, shape index: {}]
  %s6 = inlined_call_operand.hbm [shape: f32[1,128], index: 6, kind: input, shape index: {}]
  %s7 = inlined_call_operand.hbm [shape: f32[8,128], index: 7, kind: output, shape index: {}]
  %s8 = sld [smem:[#allocation0]]
  $region97: #{tpu_custom_call.1} parent=0
    _
  %s10 = ssub.s32 1, %s8
  %s11 = scalar_select 0, %s10, %s8
  $region1: #{tpu_custom_call.1} parent=0
    #allocation3 [shape = 'u8[32768]{0}', space=vmem, size = 0x8000, scoped, tag = 'input window, operand 0']
    #allocation4 [shape = 's32[2]{0}', space=sflag, size = 0x8, scoped, tag = 'scoped memory for tpu_custom_call.1']
    #allocation5 [shape = 's32[2]{0}', space=sflag, size = 0x8, scoped, tag = 'scoped memory for tpu_custom_call.1']
    #allocation6 [shape = 'u8[4194304]{0}', space=vmem, size = 0x400000, scoped, tag = 'input window, operand 1']
    #allocation7 [shape = 's32[2]{0}', space=sflag, size = 0x8, scoped, tag = 'scoped memory for tpu_custom_call.1']
    #allocation8 [shape = 'u8[4096]{0}', space=vmem, size = 0x1000, scoped, tag = 'input window, operand 2, single buffered']
    #allocation9 [shape = 'u8[524288]{0}', space=vmem, size = 0x80000, scoped, tag = 'input window, operand 3, single buffered']
    #allocation10 [shape = 's32[1]{0}', space=sflag, size = 0x4, scoped, tag = 'scoped memory for tpu_custom_call.1']
    #allocation11 [shape = 'u8[512]{0}', space=vmem, size = 0x400, scoped, tag = 'input window, operand 4, single buffered']
    #allocation12 [shape = 'u8[65536]{0}', space=vmem, size = 0x10000, scoped, tag = 'input window, operand 5, single buffered']
    #allocation13 [shape = 's32[1]{0}', space=sflag, size = 0x4, scoped, tag = 'scoped memory for tpu_custom_call.1']
    #allocation14 [shape = 'u8[512]{0}', space=vmem, size = 0x400, scoped, tag = 'input window, operand 6, single buffered']
    #allocation15 [shape = 'u8[4096]{0}', space=vmem, size = 0x1000, scoped, tag = 'output window, operand 0, single buffered']
    %12 = vsyncpa [#allocation4], 0
    %s13 = scalar_lea.sflag [#allocation4], 1
    %14 = vsyncpa %s13, 0
    %15 = vsyncpa [#allocation7], 0
    %s16 = scalar_lea.sflag [#allocation7], 1
    %17 = vsyncpa %s16, 0
    %18 = vsyncpa [#allocation10], 0
    %19 = vsyncpa [#allocation13], 0
    %20 = vsyncpa [#allocation5], 0
    loop: start=0, step=1, limit=6
    $region2: #{tpu_custom_call.1} parent=1 // loop_pre_header
      _
    $region3: #{tpu_custom_call.1} parent=1 // loop_header
      %s22 = sphi 0, %s26
      %p23 = scmp.ge.s32.totalorder %s22, 6
      %s29 = sphi 0, %s41
      %s30 = sphi 0, %s37
      %s31 = sphi 0, %s29
      %s32 = sphi 0, %s30
      %s33 = sphi 0, %s31
      %s34 = sphi 0, %s32
      %s46 = sphi 0, %s48
      %s49 = sphi 0, %s46
      %s50 = sphi 0, %s49
      %s66 = sphi 0, %s50
      %s72 = sphi 0, %s74
      %s75 = sphi 0, %s72
      %s76 = sphi 0, %s75
      %s92 = sphi 0, %s76
      %s96 = sphi 0, %s96
      %s98 = sphi 0, %s96
      %s99 = sphi 0, %s98
      %s113 = sphi 0, %s99
      %s117 = sphi 0, %s117
      %s119 = sphi 0, %s117
      %s120 = sphi 0, %s119
      %s134 = sphi 0, %s120
      %s138 = sphi 0, %s138
      %s140 = sphi 0, %s138
      %s141 = sphi 0, %s140
      %s155 = sphi 0, %s141
      %s159 = sphi 0, %s159
      %s161 = sphi 0, %s159
      %s162 = sphi 0, %s161
      %s176 = sphi 0, %s162
      %s180 = sphi 0, %s180
      %s182 = sphi 0, %s180
      %s183 = sphi 0, %s182
      %s197 = sphi 0, %s183
      %s203 = sphi 0, %s205
      %s206 = sphi 0, %s203
      %s207 = sphi 0, %s206
      %s223 = sphi 0, %s207
    $region4: #{tpu_custom_call.1} parent=1 // loop_header_branch
      %25 = sbr.rel (%p23) target = $region8
    $region5: #{tpu_custom_call.1} parent=1 // loop_body
      %s27 = ssub.s32 %s22, 1
      %s28 = ssub.s32 %s22, 2
      %s35 = sadd.s32 1, %s30
      %p36 = scmp.ge.s32.totalorder %s35, 4
      %s37 = scalar_select %p36, 0, %s35
      %s38 = sadd.s32 1, %s29
      %s39 = scalar_select %p36, %s38, %s29
      %p40 = scmp.ge.s32.totalorder %s39, 1
      %s41 = scalar_select %p40, 0, %s39
      %s42 = ssub.s32 %s29, %s41
      %s43 = ssub.s32 %s30, %s37
      %s44 = sor.u32 %s42, %s43
      %p45 = scmp.eq.s32.totalorder %s44, 0
      %s47 = sadd.s32 %s46, 1
      %s48 = scalar_select %p45, %s46, %s47
      %p51 = pneg %p45
      %p52 = scmp.eq.s32.totalorder %s22, 3
      %p53 = por %p51, %p52
      %p54 = scmp.ne.s32.totalorder %s46, %s49
      %p55 = scmp.eq.s32.totalorder %s22, 0
      %p56 = por %p54, %p55
      %p57 = scmp.ne.s32.totalorder %s46, %s49
      %p58 = scmp.eq.s32.totalorder %s27, 3
      %p59 = por %p57, %p58
      %p60 = scmp.ne.s32.totalorder %s49, %s50
      %p61 = scmp.eq.s32.totalorder %s27, 0
      %p62 = por %p60, %p61
      %p63 = scmp.ne.s32.totalorder %s49, %s50
      %p64 = scmp.eq.s32.totalorder %s28, 3
      %p65 = por %p63, %p64
      %p67 = scmp.ne.s32.totalorder %s50, %s66
      %p68 = scmp.eq.s32.totalorder %s28, 0
      %p69 = por %p67, %p68
      %s70 = ssub.s32 %s30, %s37
      %p71 = scmp.eq.s32.totalorder %s70, 0
      %s73 = sadd.s32 %s72, 1
      %s74 = scalar_select %p71, %s72, %s73
      %p77 = pneg %p71
      %p78 = scmp.eq.s32.totalorder %s22, 3
      %p79 = por %p77, %p78
      %p80 = scmp.ne.s32.totalorder %s72, %s75
      %p81 = scmp.eq.s32.totalorder %s22, 0
      %p82 = por %p80, %p81
      %p83 = scmp.ne.s32.totalorder %s72, %s75
      %p84 = scmp.eq.s32.totalorder %s27, 3
      %p85 = por %p83, %p84
      %p86 = scmp.ne.s32.totalorder %s75, %s76
      %p87 = scmp.eq.s32.totalorder %s27, 0
      %p88 = por %p86, %p87
      %p89 = scmp.ne.s32.totalorder %s75, %s76
      %p90 = scmp.eq.s32.totalorder %s28, 3
      %p91 = por %p89, %p90
      %p93 = scmp.ne.s32.totalorder %s76, %s92
      %p94 = scmp.eq.s32.totalorder %s28, 0
      %p95 = por %p93, %p94
      %s97 = sadd.s32 %s96, 1
      %p100 = scmp.eq.s32.totalorder %s22, 3
      %p101 = scmp.ne.s32.totalorder %s96, %s98
      %p102 = scmp.eq.s32.totalorder %s22, 0
      %p103 = por %p101, %p102
      %p104 = scmp.ne.s32.totalorder %s96, %s98
      %p105 = scmp.eq.s32.totalorder %s27, 3
      %p106 = por %p104, %p105
      %p107 = scmp.ne.s32.totalorder %s98, %s99
      %p108 = scmp.eq.s32.totalorder %s27, 0
      %p109 = por %p107, %p108
      %p110 = scmp.ne.s32.totalorder %s98, %s99
      %p111 = scmp.eq.s32.totalorder %s28, 3
      %p112 = por %p110, %p111
      %p114 = scmp.ne.s32.totalorder %s99, %s113
      %p115 = scmp.eq.s32.totalorder %s28, 0
      %p116 = por %p114, %p115
      %s118 = sadd.s32 %s117, 1
      %p121 = scmp.eq.s32.totalorder %s22, 3
      %p122 = scmp.ne.s32.totalorder %s117, %s119
      %p123 = scmp.eq.s32.totalorder %s22, 0
      %p124 = por %p122, %p123
      %p125 = scmp.ne.s32.totalorder %s117, %s119
      %p126 = scmp.eq.s32.totalorder %s27, 3
      %p127 = por %p125, %p126
      %p128 = scmp.ne.s32.totalorder %s119, %s120
      %p129 = scmp.eq.s32.totalorder %s27, 0
      %p130 = por %p128, %p129
      %p131 = scmp.ne.s32.totalorder %s119, %s120
      %p132 = scmp.eq.s32.totalorder %s28, 3
      %p133 = por %p131, %p132
      %p135 = scmp.ne.s32.totalorder %s120, %s134
      %p136 = scmp.eq.s32.totalorder %s28, 0
      %p137 = por %p135, %p136
      %s139 = sadd.s32 %s138, 1
      %p142 = scmp.eq.s32.totalorder %s22, 3
      %p143 = scmp.ne.s32.totalorder %s138, %s140
      %p144 = scmp.eq.s32.totalorder %s22, 0
      %p145 = por %p143, %p144
      %p146 = scmp.ne.s32.totalorder %s138, %s140
      %p147 = scmp.eq.s32.totalorder %s27, 3
      %p148 = por %p146, %p147
      %p149 = scmp.ne.s32.totalorder %s140, %s141
      %p150 = scmp.eq.s32.totalorder %s27, 0
      %p151 = por %p149, %p150
      %p152 = scmp.ne.s32.totalorder %s140, %s141
      %p153 = scmp.eq.s32.totalorder %s28, 3
      %p154 = por %p152, %p153
      %p156 = scmp.ne.s32.totalorder %s141, %s155
      %p157 = scmp.eq.s32.totalorder %s28, 0
      %p158 = por %p156, %p157
      %s160 = sadd.s32 %s159, 1
      %p163 = scmp.eq.s32.totalorder %s22, 3
      %p164 = scmp.ne.s32.totalorder %s159, %s161
      %p165 = scmp.eq.s32.totalorder %s22, 0
      %p166 = por %p164, %p165
      %p167 = scmp.ne.s32.totalorder %s159, %s161
      %p168 = scmp.eq.s32.totalorder %s27, 3
      %p169 = por %p167, %p168
      %p170 = scmp.ne.s32.totalorder %s161, %s162
      %p171 = scmp.eq.s32.totalorder %s27, 0
      %p172 = por %p170, %p171
      %p173 = scmp.ne.s32.totalorder %s161, %s162
      %p174 = scmp.eq.s32.totalorder %s28, 3
      %p175 = por %p173, %p174
      %p177 = scmp.ne.s32.totalorder %s162, %s176
      %p178 = scmp.eq.s32.totalorder %s28, 0
      %p179 = por %p177, %p178
      %s181 = sadd.s32 %s180, 1
      %p184 = scmp.eq.s32.totalorder %s22, 3
      %p185 = scmp.ne.s32.totalorder %s180, %s182
      %p186 = scmp.eq.s32.totalorder %s22, 0
      %p187 = por %p185, %p186
      %p188 = scmp.ne.s32.totalorder %s180, %s182
      %p189 = scmp.eq.s32.totalorder %s27, 3
      %p190 = por %p188, %p189
      %p191 = scmp.ne.s32.totalorder %s182, %s183
      %p192 = scmp.eq.s32.totalorder %s27, 0
      %p193 = por %p191, %p192
      %p194 = scmp.ne.s32.totalorder %s182, %s183
      %p195 = scmp.eq.s32.totalorder %s28, 3
      %p196 = por %p194, %p195
      %p198 = scmp.ne.s32.totalorder %s183, %s197
      %p199 = scmp.eq.s32.totalorder %s28, 0
      %p200 = por %p198, %p199
      %s201 = ssub.s32 %s29, %s41
      %p202 = scmp.eq.s32.totalorder %s201, 0
      %s204 = sadd.s32 %s203, 1
      %s205 = scalar_select %p202, %s203, %s204
      %p208 = pneg %p202
      %p209 = scmp.eq.s32.totalorder %s22, 3
      %p210 = por %p208, %p209
      %p211 = scmp.ne.s32.totalorder %s203, %s206
      %p212 = scmp.eq.s32.totalorder %s22, 0
      %p213 = por %p211, %p212
      %p214 = scmp.ne.s32.totalorder %s203, %s206
      %p215 = scmp.eq.s32.totalorder %s27, 3
      %p216 = por %p214, %p215
      %p217 = scmp.ne.s32.totalorder %s206, %s207
      %p218 = scmp.eq.s32.totalorder %s27, 0
      %p219 = por %p217, %p218
      %p220 = scmp.ne.s32.totalorder %s206, %s207
      %p221 = scmp.eq.s32.totalorder %s28, 3
      %p222 = por %p220, %p221
      %p224 = scmp.ne.s32.totalorder %s207, %s223
      %p225 = scmp.eq.s32.totalorder %s28, 0
      %p226 = por %p224, %p225
      %p227 = scmp.le.s32.totalorder 1, %s22
      %p228 = scmp.lt.s32.totalorder %s22, 5
      %p229 = pnand %p227, %p228
      %p230 = pneg %p229
      // Predicated region
      $region9: #{tpu_custom_call.1} parent=5 // pred_check
        _
      $region10: #{tpu_custom_call.1} parent=5 // pred_check_branch
        %232 = sbr.rel (%p229) target = $region12
      $region11: #{tpu_custom_call.1} parent=5 // pred_region
        %s233 = ssub.s32 %s22, 1
        // Predicated region
        $region13: #{tpu_custom_call.1} parent=11 // pred_check
          %p234 = pneg %p109
        $region14: #{tpu_custom_call.1} parent=11 // pred_check_branch
          %236 = sbr.rel (%p234) target = $region16
        $region15: #{tpu_custom_call.1} parent=11 // pred_region
          %s238 = ssub.s32 128, 128
          %239 = vsyncadd [#allocation7], %s238
          %s241 = sshll.u32 [#allocation8], 4
          %s242 = int_to_ptr.vmem [resolvable:$true] %s241
          %244 = dma.hbm_to_vmem [thread:$0]  %s2, 128, %s242, [#allocation7]
        $region16: #{tpu_custom_call.1} parent=11 // pred_fallthru
          _
        // Predicated region
        $region17: #{tpu_custom_call.1} parent=11 // pred_check
          %p245 = pneg %p130
        $region18: #{tpu_custom_call.1} parent=11 // pred_check_branch
          %247 = sbr.rel (%p245) target = $region20
        $region19: #{tpu_custom_call.1} parent=11 // pred_region
          %s249 = ssub.s32 16384, 16384
          %250 = vsyncadd [#allocation10], %s249
          %s251 = sshll.u32 [#allocation9], 4
          %s252 = int_to_ptr.vmem [resolvable:$true] %s251
          %257 = dma.hbm_to_vmem [thread:$0]  %s3, 16384, %s252, [#allocation10], 128, 128, 8
        $region20: #{tpu_custom_call.1} parent=11 // pred_fallthru
          _
        // Predicated region
        $region21: #{tpu_custom_call.1} parent=11 // pred_check
          %p258 = pneg %p151
        $region22: #{tpu_custom_call.1} parent=11 // pred_check_branch
          %260 = sbr.rel (%p258) target = $region24
        $region23: #{tpu_custom_call.1} parent=11 // pred_region
          %s262 = ssub.s32 16, 16
          %263 = vsyncadd [#allocation10], %s262
          %s265 = sshll.u32 [#allocation11], 4
          %s266 = int_to_ptr.vmem [resolvable:$true] %s265
          %268 = dma.hbm_to_vmem [thread:$0]  %s4, 16, %s266, [#allocation10]
        $region24: #{tpu_custom_call.1} parent=11 // pred_fallthru
          _
        // Predicated region
        $region25: #{tpu_custom_call.1} parent=11 // pred_check
          %p269 = pneg %p172
        $region26: #{tpu_custom_call.1} parent=11 // pred_check_branch
          %271 = sbr.rel (%p269) target = $region28
        $region27: #{tpu_custom_call.1} parent=11 // pred_region
          %s273 = ssub.s32 2048, 2048
          %274 = vsyncadd [#allocation13], %s273
          %s275 = sshll.u32 [#allocation12], 4
          %s276 = int_to_ptr.vmem [resolvable:$true] %s275
          %281 = dma.hbm_to_vmem [thread:$0]  %s5, 2048, %s276, [#allocation13], 128, 128, 8
        $region28: #{tpu_custom_call.1} parent=11 // pred_fallthru
          _
        // Predicated region
        $region29: #{tpu_custom_call.1} parent=11 // pred_check
          %p282 = pneg %p193
        $region30: #{tpu_custom_call.1} parent=11 // pred_check_branch
          %284 = sbr.rel (%p282) target = $region32
        $region31: #{tpu_custom_call.1} parent=11 // pred_region
          %s286 = ssub.s32 16, 16
          %287 = vsyncadd [#allocation13], %s286
          %s289 = sshll.u32 [#allocation14], 4
          %s290 = int_to_ptr.vmem [resolvable:$true] %s289
          %292 = dma.hbm_to_vmem [thread:$0]  %s6, 16, %s290, [#allocation13]
        $region32: #{tpu_custom_call.1} parent=11 // pred_fallthru
          _
      $region12: #{tpu_custom_call.1} parent=5 // pred_fallthru
        _
      %p293 = scmp.lt.s32.totalorder %s22, 4
      // Predicated region
      $region33: #{tpu_custom_call.1} parent=5 // pred_check
        %p294 = pneg %p293
      $region34: #{tpu_custom_call.1} parent=5 // pred_check_branch
        %296 = sbr.rel (%p294) target = $region36
      $region35: #{tpu_custom_call.1} parent=5 // pred_region
        // Predicated region
        $region37: #{tpu_custom_call.1} parent=35 // pred_check
          %p297 = pneg %p56
        $region38: #{tpu_custom_call.1} parent=35 // pred_check_branch
          %299 = sbr.rel (%p297) target = $region40
        $region39: #{tpu_custom_call.1} parent=35 // pred_region
          %s300 = sand.u32 %s46, 1
          %s301 = scalar_lea.sflag [#allocation4], %s300
          %s302 = sand.u32 %s46, 1
          %s303 = smul.addr %s302, 32
          %s304 = scalar_lea.vmem [#allocation3], %s303
          %s305 = smul.u32 8, %s30
          %s307 = ssub.s32 512, 512
          %308 = vsyncadd %s301, %s307
          %s309 = smul.addr %s29, 32
          %s310 = sadd.s32 %s305, %s309
          %s311 = smul.addr %s310, 64
          %s312 = scalar_lea.hbm %s0, %s311
          %s314 = sshll.u32 %s304, 4
          %s315 = int_to_ptr.vmem [resolvable:$true] %s314
          %317 = dma.hbm_to_vmem [thread:$0]  %s312, 512, %s315, %s301
        $region40: #{tpu_custom_call.1} parent=35 // pred_fallthru
          _
        // Predicated region
        $region41: #{tpu_custom_call.1} parent=35 // pred_check
          %p318 = pneg %p82
        $region42: #{tpu_custom_call.1} parent=35 // pred_check_branch
          %320 = sbr.rel (%p318) target = $region44
        $region43: #{tpu_custom_call.1} parent=35 // pred_region
          %s321 = sand.u32 %s22, 1
          %s322 = scalar_lea.sflag [#allocation7], %s321
          %s323 = sand.u32 %s72, 1
          %s324 = smul.addr %s323, 4096
          %s325 = scalar_lea.vmem [#allocation6], %s324
          %s326 = smul.u32 128, %s30
          %s328 = ssub.s32 65536, 65536
          %329 = vsyncadd %s322, %s328
          %s330 = smul.addr %s326, 8
          %s331 = smul.addr %s330, 64
          %s332 = scalar_lea.hbm %s1, %s331
          %s333 = sshll.u32 %s325, 4
          %s334 = int_to_ptr.vmem [resolvable:$true] %s333
          %339 = dma.hbm_to_vmem [thread:$0]  %s332, 65536, %s334, %s322, 512, 512, 32
        $region44: #{tpu_custom_call.1} parent=35 // pred_fallthru
          _
      $region36: #{tpu_custom_call.1} parent=5 // pred_fallthru
        _
      %p340 = scmp.le.s32.totalorder 1, %s22
      %p341 = scmp.lt.s32.totalorder %s22, 5
      %p342 = pnand %p340, %p341
      %p343 = pneg %p342
      // Predicated region
      $region45: #{tpu_custom_call.1} parent=5 // pred_check
        _
      $region46: #{tpu_custom_call.1} parent=5 // pred_check_branch
        %345 = sbr.rel (%p342) target = $region48
      $region47: #{tpu_custom_call.1} parent=5 // pred_region
        %s346 = ssub.s32 %s22, 1
        %s347 = sand.u32 %s49, 1
        %s348 = scalar_lea.sflag [#allocation4], %s347
        %s349 = sand.u32 %s49, 1
        %s350 = smul.addr %s349, 32
        %s351 = scalar_lea.vmem [#allocation3], %s350
        // Predicated region
        $region49: #{tpu_custom_call.1} parent=47 // pred_check
          %p352 = pneg %p62
        $region50: #{tpu_custom_call.1} parent=47 // pred_check_branch
          %354 = sbr.rel (%p352) target = $region52
        $region51: #{tpu_custom_call.1} parent=47 // pred_region
          %355 = dma.done %s348, 512
        $region52: #{tpu_custom_call.1} parent=47 // pred_fallthru
          _
        %s356 = sand.u32 %s27, 1
        %s357 = scalar_lea.sflag [#allocation7], %s356
        %s358 = sand.u32 %s75, 1
        %s359 = smul.addr %s358, 4096
        %s360 = scalar_lea.vmem [#allocation6], %s359
        // Predicated region
        $region53: #{tpu_custom_call.1} parent=47 // pred_check
          %p361 = pneg %p88
        $region54: #{tpu_custom_call.1} parent=47 // pred_check_branch
          %363 = sbr.rel (%p361) target = $region56
        $region55: #{tpu_custom_call.1} parent=47 // pred_region
          %364 = dma.done %s357, 65536
        $region56: #{tpu_custom_call.1} parent=47 // pred_fallthru
          _
        // Predicated region
        $region57: #{tpu_custom_call.1} parent=47 // pred_check
          %p365 = pneg %p109
        $region58: #{tpu_custom_call.1} parent=47 // pred_check_branch
          %367 = sbr.rel (%p365) target = $region60
        $region59: #{tpu_custom_call.1} parent=47 // pred_region
          %368 = dma.done [#allocation7], 128
        $region60: #{tpu_custom_call.1} parent=47 // pred_fallthru
          _
        // Predicated region
        $region61: #{tpu_custom_call.1} parent=47 // pred_check
          %p369 = pneg %p130
        $region62: #{tpu_custom_call.1} parent=47 // pred_check_branch
          %371 = sbr.rel (%p369) target = $region64
        $region63: #{tpu_custom_call.1} parent=47 // pred_region
          %372 = dma.done [#allocation10], 16384
        $region64: #{tpu_custom_call.1} parent=47 // pred_fallthru
          _
        // Predicated region
        $region65: #{tpu_custom_call.1} parent=47 // pred_check
          %p373 = pneg %p151
        $region66: #{tpu_custom_call.1} parent=47 // pred_check_branch
          %375 = sbr.rel (%p373) target = $region68
        $region67: #{tpu_custom_call.1} parent=47 // pred_region
          %376 = dma.done [#allocation10], 16
        $region68: #{tpu_custom_call.1} parent=47 // pred_fallthru
          _
        // Predicated region
        $region69: #{tpu_custom_call.1} parent=47 // pred_check
          %p377 = pneg %p172
        $region70: #{tpu_custom_call.1} parent=47 // pred_check_branch
          %379 = sbr.rel (%p377) target = $region72
        $region71: #{tpu_custom_call.1} parent=47 // pred_region
          %380 = dma.done [#allocation13], 2048
        $region72: #{tpu_custom_call.1} parent=47 // pred_fallthru
          _
        // Predicated region
        $region73: #{tpu_custom_call.1} parent=47 // pred_check
          %p381 = pneg %p193
        $region74: #{tpu_custom_call.1} parent=47 // pred_check_branch
          %383 = sbr.rel (%p381) target = $region76
        $region75: #{tpu_custom_call.1} parent=47 // pred_region
          %384 = dma.done [#allocation13], 16
        $region76: #{tpu_custom_call.1} parent=47 // pred_fallthru
          _
        %s385 = sand.u32 %s49, 1
        %s386 = scalar_lea.sflag [#allocation4], %s385
        %s387 = sand.u32 %s49, 1
        %s388 = smul.addr %s387, 32
        %s389 = scalar_lea.vmem [#allocation3], %s388
        %p390 = pneg %p62
        %p391 = pneg %p59
        %s392 = sand.u32 %s27, 1
        %s393 = scalar_lea.sflag [#allocation7], %s392
        %s394 = sand.u32 %s75, 1
        %s395 = smul.addr %s394, 4096
        %s396 = scalar_lea.vmem [#allocation6], %s395
        %p397 = pneg %p88
        %p398 = pneg %p85
        %p399 = pneg %p109
        %p400 = pneg %p106
        %p401 = pneg %p130
        %p402 = pneg %p127
        %p403 = pneg %p151
        %p404 = pneg %p148
        %p405 = pneg %p172
        %p406 = pneg %p169
        %p407 = pneg %p193
        %p408 = pneg %p190
        %p409 = pneg %p219
        %p410 = pneg %p216
        %s411 = smul.u32 8, %s32
        %s412 = smul.u32 128, %s32
        %p413 = scmp.eq.s32.totalorder %s32, 0
        // Predicated region
        $region77: #{tpu_custom_call.1} parent=47 // pred_check
          %p414 = pneg %p413
        $region78: #{tpu_custom_call.1} parent=47 // pred_check_branch
          %416 = sbr.rel (%p414) target = $region80
        $region79: #{tpu_custom_call.1} parent=47 // pred_region
          %417 = vst [vmem:[#allocation2] sm:$0xff] 0.0
          %418 = vst [vmem:[#allocation2 + $0x8] sm:$0xff] 0.0
          %419 = vst [vmem:[#allocation2 + $0x10] sm:$0xff] 0.0
          %420 = vst [vmem:[#allocation2 + $0x18] sm:$0xff] 0.0
          %421 = vst [vmem:[#allocation2 + $0x20] sm:$0xff] 0.0
          %422 = vst [vmem:[#allocation2 + $0x28] sm:$0xff] 0.0
          %423 = vst [vmem:[#allocation2 + $0x30] sm:$0xff] 0.0
          %424 = vst [vmem:[#allocation2 + $0x38] sm:$0xff] 0.0
        $region80: #{tpu_custom_call.1} parent=47 // pred_fallthru
          _
        %v425 = vld [vmem:[#allocation2] sm:$0xff]
        %v426 = vld [vmem:[#allocation2 + $0x8] sm:$0xff]
        %v427 = vld [vmem:[#allocation2 + $0x10] sm:$0xff]
        %v428 = vld [vmem:[#allocation2 + $0x18] sm:$0xff]
        %v429 = vld [vmem:[#allocation2 + $0x20] sm:$0xff]
        %v430 = vld [vmem:[#allocation2 + $0x28] sm:$0xff]
        %v431 = vld [vmem:[#allocation2 + $0x30] sm:$0xff]
        %v432 = vld [vmem:[#allocation2 + $0x38] sm:$0xff]
        %v433 = vld [vmem:[%s351] sm:$0xff]
        %v434 = vld [vmem:[%s351 + $0x8] sm:$0xff]
        %v435 = vld [vmem:[%s351 + $0x10] sm:$0xff]
        %v436 = vld [vmem:[%s351 + $0x18] sm:$0xff]
        %v437 = vld [vmem:[%s360] sm:$0xff]
        %v438 = vld [vmem:[%s360 + $0x8] sm:$0xff]
        %v439 = vld [vmem:[%s360 + $0x10] sm:$0xff]
        %v440 = vld [vmem:[%s360 + $0x18] sm:$0xff]
        %v441 = vld [vmem:[%s360 + $0x20] sm:$0xff]
        %v442 = vld [vmem:[%s360 + $0x28] sm:$0xff]
        %v443 = vld [vmem:[%s360 + $0x30] sm:$0xff]
        %v444 = vld [vmem:[%s360 + $0x38] sm:$0xff]
        %v445 = vld [vmem:[%s360 + $0x40] sm:$0xff]
        %v446 = vld [vmem:[%s360 + $0x48] sm:$0xff]
        %v447 = vld [vmem:[%s360 + $0x50] sm:$0xff]
        %v448 = vld [vmem:[%s360 + $0x58] sm:$0xff]
        %v449 = vld [vmem:[%s360 + $0x60] sm:$0xff]
        %v450 = vld [vmem:[%s360 + $0x68] sm:$0xff]
        %v451 = vld [vmem:[%s360 + $0x70] sm:$0xff]
        %v452 = vld [vmem:[%s360 + $0x78] sm:$0xff]
        %v453 = vld [vmem:[%s360 + $0x80] sm:$0xff]
        %v454 = vld [vmem:[%s360 + $0x88] sm:$0xff]
        %v455 = vld [vmem:[%s360 + $0x90] sm:$0xff]
        %v456 = vld [vmem:[%s360 + $0x98] sm:$0xff]
        %v457 = vld [vmem:[%s360 + $0xa0] sm:$0xff]
        %v458 = vld [vmem:[%s360 + $0xa8] sm:$0xff]
        %v459 = vld [vmem:[%s360 + $0xb0] sm:$0xff]
        %v460 = vld [vmem:[%s360 + $0xb8] sm:$0xff]
        %v461 = vld [vmem:[%s360 + $0xc0] sm:$0xff]
        %v462 = vld [vmem:[%s360 + $0xc8] sm:$0xff]
        %v463 = vld [vmem:[%s360 + $0xd0] sm:$0xff]
        %v464 = vld [vmem:[%s360 + $0xd8] sm:$0xff]
        %v465 = vld [vmem:[%s360 + $0xe0] sm:$0xff]
        %v466 = vld [vmem:[%s360 + $0xe8] sm:$0xff]
        %v467 = vld [vmem:[%s360 + $0xf0] sm:$0xff]
        %v468 = vld [vmem:[%s360 + $0xf8] sm:$0xff]
        %v469 = vld [vmem:[%s360 + $0x100] sm:$0xff]
        %v470 = vld [vmem:[%s360 + $0x108] sm:$0xff]
        %v471 = vld [vmem:[%s360 + $0x110] sm:$0xff]
        %v472 = vld [vmem:[%s360 + $0x118] sm:$0xff]
        %v473 = vld [vmem:[%s360 + $0x120] sm:$0xff]
        %v474 = vld [vmem:[%s360 + $0x128] sm:$0xff]
        %v475 = vld [vmem:[%s360 + $0x130] sm:$0xff]
        %v476 = vld [vmem:[%s360 + $0x138] sm:$0xff]
        %v477 = vld [vmem:[%s360 + $0x140] sm:$0xff]
        %v478 = vld [vmem:[%s360 + $0x148] sm:$0xff]
        %v479 = vld [vmem:[%s360 + $0x150] sm:$0xff]
        %v480 = vld [vmem:[%s360 + $0x158] sm:$0xff]
        %v481 = vld [vmem:[%s360 + $0x160] sm:$0xff]
        %v482 = vld [vmem:[%s360 + $0x168] sm:$0xff]
        %v483 = vld [vmem:[%s360 + $0x170] sm:$0xff]
        %v484 = vld [vmem:[%s360 + $0x178] sm:$0xff]
        %v485 = vld [vmem:[%s360 + $0x180] sm:$0xff]
        %v486 = vld [vmem:[%s360 + $0x188] sm:$0xff]
        %v487 = vld [vmem:[%s360 + $0x190] sm:$0xff]
        %v488 = vld [vmem:[%s360 + $0x198] sm:$0xff]
        %v489 = vld [vmem:[%s360 + $0x1a0] sm:$0xff]
        %v490 = vld [vmem:[%s360 + $0x1a8] sm:$0xff]
        %v491 = vld [vmem:[%s360 + $0x1b0] sm:$0xff]
        %v492 = vld [vmem:[%s360 + $0x1b8] sm:$0xff]
        %v493 = vld [vmem:[%s360 + $0x1c0] sm:$0xff]
        %v494 = vld [vmem:[%s360 + $0x1c8] sm:$0xff]
        %v495 = vld [vmem:[%s360 + $0x1d0] sm:$0xff]
        %v496 = vld [vmem:[%s360 + $0x1d8] sm:$0xff]
        %v497 = vld [vmem:[%s360 + $0x1e0] sm:$0xff]
        %v498 = vld [vmem:[%s360 + $0x1e8] sm:$0xff]
        %v499 = vld [vmem:[%s360 + $0x1f0] sm:$0xff]
        %v500 = vld [vmem:[%s360 + $0x1f8] sm:$0xff]
        %v501 = vld [vmem:[%s360 + $0x200] sm:$0xff]
        %v502 = vld [vmem:[%s360 + $0x208] sm:$0xff]
        %v503 = vld [vmem:[%s360 + $0x210] sm:$0xff]
        %v504 = vld [vmem:[%s360 + $0x218] sm:$0xff]
        %v505 = vld [vmem:[%s360 + $0x220] sm:$0xff]
        %v506 = vld [vmem:[%s360 + $0x228] sm:$0xff]
        %v507 = vld [vmem:[%s360 + $0x230] sm:$0xff]
        %v508 = vld [vmem:[%s360 + $0x238] sm:$0xff]
        %v509 = vld [vmem:[%s360 + $0x240] sm:$0xff]
        %v510 = vld [vmem:[%s360 + $0x248] sm:$0xff]
        %v511 = vld [vmem:[%s360 + $0x250] sm:$0xff]
        %v512 = vld [vmem:[%s360 + $0x258] sm:$0xff]
        %v513 = vld [vmem:[%s360 + $0x260] sm:$0xff]
        %v514 = vld [vmem:[%s360 + $0x268] sm:$0xff]
        %v515 = vld [vmem:[%s360 + $0x270] sm:$0xff]
        %v516 = vld [vmem:[%s360 + $0x278] sm:$0xff]
        %v517 = vld [vmem:[%s360 + $0x280] sm:$0xff]
        %v518 = vld [vmem:[%s360 + $0x288] sm:$0xff]
        %v519 = vld [vmem:[%s360 + $0x290] sm:$0xff]
        %v520 = vld [vmem:[%s360 + $0x298] sm:$0xff]
        %v521 = vld [vmem:[%s360 + $0x2a0] sm:$0xff]
        %v522 = vld [vmem:[%s360 + $0x2a8] sm:$0xff]
        %v523 = vld [vmem:[%s360 + $0x2b0] sm:$0xff]
        %v524 = vld [vmem:[%s360 + $0x2b8] sm:$0xff]
        %v525 = vld [vmem:[%s360 + $0x2c0] sm:$0xff]
        %v526 = vld [vmem:[%s360 + $0x2c8] sm:$0xff]
        %v527 = vld [vmem:[%s360 + $0x2d0] sm:$0xff]
        %v528 = vld [vmem:[%s360 + $0x2d8] sm:$0xff]
        %v529 = vld [vmem:[%s360 + $0x2e0] sm:$0xff]
        %v530 = vld [vmem:[%s360 + $0x2e8] sm:$0xff]
        %v531 = vld [vmem:[%s360 + $0x2f0] sm:$0xff]
        %v532 = vld [vmem:[%s360 + $0x2f8] sm:$0xff]
        %v533 = vld [vmem:[%s360 + $0x300] sm:$0xff]
        %v534 = vld [vmem:[%s360 + $0x308] sm:$0xff]
        %v535 = vld [vmem:[%s360 + $0x310] sm:$0xff]
        %v536 = vld [vmem:[%s360 + $0x318] sm:$0xff]
        %v537 = vld [vmem:[%s360 + $0x320] sm:$0xff]
        %v538 = vld [vmem:[%s360 + $0x328] sm:$0xff]
        %v539 = vld [vmem:[%s360 + $0x330] sm:$0xff]
        %v540 = vld [vmem:[%s360 + $0x338] sm:$0xff]
        %v541 = vld [vmem:[%s360 + $0x340] sm:$0xff]
        %v542 = vld [vmem:[%s360 + $0x348] sm:$0xff]
        %v543 = vld [vmem:[%s360 + $0x350] sm:$0xff]
        %v544 = vld [vmem:[%s360 + $0x358] sm:$0xff]
        %v545 = vld [vmem:[%s360 + $0x360] sm:$0xff]
        %v546 = vld [vmem:[%s360 + $0x368] sm:$0xff]
        %v547 = vld [vmem:[%s360 + $0x370] sm:$0xff]
        %v548 = vld [vmem:[%s360 + $0x378] sm:$0xff]
        %v549 = vld [vmem:[%s360 + $0x380] sm:$0xff]
        %v550 = vld [vmem:[%s360 + $0x388] sm:$0xff]
        %v551 = vld [vmem:[%s360 + $0x390] sm:$0xff]
        %v552 = vld [vmem:[%s360 + $0x398] sm:$0xff]
        %v553 = vld [vmem:[%s360 + $0x3a0] sm:$0xff]
        %v554 = vld [vmem:[%s360 + $0x3a8] sm:$0xff]
        %v555 = vld [vmem:[%s360 + $0x3b0] sm:$0xff]
        %v556 = vld [vmem:[%s360 + $0x3b8] sm:$0xff]
        %v557 = vld [vmem:[%s360 + $0x3c0] sm:$0xff]
        %v558 = vld [vmem:[%s360 + $0x3c8] sm:$0xff]
        %v559 = vld [vmem:[%s360 + $0x3d0] sm:$0xff]
        %v560 = vld [vmem:[%s360 + $0x3d8] sm:$0xff]
        %v561 = vld [vmem:[%s360 + $0x3e0] sm:$0xff]
        %v562 = vld [vmem:[%s360 + $0x3e8] sm:$0xff]
        %v563 = vld [vmem:[%s360 + $0x3f0] sm:$0xff]
        %v564 = vld [vmem:[%s360 + $0x3f8] sm:$0xff]
        %v565 = vld [vmem:[%s360 + $0x400] sm:$0xff]
        %v566 = vld [vmem:[%s360 + $0x408] sm:$0xff]
        %v567 = vld [vmem:[%s360 + $0x410] sm:$0xff]
        %v568 = vld [vmem:[%s360 + $0x418] sm:$0xff]
        %v569 = vld [vmem:[%s360 + $0x420] sm:$0xff]
        %v570 = vld [vmem:[%s360 + $0x428] sm:$0xff]
        %v571 = vld [vmem:[%s360 + $0x430] sm:$0xff]
        %v572 = vld [vmem:[%s360 + $0x438] sm:$0xff]
        %v573 = vld [vmem:[%s360 + $0x440] sm:$0xff]
        %v574 = vld [vmem:[%s360 + $0x448] sm:$0xff]
        %v575 = vld [vmem:[%s360 + $0x450] sm:$0xff]
        %v576 = vld [vmem:[%s360 + $0x458] sm:$0xff]
        %v577 = vld [vmem:[%s360 + $0x460] sm:$0xff]
        %v578 = vld [vmem:[%s360 + $0x468] sm:$0xff]
        %v579 = vld [vmem:[%s360 + $0x470] sm:$0xff]
        %v580 = vld [vmem:[%s360 + $0x478] sm:$0xff]
        %v581 = vld [vmem:[%s360 + $0x480] sm:$0xff]
        %v582 = vld [vmem:[%s360 + $0x488] sm:$0xff]
        %v583 = vld [vmem:[%s360 + $0x490] sm:$0xff]
        %v584 = vld [vmem:[%s360 + $0x498] sm:$0xff]
        %v585 = vld [vmem:[%s360 + $0x4a0] sm:$0xff]
        %v586 = vld [vmem:[%s360 + $0x4a8] sm:$0xff]
        %v587 = vld [vmem:[%s360 + $0x4b0] sm:$0xff]
        %v588 = vld [vmem:[%s360 + $0x4b8] sm:$0xff]
        %v589 = vld [vmem:[%s360 + $0x4c0] sm:$0xff]
        %v590 = vld [vmem:[%s360 + $0x4c8] sm:$0xff]
        %v591 = vld [vmem:[%s360 + $0x4d0] sm:$0xff]
        %v592 = vld [vmem:[%s360 + $0x4d8] sm:$0xff]
        %v593 = vld [vmem:[%s360 + $0x4e0] sm:$0xff]
        %v594 = vld [vmem:[%s360 + $0x4e8] sm:$0xff]
        %v595 = vld [vmem:[%s360 + $0x4f0] sm:$0xff]
        %v596 = vld [vmem:[%s360 + $0x4f8] sm:$0xff]
        %v597 = vld [vmem:[%s360 + $0x500] sm:$0xff]
        %v598 = vld [vmem:[%s360 + $0x508] sm:$0xff]
        %v599 = vld [vmem:[%s360 + $0x510] sm:$0xff]
        %v600 = vld [vmem:[%s360 + $0x518] sm:$0xff]
        %v601 = vld [vmem:[%s360 + $0x520] sm:$0xff]
        %v602 = vld [vmem:[%s360 + $0x528] sm:$0xff]
        %v603 = vld [vmem:[%s360 + $0x530] sm:$0xff]
        %v604 = vld [vmem:[%s360 + $0x538] sm:$0xff]
        %v605 = vld [vmem:[%s360 + $0x540] sm:$0xff]
        %v606 = vld [vmem:[%s360 + $0x548] sm:$0xff]
        %v607 = vld [vmem:[%s360 + $0x550] sm:$0xff]
        %v608 = vld [vmem:[%s360 + $0x558] sm:$0xff]
        %v609 = vld [vmem:[%s360 + $0x560] sm:$0xff]
        %v610 = vld [vmem:[%s360 + $0x568] sm:$0xff]
        %v611 = vld [vmem:[%s360 + $0x570] sm:$0xff]
        %v612 = vld [vmem:[%s360 + $0x578] sm:$0xff]
        %v613 = vld [vmem:[%s360 + $0x580] sm:$0xff]
        %v614 = vld [vmem:[%s360 + $0x588] sm:$0xff]
        %v615 = vld [vmem:[%s360 + $0x590] sm:$0xff]
        %v616 = vld [vmem:[%s360 + $0x598] sm:$0xff]
        %v617 = vld [vmem:[%s360 + $0x5a0] sm:$0xff]
        %v618 = vld [vmem:[%s360 + $0x5a8] sm:$0xff]
        %v619 = vld [vmem:[%s360 + $0x5b0] sm:$0xff]
        %v620 = vld [vmem:[%s360 + $0x5b8] sm:$0xff]
        %v621 = vld [vmem:[%s360 + $0x5c0] sm:$0xff]
        %v622 = vld [vmem:[%s360 + $0x5c8] sm:$0xff]
        %v623 = vld [vmem:[%s360 + $0x5d0] sm:$0xff]
        %v624 = vld [vmem:[%s360 + $0x5d8] sm:$0xff]
        %v625 = vld [vmem:[%s360 + $0x5e0] sm:$0xff]
        %v626 = vld [vmem:[%s360 + $0x5e8] sm:$0xff]
        %v627 = vld [vmem:[%s360 + $0x5f0] sm:$0xff]
        %v628 = vld [vmem:[%s360 + $0x5f8] sm:$0xff]
        %v629 = vld [vmem:[%s360 + $0x600] sm:$0xff]
        %v630 = vld [vmem:[%s360 + $0x608] sm:$0xff]
        %v631 = vld [vmem:[%s360 + $0x610] sm:$0xff]
        %v632 = vld [vmem:[%s360 + $0x618] sm:$0xff]
        %v633 = vld [vmem:[%s360 + $0x620] sm:$0xff]
        %v634 = vld [vmem:[%s360 + $0x628] sm:$0xff]
        %v635 = vld [vmem:[%s360 + $0x630] sm:$0xff]
        %v636 = vld [vmem:[%s360 + $0x638] sm:$0xff]
        %v637 = vld [vmem:[%s360 + $0x640] sm:$0xff]
        %v638 = vld [vmem:[%s360 + $0x648] sm:$0xff]
        %v639 = vld [vmem:[%s360 + $0x650] sm:$0xff]
        %v640 = vld [vmem:[%s360 + $0x658] sm:$0xff]
        %v641 = vld [vmem:[%s360 + $0x660] sm:$0xff]
        %v642 = vld [vmem:[%s360 + $0x668] sm:$0xff]
        %v643 = vld [vmem:[%s360 + $0x670] sm:$0xff]
        %v644 = vld [vmem:[%s360 + $0x678] sm:$0xff]
        %v645 = vld [vmem:[%s360 + $0x680] sm:$0xff]
        %v646 = vld [vmem:[%s360 + $0x688] sm:$0xff]
        %v647 = vld [vmem:[%s360 + $0x690] sm:$0xff]
        %v648 = vld [vmem:[%s360 + $0x698] sm:$0xff]
        %v649 = vld [vmem:[%s360 + $0x6a0] sm:$0xff]
        %v650 = vld [vmem:[%s360 + $0x6a8] sm:$0xff]
        %v651 = vld [vmem:[%s360 + $0x6b0] sm:$0xff]
        %v652 = vld [vmem:[%s360 + $0x6b8] sm:$0xff]
        %v653 = vld [vmem:[%s360 + $0x6c0] sm:$0xff]
        %v654 = vld [vmem:[%s360 + $0x6c8] sm:$0xff]
        %v655 = vld [vmem:[%s360 + $0x6d0] sm:$0xff]
        %v656 = vld [vmem:[%s360 + $0x6d8] sm:$0xff]
        %v657 = vld [vmem:[%s360 + $0x6e0] sm:$0xff]
        %v658 = vld [vmem:[%s360 + $0x6e8] sm:$0xff]
        %v659 = vld [vmem:[%s360 + $0x6f0] sm:$0xff]
        %v660 = vld [vmem:[%s360 + $0x6f8] sm:$0xff]
        %v661 = vld [vmem:[%s360 + $0x700] sm:$0xff]
        %v662 = vld [vmem:[%s360 + $0x708] sm:$0xff]
        %v663 = vld [vmem:[%s360 + $0x710] sm:$0xff]
        %v664 = vld [vmem:[%s360 + $0x718] sm:$0xff]
        %v665 = vld [vmem:[%s360 + $0x720] sm:$0xff]
        %v666 = vld [vmem:[%s360 + $0x728] sm:$0xff]
        %v667 = vld [vmem:[%s360 + $0x730] sm:$0xff]
        %v668 = vld [vmem:[%s360 + $0x738] sm:$0xff]
        %v669 = vld [vmem:[%s360 + $0x740] sm:$0xff]
        %v670 = vld [vmem:[%s360 + $0x748] sm:$0xff]
        %v671 = vld [vmem:[%s360 + $0x750] sm:$0xff]
        %v672 = vld [vmem:[%s360 + $0x758] sm:$0xff]
        %v673 = vld [vmem:[%s360 + $0x760] sm:$0xff]
        %v674 = vld [vmem:[%s360 + $0x768] sm:$0xff]
        %v675 = vld [vmem:[%s360 + $0x770] sm:$0xff]
        %v676 = vld [vmem:[%s360 + $0x778] sm:$0xff]
        %v677 = vld [vmem:[%s360 + $0x780] sm:$0xff]
        %v678 = vld [vmem:[%s360 + $0x788] sm:$0xff]
        %v679 = vld [vmem:[%s360 + $0x790] sm:$0xff]
        %v680 = vld [vmem:[%s360 + $0x798] sm:$0xff]
        %v681 = vld [vmem:[%s360 + $0x7a0] sm:$0xff]
        %v682 = vld [vmem:[%s360 + $0x7a8] sm:$0xff]
        %v683 = vld [vmem:[%s360 + $0x7b0] sm:$0xff]
        %v684 = vld [vmem:[%s360 + $0x7b8] sm:$0xff]
        %v685 = vld [vmem:[%s360 + $0x7c0] sm:$0xff]
        %v686 = vld [vmem:[%s360 + $0x7c8] sm:$0xff]
        %v687 = vld [vmem:[%s360 + $0x7d0] sm:$0xff]
        %v688 = vld [vmem:[%s360 + $0x7d8] sm:$0xff]
        %v689 = vld [vmem:[%s360 + $0x7e0] sm:$0xff]
        %v690 = vld [vmem:[%s360 + $0x7e8] sm:$0xff]
        %v691 = vld [vmem:[%s360 + $0x7f0] sm:$0xff]
        %v692 = vld [vmem:[%s360 + $0x7f8] sm:$0xff]
        %v693 = vld [vmem:[%s360 + $0x800] sm:$0xff]
        %v694 = vld [vmem:[%s360 + $0x808] sm:$0xff]
        %v695 = vld [vmem:[%s360 + $0x810] sm:$0xff]
        %v696 = vld [vmem:[%s360 + $0x818] sm:$0xff]
        %v697 = vld [vmem:[%s360 + $0x820] sm:$0xff]
        %v698 = vld [vmem:[%s360 + $0x828] sm:$0xff]
        %v699 = vld [vmem:[%s360 + $0x830] sm:$0xff]
        %v700 = vld [vmem:[%s360 + $0x838] sm:$0xff]
        %v701 = vld [vmem:[%s360 + $0x840] sm:$0xff]
        %v702 = vld [vmem:[%s360 + $0x848] sm:$0xff]
        %v703 = vld [vmem:[%s360 + $0x850] sm:$0xff]
        %v704 = vld [vmem:[%s360 + $0x858] sm:$0xff]
        %v705 = vld [vmem:[%s360 + $0x860] sm:$0xff]
        %v706 = vld [vmem:[%s360 + $0x868] sm:$0xff]
        %v707 = vld [vmem:[%s360 + $0x870] sm:$0xff]
        %v708 = vld [vmem:[%s360 + $0x878] sm:$0xff]
        %v709 = vld [vmem:[%s360 + $0x880] sm:$0xff]
        %v710 = vld [vmem:[%s360 + $0x888] sm:$0xff]
        %v711 = vld [vmem:[%s360 + $0x890] sm:$0xff]
        %v712 = vld [vmem:[%s360 + $0x898] sm:$0xff]
        %v713 = vld [vmem:[%s360 + $0x8a0] sm:$0xff]
        %v714 = vld [vmem:[%s360 + $0x8a8] sm:$0xff]
        %v715 = vld [vmem:[%s360 + $0x8b0] sm:$0xff]
        %v716 = vld [vmem:[%s360 + $0x8b8] sm:$0xff]
        %v717 = vld [vmem:[%s360 + $0x8c0] sm:$0xff]
        %v718 = vld [vmem:[%s360 + $0x8c8] sm:$0xff]
        %v719 = vld [vmem:[%s360 + $0x8d0] sm:$0xff]
        %v720 = vld [vmem:[%s360 + $0x8d8] sm:$0xff]
        %v721 = vld [vmem:[%s360 + $0x8e0] sm:$0xff]
        %v722 = vld [vmem:[%s360 + $0x8e8] sm:$0xff]
        %v723 = vld [vmem:[%s360 + $0x8f0] sm:$0xff]
        %v724 = vld [vmem:[%s360 + $0x8f8] sm:$0xff]
        %v725 = vld [vmem:[%s360 + $0x900] sm:$0xff]
        %v726 = vld [vmem:[%s360 + $0x908] sm:$0xff]
        %v727 = vld [vmem:[%s360 + $0x910] sm:$0xff]
        %v728 = vld [vmem:[%s360 + $0x918] sm:$0xff]
        %v729 = vld [vmem:[%s360 + $0x920] sm:$0xff]
        %v730 = vld [vmem:[%s360 + $0x928] sm:$0xff]
        %v731 = vld [vmem:[%s360 + $0x930] sm:$0xff]
        %v732 = vld [vmem:[%s360 + $0x938] sm:$0xff]
        %v733 = vld [vmem:[%s360 + $0x940] sm:$0xff]
        %v734 = vld [vmem:[%s360 + $0x948] sm:$0xff]
        %v735 = vld [vmem:[%s360 + $0x950] sm:$0xff]
        %v736 = vld [vmem:[%s360 + $0x958] sm:$0xff]
        %v737 = vld [vmem:[%s360 + $0x960] sm:$0xff]
        %v738 = vld [vmem:[%s360 + $0x968] sm:$0xff]
        %v739 = vld [vmem:[%s360 + $0x970] sm:$0xff]
        %v740 = vld [vmem:[%s360 + $0x978] sm:$0xff]
        %v741 = vld [vmem:[%s360 + $0x980] sm:$0xff]
        %v742 = vld [vmem:[%s360 + $0x988] sm:$0xff]
        %v743 = vld [vmem:[%s360 + $0x990] sm:$0xff]
        %v744 = vld [vmem:[%s360 + $0x998] sm:$0xff]
        %v745 = vld [vmem:[%s360 + $0x9a0] sm:$0xff]
        %v746 = vld [vmem:[%s360 + $0x9a8] sm:$0xff]
        %v747 = vld [vmem:[%s360 + $0x9b0] sm:$0xff]
        %v748 = vld [vmem:[%s360 + $0x9b8] sm:$0xff]
        %v749 = vld [vmem:[%s360 + $0x9c0] sm:$0xff]
        %v750 = vld [vmem:[%s360 + $0x9c8] sm:$0xff]
        %v751 = vld [vmem:[%s360 + $0x9d0] sm:$0xff]
        %v752 = vld [vmem:[%s360 + $0x9d8] sm:$0xff]
        %v753 = vld [vmem:[%s360 + $0x9e0] sm:$0xff]
        %v754 = vld [vmem:[%s360 + $0x9e8] sm:$0xff]
        %v755 = vld [vmem:[%s360 + $0x9f0] sm:$0xff]
        %v756 = vld [vmem:[%s360 + $0x9f8] sm:$0xff]
        %v757 = vld [vmem:[%s360 + $0xa00] sm:$0xff]
        %v758 = vld [vmem:[%s360 + $0xa08] sm:$0xff]
        %v759 = vld [vmem:[%s360 + $0xa10] sm:$0xff]
        %v760 = vld [vmem:[%s360 + $0xa18] sm:$0xff]
        %v761 = vld [vmem:[%s360 + $0xa20] sm:$0xff]
        %v762 = vld [vmem:[%s360 + $0xa28] sm:$0xff]
        %v763 = vld [vmem:[%s360 + $0xa30] sm:$0xff]
        %v764 = vld [vmem:[%s360 + $0xa38] sm:$0xff]
        %v765 = vld [vmem:[%s360 + $0xa40] sm:$0xff]
        %v766 = vld [vmem:[%s360 + $0xa48] sm:$0xff]
        %v767 = vld [vmem:[%s360 + $0xa50] sm:$0xff]
        %v768 = vld [vmem:[%s360 + $0xa58] sm:$0xff]
        %v769 = vld [vmem:[%s360 + $0xa60] sm:$0xff]
        %v770 = vld [vmem:[%s360 + $0xa68] sm:$0xff]
        %v771 = vld [vmem:[%s360 + $0xa70] sm:$0xff]
        %v772 = vld [vmem:[%s360 + $0xa78] sm:$0xff]
        %v773 = vld [vmem:[%s360 + $0xa80] sm:$0xff]
        %v774 = vld [vmem:[%s360 + $0xa88] sm:$0xff]
        %v775 = vld [vmem:[%s360 + $0xa90] sm:$0xff]
        %v776 = vld [vmem:[%s360 + $0xa98] sm:$0xff]
        %v777 = vld [vmem:[%s360 + $0xaa0] sm:$0xff]
        %v778 = vld [vmem:[%s360 + $0xaa8] sm:$0xff]
        %v779 = vld [vmem:[%s360 + $0xab0] sm:$0xff]
        %v780 = vld [vmem:[%s360 + $0xab8] sm:$0xff]
        %v781 = vld [vmem:[%s360 + $0xac0] sm:$0xff]
        %v782 = vld [vmem:[%s360 + $0xac8] sm:$0xff]
        %v783 = vld [vmem:[%s360 + $0xad0] sm:$0xff]
        %v784 = vld [vmem:[%s360 + $0xad8] sm:$0xff]
        %v785 = vld [vmem:[%s360 + $0xae0] sm:$0xff]
        %v786 = vld [vmem:[%s360 + $0xae8] sm:$0xff]
        %v787 = vld [vmem:[%s360 + $0xaf0] sm:$0xff]
        %v788 = vld [vmem:[%s360 + $0xaf8] sm:$0xff]
        %v789 = vld [vmem:[%s360 + $0xb00] sm:$0xff]
        %v790 = vld [vmem:[%s360 + $0xb08] sm:$0xff]
        %v791 = vld [vmem:[%s360 + $0xb10] sm:$0xff]
        %v792 = vld [vmem:[%s360 + $0xb18] sm:$0xff]
        %v793 = vld [vmem:[%s360 + $0xb20] sm:$0xff]
        %v794 = vld [vmem:[%s360 + $0xb28] sm:$0xff]
        %v795 = vld [vmem:[%s360 + $0xb30] sm:$0xff]
        %v796 = vld [vmem:[%s360 + $0xb38] sm:$0xff]
        %v797 = vld [vmem:[%s360 + $0xb40] sm:$0xff]
        %v798 = vld [vmem:[%s360 + $0xb48] sm:$0xff]
        %v799 = vld [vmem:[%s360 + $0xb50] sm:$0xff]
        %v800 = vld [vmem:[%s360 + $0xb58] sm:$0xff]
        %v801 = vld [vmem:[%s360 + $0xb60] sm:$0xff]
        %v802 = vld [vmem:[%s360 + $0xb68] sm:$0xff]
        %v803 = vld [vmem:[%s360 + $0xb70] sm:$0xff]
        %v804 = vld [vmem:[%s360 + $0xb78] sm:$0xff]
        %v805 = vld [vmem:[%s360 + $0xb80] sm:$0xff]
        %v806 = vld [vmem:[%s360 + $0xb88] sm:$0xff]
        %v807 = vld [vmem:[%s360 + $0xb90] sm:$0xff]
        %v808 = vld [vmem:[%s360 + $0xb98] sm:$0xff]
        %v809 = vld [vmem:[%s360 + $0xba0] sm:$0xff]
        %v810 = vld [vmem:[%s360 + $0xba8] sm:$0xff]
        %v811 = vld [vmem:[%s360 + $0xbb0] sm:$0xff]
        %v812 = vld [vmem:[%s360 + $0xbb8] sm:$0xff]
        %v813 = vld [vmem:[%s360 + $0xbc0] sm:$0xff]
        %v814 = vld [vmem:[%s360 + $0xbc8] sm:$0xff]
        %v815 = vld [vmem:[%s360 + $0xbd0] sm:$0xff]
        %v816 = vld [vmem:[%s360 + $0xbd8] sm:$0xff]
        %v817 = vld [vmem:[%s360 + $0xbe0] sm:$0xff]
        %v818 = vld [vmem:[%s360 + $0xbe8] sm:$0xff]
        %v819 = vld [vmem:[%s360 + $0xbf0] sm:$0xff]
        %v820 = vld [vmem:[%s360 + $0xbf8] sm:$0xff]
        %v821 = vld [vmem:[%s360 + $0xc00] sm:$0xff]
        %v822 = vld [vmem:[%s360 + $0xc08] sm:$0xff]
        %v823 = vld [vmem:[%s360 + $0xc10] sm:$0xff]
        %v824 = vld [vmem:[%s360 + $0xc18] sm:$0xff]
        %v825 = vld [vmem:[%s360 + $0xc20] sm:$0xff]
        %v826 = vld [vmem:[%s360 + $0xc28] sm:$0xff]
        %v827 = vld [vmem:[%s360 + $0xc30] sm:$0xff]
        %v828 = vld [vmem:[%s360 + $0xc38] sm:$0xff]
        %v829 = vld [vmem:[%s360 + $0xc40] sm:$0xff]
        %v830 = vld [vmem:[%s360 + $0xc48] sm:$0xff]
        %v831 = vld [vmem:[%s360 + $0xc50] sm:$0xff]
        %v832 = vld [vmem:[%s360 + $0xc58] sm:$0xff]
        %v833 = vld [vmem:[%s360 + $0xc60] sm:$0xff]
        %v834 = vld [vmem:[%s360 + $0xc68] sm:$0xff]
        %v835 = vld [vmem:[%s360 + $0xc70] sm:$0xff]
        %v836 = vld [vmem:[%s360 + $0xc78] sm:$0xff]
        %v837 = vld [vmem:[%s360 + $0xc80] sm:$0xff]
        %v838 = vld [vmem:[%s360 + $0xc88] sm:$0xff]
        %v839 = vld [vmem:[%s360 + $0xc90] sm:$0xff]
        %v840 = vld [vmem:[%s360 + $0xc98] sm:$0xff]
        %v841 = vld [vmem:[%s360 + $0xca0] sm:$0xff]
        %v842 = vld [vmem:[%s360 + $0xca8] sm:$0xff]
        %v843 = vld [vmem:[%s360 + $0xcb0] sm:$0xff]
        %v844 = vld [vmem:[%s360 + $0xcb8] sm:$0xff]
        %v845 = vld [vmem:[%s360 + $0xcc0] sm:$0xff]
        %v846 = vld [vmem:[%s360 + $0xcc8] sm:$0xff]
        %v847 = vld [vmem:[%s360 + $0xcd0] sm:$0xff]
        %v848 = vld [vmem:[%s360 + $0xcd8] sm:$0xff]
        %v849 = vld [vmem:[%s360 + $0xce0] sm:$0xff]
        %v850 = vld [vmem:[%s360 + $0xce8] sm:$0xff]
        %v851 = vld [vmem:[%s360 + $0xcf0] sm:$0xff]
        %v852 = vld [vmem:[%s360 + $0xcf8] sm:$0xff]
        %v853 = vld [vmem:[%s360 + $0xd00] sm:$0xff]
        %v854 = vld [vmem:[%s360 + $0xd08] sm:$0xff]
        %v855 = vld [vmem:[%s360 + $0xd10] sm:$0xff]
        %v856 = vld [vmem:[%s360 + $0xd18] sm:$0xff]
        %v857 = vld [vmem:[%s360 + $0xd20] sm:$0xff]
        %v858 = vld [vmem:[%s360 + $0xd28] sm:$0xff]
        %v859 = vld [vmem:[%s360 + $0xd30] sm:$0xff]
        %v860 = vld [vmem:[%s360 + $0xd38] sm:$0xff]
        %v861 = vld [vmem:[%s360 + $0xd40] sm:$0xff]
        %v862 = vld [vmem:[%s360 + $0xd48] sm:$0xff]
        %v863 = vld [vmem:[%s360 + $0xd50] sm:$0xff]
        %v864 = vld [vmem:[%s360 + $0xd58] sm:$0xff]
        %v865 = vld [vmem:[%s360 + $0xd60] sm:$0xff]
        %v866 = vld [vmem:[%s360 + $0xd68] sm:$0xff]
        %v867 = vld [vmem:[%s360 + $0xd70] sm:$0xff]
        %v868 = vld [vmem:[%s360 + $0xd78] sm:$0xff]
        %v869 = vld [vmem:[%s360 + $0xd80] sm:$0xff]
        %v870 = vld [vmem:[%s360 + $0xd88] sm:$0xff]
        %v871 = vld [vmem:[%s360 + $0xd90] sm:$0xff]
        %v872 = vld [vmem:[%s360 + $0xd98] sm:$0xff]
        %v873 = vld [vmem:[%s360 + $0xda0] sm:$0xff]
        %v874 = vld [vmem:[%s360 + $0xda8] sm:$0xff]
        %v875 = vld [vmem:[%s360 + $0xdb0] sm:$0xff]
        %v876 = vld [vmem:[%s360 + $0xdb8] sm:$0xff]
        %v877 = vld [vmem:[%s360 + $0xdc0] sm:$0xff]
        %v878 = vld [vmem:[%s360 + $0xdc8] sm:$0xff]
        %v879 = vld [vmem:[%s360 + $0xdd0] sm:$0xff]
        %v880 = vld [vmem:[%s360 + $0xdd8] sm:$0xff]
        %v881 = vld [vmem:[%s360 + $0xde0] sm:$0xff]
        %v882 = vld [vmem:[%s360 + $0xde8] sm:$0xff]
        %v883 = vld [vmem:[%s360 + $0xdf0] sm:$0xff]
        %v884 = vld [vmem:[%s360 + $0xdf8] sm:$0xff]
        %v885 = vld [vmem:[%s360 + $0xe00] sm:$0xff]
        %v886 = vld [vmem:[%s360 + $0xe08] sm:$0xff]
        %v887 = vld [vmem:[%s360 + $0xe10] sm:$0xff]
        %v888 = vld [vmem:[%s360 + $0xe18] sm:$0xff]
        %v889 = vld [vmem:[%s360 + $0xe20] sm:$0xff]
        %v890 = vld [vmem:[%s360 + $0xe28] sm:$0xff]
        %v891 = vld [vmem:[%s360 + $0xe30] sm:$0xff]
        %v892 = vld [vmem:[%s360 + $0xe38] sm:$0xff]
        %v893 = vld [vmem:[%s360 + $0xe40] sm:$0xff]
        %v894 = vld [vmem:[%s360 + $0xe48] sm:$0xff]
        %v895 = vld [vmem:[%s360 + $0xe50] sm:$0xff]
        %v896 = vld [vmem:[%s360 + $0xe58] sm:$0xff]
        %v897 = vld [vmem:[%s360 + $0xe60] sm:$0xff]
        %v898 = vld [vmem:[%s360 + $0xe68] sm:$0xff]
        %v899 = vld [vmem:[%s360 + $0xe70] sm:$0xff]
        %v900 = vld [vmem:[%s360 + $0xe78] sm:$0xff]
        %v901 = vld [vmem:[%s360 + $0xe80] sm:$0xff]
        %v902 = vld [vmem:[%s360 + $0xe88] sm:$0xff]
        %v903 = vld [vmem:[%s360 + $0xe90] sm:$0xff]
        %v904 = vld [vmem:[%s360 + $0xe98] sm:$0xff]
        %v905 = vld [vmem:[%s360 + $0xea0] sm:$0xff]
        %v906 = vld [vmem:[%s360 + $0xea8] sm:$0xff]
        %v907 = vld [vmem:[%s360 + $0xeb0] sm:$0xff]
        %v908 = vld [vmem:[%s360 + $0xeb8] sm:$0xff]
        %v909 = vld [vmem:[%s360 + $0xec0] sm:$0xff]
        %v910 = vld [vmem:[%s360 + $0xec8] sm:$0xff]
        %v911 = vld [vmem:[%s360 + $0xed0] sm:$0xff]
        %v912 = vld [vmem:[%s360 + $0xed8] sm:$0xff]
        %v913 = vld [vmem:[%s360 + $0xee0] sm:$0xff]
        %v914 = vld [vmem:[%s360 + $0xee8] sm:$0xff]
        %v915 = vld [vmem:[%s360 + $0xef0] sm:$0xff]
        %v916 = vld [vmem:[%s360 + $0xef8] sm:$0xff]
        %v917 = vld [vmem:[%s360 + $0xf00] sm:$0xff]
        %v918 = vld [vmem:[%s360 + $0xf08] sm:$0xff]
        %v919 = vld [vmem:[%s360 + $0xf10] sm:$0xff]
        %v920 = vld [vmem:[%s360 + $0xf18] sm:$0xff]
        %v921 = vld [vmem:[%s360 + $0xf20] sm:$0xff]
        %v922 = vld [vmem:[%s360 + $0xf28] sm:$0xff]
        %v923 = vld [vmem:[%s360 + $0xf30] sm:$0xff]
        %v924 = vld [vmem:[%s360 + $0xf38] sm:$0xff]
        %v925 = vld [vmem:[%s360 + $0xf40] sm:$0xff]
        %v926 = vld [vmem:[%s360 + $0xf48] sm:$0xff]
        %v927 = vld [vmem:[%s360 + $0xf50] sm:$0xff]
        %v928 = vld [vmem:[%s360 + $0xf58] sm:$0xff]
        %v929 = vld [vmem:[%s360 + $0xf60] sm:$0xff]
        %v930 = vld [vmem:[%s360 + $0xf68] sm:$0xff]
        %v931 = vld [vmem:[%s360 + $0xf70] sm:$0xff]
        %v932 = vld [vmem:[%s360 + $0xf78] sm:$0xff]
        %v933 = vld [vmem:[%s360 + $0xf80] sm:$0xff]
        %v934 = vld [vmem:[%s360 + $0xf88] sm:$0xff]
        %v935 = vld [vmem:[%s360 + $0xf90] sm:$0xff]
        %v936 = vld [vmem:[%s360 + $0xf98] sm:$0xff]
        %v937 = vld [vmem:[%s360 + $0xfa0] sm:$0xff]
        %v938 = vld [vmem:[%s360 + $0xfa8] sm:$0xff]
        %v939 = vld [vmem:[%s360 + $0xfb0] sm:$0xff]
        %v940 = vld [vmem:[%s360 + $0xfb8] sm:$0xff]
        %v941 = vld [vmem:[%s360 + $0xfc0] sm:$0xff]
        %v942 = vld [vmem:[%s360 + $0xfc8] sm:$0xff]
        %v943 = vld [vmem:[%s360 + $0xfd0] sm:$0xff]
        %v944 = vld [vmem:[%s360 + $0xfd8] sm:$0xff]
        %v945 = vld [vmem:[%s360 + $0xfe0] sm:$0xff]
        %v946 = vld [vmem:[%s360 + $0xfe8] sm:$0xff]
        %v947 = vld [vmem:[%s360 + $0xff0] sm:$0xff]
        %v948 = vld [vmem:[%s360 + $0xff8] sm:$0xff]
        %v953 = vunpack.c.l.b16 %v433
        %v954 = vunpack.c.h.b16 %v433
        %v955 = vunpack.c.l.b16 %v434
        %v956 = vunpack.c.h.b16 %v434
        %v957 = vunpack.c.l.b16 %v435
        %v958 = vunpack.c.h.b16 %v435
        %v959 = vunpack.c.l.b16 %v436
        %v960 = vunpack.c.h.b16 %v436
        %v961 = vpack.c.b16 %v953, %v953
        %v962 = vpack.c.b16 %v954, %v954
        %v963 = vpack.c.b16 %v955, %v955
        %v964 = vpack.c.b16 %v956, %v956
        %v965 = vpack.c.b16 %v957, %v957
        %v966 = vpack.c.b16 %v958, %v958
        %v967 = vpack.c.b16 %v959, %v959
        %v968 = vpack.c.b16 %v960, %v960
        %v1489 = vunpack.c.l.b16 %v437
        %v1490 = vunpack.c.h.b16 %v437
        %v1491 = vunpack.c.l.b16 %v438
        %v1492 = vunpack.c.h.b16 %v438
        %v1493 = vunpack.c.l.b16 %v439
        %v1494 = vunpack.c.h.b16 %v439
        %v1495 = vunpack.c.l.b16 %v440
        %v1496 = vunpack.c.h.b16 %v440
        %v1497 = vunpack.c.l.b16 %v441
        %v1498 = vunpack.c.h.b16 %v441
        %v1499 = vunpack.c.l.b16 %v442
        %v1500 = vunpack.c.h.b16 %v442
        %v1501 = vunpack.c.l.b16 %v443
        %v1502 = vunpack.c.h.b16 %v443
        %v1503 = vunpack.c.l.b16 %v444
        %v1504 = vunpack.c.h.b16 %v444
        %v1505 = vunpack.c.l.b16 %v445
        %v1506 = vunpack.c.h.b16 %v445
        %v1507 = vunpack.c.l.b16 %v446
        %v1508 = vunpack.c.h.b16 %v446
        %v1509 = vunpack.c.l.b16 %v447
        %v1510 = vunpack.c.h.b16 %v447
        %v1511 = vunpack.c.l.b16 %v448
        %v1512 = vunpack.c.h.b16 %v448
        %v1513 = vunpack.c.l.b16 %v449
        %v1514 = vunpack.c.h.b16 %v449
        %v1515 = vunpack.c.l.b16 %v450
        %v1516 = vunpack.c.h.b16 %v450
        %v1517 = vunpack.c.l.b16 %v451
        %v1518 = vunpack.c.h.b16 %v451
        %v1519 = vunpack.c.l.b16 %v452
        %v1520 = vunpack.c.h.b16 %v452
        %v1521 = vunpack.c.l.b16 %v453
        %v1522 = vunpack.c.h.b16 %v453
        %v1523 = vunpack.c.l.b16 %v454
        %v1524 = vunpack.c.h.b16 %v454
        %v1525 = vunpack.c.l.b16 %v455
        %v1526 = vunpack.c.h.b16 %v455
        %v1527 = vunpack.c.l.b16 %v456
        %v1528 = vunpack.c.h.b16 %v456
        %v1529 = vunpack.c.l.b16 %v457
        %v1530 = vunpack.c.h.b16 %v457
        %v1531 = vunpack.c.l.b16 %v458
        %v1532 = vunpack.c.h.b16 %v458
        %v1533 = vunpack.c.l.b16 %v459
        %v1534 = vunpack.c.h.b16 %v459
        %v1535 = vunpack.c.l.b16 %v460
        %v1536 = vunpack.c.h.b16 %v460
        %v1537 = vunpack.c.l.b16 %v461
        %v1538 = vunpack.c.h.b16 %v461
        %v1539 = vunpack.c.l.b16 %v462
        %v1540 = vunpack.c.h.b16 %v462
        %v1541 = vunpack.c.l.b16 %v463
        %v1542 = vunpack.c.h.b16 %v463
        %v1543 = vunpack.c.l.b16 %v464
        %v1544 = vunpack.c.h.b16 %v464
        %v1545 = vunpack.c.l.b16 %v465
        %v1546 = vunpack.c.h.b16 %v465
        %v1547 = vunpack.c.l.b16 %v466
        %v1548 = vunpack.c.h.b16 %v466
        %v1549 = vunpack.c.l.b16 %v467
        %v1550 = vunpack.c.h.b16 %v467
        %v1551 = vunpack.c.l.b16 %v468
        %v1552 = vunpack.c.h.b16 %v468
        %v1553 = vunpack.c.l.b16 %v469
        %v1554 = vunpack.c.h.b16 %v469
        %v1555 = vunpack.c.l.b16 %v470
        %v1556 = vunpack.c.h.b16 %v470
        %v1557 = vunpack.c.l.b16 %v471
        %v1558 = vunpack.c.h.b16 %v471
        %v1559 = vunpack.c.l.b16 %v472
        %v1560 = vunpack.c.h.b16 %v472
        %v1561 = vunpack.c.l.b16 %v473
        %v1562 = vunpack.c.h.b16 %v473
        %v1563 = vunpack.c.l.b16 %v474
        %v1564 = vunpack.c.h.b16 %v474
        %v1565 = vunpack.c.l.b16 %v475
        %v1566 = vunpack.c.h.b16 %v475
        %v1567 = vunpack.c.l.b16 %v476
        %v1568 = vunpack.c.h.b16 %v476
        %v1569 = vunpack.c.l.b16 %v477
        %v1570 = vunpack.c.h.b16 %v477
        %v1571 = vunpack.c.l.b16 %v478
        %v1572 = vunpack.c.h.b16 %v478
        %v1573 = vunpack.c.l.b16 %v479
        %v1574 = vunpack.c.h.b16 %v479
        %v1575 = vunpack.c.l.b16 %v480
        %v1576 = vunpack.c.h.b16 %v480
        %v1577 = vunpack.c.l.b16 %v481
        %v1578 = vunpack.c.h.b16 %v481
        %v1579 = vunpack.c.l.b16 %v482
        %v1580 = vunpack.c.h.b16 %v482
        %v1581 = vunpack.c.l.b16 %v483
        %v1582 = vunpack.c.h.b16 %v483
        %v1583 = vunpack.c.l.b16 %v484
        %v1584 = vunpack.c.h.b16 %v484
        %v1585 = vunpack.c.l.b16 %v485
        %v1586 = vunpack.c.h.b16 %v485
        %v1587 = vunpack.c.l.b16 %v486
        %v1588 = vunpack.c.h.b16 %v486
        %v1589 = vunpack.c.l.b16 %v487
        %v1590 = vunpack.c.h.b16 %v487
        %v1591 = vunpack.c.l.b16 %v488
        %v1592 = vunpack.c.h.b16 %v488
        %v1593 = vunpack.c.l.b16 %v489
        %v1594 = vunpack.c.h.b16 %v489
        %v1595 = vunpack.c.l.b16 %v490
        %v1596 = vunpack.c.h.b16 %v490
        %v1597 = vunpack.c.l.b16 %v491
        %v1598 = vunpack.c.h.b16 %v491
        %v1599 = vunpack.c.l.b16 %v492
        %v1600 = vunpack.c.h.b16 %v492
        %v1601 = vunpack.c.l.b16 %v493
        %v1602 = vunpack.c.h.b16 %v493
        %v1603 = vunpack.c.l.b16 %v494
        %v1604 = vunpack.c.h.b16 %v494
        %v1605 = vunpack.c.l.b16 %v495
        %v1606 = vunpack.c.h.b16 %v495
        %v1607 = vunpack.c.l.b16 %v496
        %v1608 = vunpack.c.h.b16 %v496
        %v1609 = vunpack.c.l.b16 %v497
        %v1610 = vunpack.c.h.b16 %v497
        %v1611 = vunpack.c.l.b16 %v498
        %v1612 = vunpack.c.h.b16 %v498
        %v1613 = vunpack.c.l.b16 %v499
        %v1614 = vunpack.c.h.b16 %v499
        %v1615 = vunpack.c.l.b16 %v500
        %v1616 = vunpack.c.h.b16 %v500
        %v1617 = vunpack.c.l.b16 %v501
        %v1618 = vunpack.c.h.b16 %v501
        %v1619 = vunpack.c.l.b16 %v502
        %v1620 = vunpack.c.h.b16 %v502
        %v1621 = vunpack.c.l.b16 %v503
        %v1622 = vunpack.c.h.b16 %v503
        %v1623 = vunpack.c.l.b16 %v504
        %v1624 = vunpack.c.h.b16 %v504
        %v1625 = vunpack.c.l.b16 %v505
        %v1626 = vunpack.c.h.b16 %v505
        %v1627 = vunpack.c.l.b16 %v506
        %v1628 = vunpack.c.h.b16 %v506
        %v1629 = vunpack.c.l.b16 %v507
        %v1630 = vunpack.c.h.b16 %v507
        %v1631 = vunpack.c.l.b16 %v508
        %v1632 = vunpack.c.h.b16 %v508
        %v1633 = vunpack.c.l.b16 %v509
        %v1634 = vunpack.c.h.b16 %v509
        %v1635 = vunpack.c.l.b16 %v510
        %v1636 = vunpack.c.h.b16 %v510
        %v1637 = vunpack.c.l.b16 %v511
        %v1638 = vunpack.c.h.b16 %v511
        %v1639 = vunpack.c.l.b16 %v512
        %v1640 = vunpack.c.h.b16 %v512
        %v1641 = vunpack.c.l.b16 %v513
        %v1642 = vunpack.c.h.b16 %v513
        %v1643 = vunpack.c.l.b16 %v514
        %v1644 = vunpack.c.h.b16 %v514
        %v1645 = vunpack.c.l.b16 %v515
        %v1646 = vunpack.c.h.b16 %v515
        %v1647 = vunpack.c.l.b16 %v516
        %v1648 = vunpack.c.h.b16 %v516
        %v1649 = vunpack.c.l.b16 %v517
        %v1650 = vunpack.c.h.b16 %v517
        %v1651 = vunpack.c.l.b16 %v518
        %v1652 = vunpack.c.h.b16 %v518
        %v1653 = vunpack.c.l.b16 %v519
        %v1654 = vunpack.c.h.b16 %v519
        %v1655 = vunpack.c.l.b16 %v520
        %v1656 = vunpack.c.h.b16 %v520
        %v1657 = vunpack.c.l.b16 %v521
        %v1658 = vunpack.c.h.b16 %v521
        %v1659 = vunpack.c.l.b16 %v522
        %v1660 = vunpack.c.h.b16 %v522
        %v1661 = vunpack.c.l.b16 %v523
        %v1662 = vunpack.c.h.b16 %v523
        %v1663 = vunpack.c.l.b16 %v524
        %v1664 = vunpack.c.h.b16 %v524
        %v1665 = vunpack.c.l.b16 %v525
        %v1666 = vunpack.c.h.b16 %v525
        %v1667 = vunpack.c.l.b16 %v526
        %v1668 = vunpack.c.h.b16 %v526
        %v1669 = vunpack.c.l.b16 %v527
        %v1670 = vunpack.c.h.b16 %v527
        %v1671 = vunpack.c.l.b16 %v528
        %v1672 = vunpack.c.h.b16 %v528
        %v1673 = vunpack.c.l.b16 %v529
        %v1674 = vunpack.c.h.b16 %v529
        %v1675 = vunpack.c.l.b16 %v530
        %v1676 = vunpack.c.h.b16 %v530
        %v1677 = vunpack.c.l.b16 %v531
        %v1678 = vunpack.c.h.b16 %v531
        %v1679 = vunpack.c.l.b16 %v532
        %v1680 = vunpack.c.h.b16 %v532
        %v1681 = vunpack.c.l.b16 %v533
        %v1682 = vunpack.c.h.b16 %v533
        %v1683 = vunpack.c.l.b16 %v534
        %v1684 = vunpack.c.h.b16 %v534
        %v1685 = vunpack.c.l.b16 %v535
        %v1686 = vunpack.c.h.b16 %v535
        %v1687 = vunpack.c.l.b16 %v536
        %v1688 = vunpack.c.h.b16 %v536
        %v1689 = vunpack.c.l.b16 %v537
        %v1690 = vunpack.c.h.b16 %v537
        %v1691 = vunpack.c.l.b16 %v538
        %v1692 = vunpack.c.h.b16 %v538
        %v1693 = vunpack.c.l.b16 %v539
        %v1694 = vunpack.c.h.b16 %v539
        %v1695 = vunpack.c.l.b16 %v540
        %v1696 = vunpack.c.h.b16 %v540
        %v1697 = vunpack.c.l.b16 %v541
        %v1698 = vunpack.c.h.b16 %v541
        %v1699 = vunpack.c.l.b16 %v542
        %v1700 = vunpack.c.h.b16 %v542
        %v1701 = vunpack.c.l.b16 %v543
        %v1702 = vunpack.c.h.b16 %v543
        %v1703 = vunpack.c.l.b16 %v544
        %v1704 = vunpack.c.h.b16 %v544
        %v1705 = vunpack.c.l.b16 %v545
        %v1706 = vunpack.c.h.b16 %v545
        %v1707 = vunpack.c.l.b16 %v546
        %v1708 = vunpack.c.h.b16 %v546
        %v1709 = vunpack.c.l.b16 %v547
        %v1710 = vunpack.c.h.b16 %v547
        %v1711 = vunpack.c.l.b16 %v548
        %v1712 = vunpack.c.h.b16 %v548
        %v1713 = vunpack.c.l.b16 %v549
        %v1714 = vunpack.c.h.b16 %v549
        %v1715 = vunpack.c.l.b16 %v550
        %v1716 = vunpack.c.h.b16 %v550
        %v1717 = vunpack.c.l.b16 %v551
        %v1718 = vunpack.c.h.b16 %v551
        %v1719 = vunpack.c.l.b16 %v552
        %v1720 = vunpack.c.h.b16 %v552
        %v1721 = vunpack.c.l.b16 %v553
        %v1722 = vunpack.c.h.b16 %v553
        %v1723 = vunpack.c.l.b16 %v554
        %v1724 = vunpack.c.h.b16 %v554
        %v1725 = vunpack.c.l.b16 %v555
        %v1726 = vunpack.c.h.b16 %v555
        %v1727 = vunpack.c.l.b16 %v556
        %v1728 = vunpack.c.h.b16 %v556
        %v1729 = vunpack.c.l.b16 %v557
        %v1730 = vunpack.c.h.b16 %v557
        %v1731 = vunpack.c.l.b16 %v558
        %v1732 = vunpack.c.h.b16 %v558
        %v1733 = vunpack.c.l.b16 %v559
        %v1734 = vunpack.c.h.b16 %v559
        %v1735 = vunpack.c.l.b16 %v560
        %v1736 = vunpack.c.h.b16 %v560
        %v1737 = vunpack.c.l.b16 %v561
        %v1738 = vunpack.c.h.b16 %v561
        %v1739 = vunpack.c.l.b16 %v562
        %v1740 = vunpack.c.h.b16 %v562
        %v1741 = vunpack.c.l.b16 %v563
        %v1742 = vunpack.c.h.b16 %v563
        %v1743 = vunpack.c.l.b16 %v564
        %v1744 = vunpack.c.h.b16 %v564
        %v1745 = vunpack.c.l.b16 %v565
        %v1746 = vunpack.c.h.b16 %v565
        %v1747 = vunpack.c.l.b16 %v566
        %v1748 = vunpack.c.h.b16 %v566
        %v1749 = vunpack.c.l.b16 %v567
        %v1750 = vunpack.c.h.b16 %v567
        %v1751 = vunpack.c.l.b16 %v568
        %v1752 = vunpack.c.h.b16 %v568
        %v1753 = vunpack.c.l.b16 %v569
        %v1754 = vunpack.c.h.b16 %v569
        %v1755 = vunpack.c.l.b16 %v570
        %v1756 = vunpack.c.h.b16 %v570
        %v1757 = vunpack.c.l.b16 %v571
        %v1758 = vunpack.c.h.b16 %v571
        %v1759 = vunpack.c.l.b16 %v572
        %v1760 = vunpack.c.h.b16 %v572
        %v1761 = vunpack.c.l.b16 %v573
        %v1762 = vunpack.c.h.b16 %v573
        %v1763 = vunpack.c.l.b16 %v574
        %v1764 = vunpack.c.h.b16 %v574
        %v1765 = vunpack.c.l.b16 %v575
        %v1766 = vunpack.c.h.b16 %v575
        %v1767 = vunpack.c.l.b16 %v576
        %v1768 = vunpack.c.h.b16 %v576
        %v1769 = vunpack.c.l.b16 %v577
        %v1770 = vunpack.c.h.b16 %v577
        %v1771 = vunpack.c.l.b16 %v578
        %v1772 = vunpack.c.h.b16 %v578
        %v1773 = vunpack.c.l.b16 %v579
        %v1774 = vunpack.c.h.b16 %v579
        %v1775 = vunpack.c.l.b16 %v580
        %v1776 = vunpack.c.h.b16 %v580
        %v1777 = vunpack.c.l.b16 %v581
        %v1778 = vunpack.c.h.b16 %v581
        %v1779 = vunpack.c.l.b16 %v582
        %v1780 = vunpack.c.h.b16 %v582
        %v1781 = vunpack.c.l.b16 %v583
        %v1782 = vunpack.c.h.b16 %v583
        %v1783 = vunpack.c.l.b16 %v584
        %v1784 = vunpack.c.h.b16 %v584
        %v1785 = vunpack.c.l.b16 %v585
        %v1786 = vunpack.c.h.b16 %v585
        %v1787 = vunpack.c.l.b16 %v586
        %v1788 = vunpack.c.h.b16 %v586
        %v1789 = vunpack.c.l.b16 %v587
        %v1790 = vunpack.c.h.b16 %v587
        %v1791 = vunpack.c.l.b16 %v588
        %v1792 = vunpack.c.h.b16 %v588
        %v1793 = vunpack.c.l.b16 %v589
        %v1794 = vunpack.c.h.b16 %v589
        %v1795 = vunpack.c.l.b16 %v590
        %v1796 = vunpack.c.h.b16 %v590
        %v1797 = vunpack.c.l.b16 %v591
        %v1798 = vunpack.c.h.b16 %v591
        %v1799 = vunpack.c.l.b16 %v592
        %v1800 = vunpack.c.h.b16 %v592
        %v1801 = vunpack.c.l.b16 %v593
        %v1802 = vunpack.c.h.b16 %v593
        %v1803 = vunpack.c.l.b16 %v594
        %v1804 = vunpack.c.h.b16 %v594
        %v1805 = vunpack.c.l.b16 %v595
        %v1806 = vunpack.c.h.b16 %v595
        %v1807 = vunpack.c.l.b16 %v596
        %v1808 = vunpack.c.h.b16 %v596
        %v1809 = vunpack.c.l.b16 %v597
        %v1810 = vunpack.c.h.b16 %v597
        %v1811 = vunpack.c.l.b16 %v598
        %v1812 = vunpack.c.h.b16 %v598
        %v1813 = vunpack.c.l.b16 %v599
        %v1814 = vunpack.c.h.b16 %v599
        %v1815 = vunpack.c.l.b16 %v600
        %v1816 = vunpack.c.h.b16 %v600
        %v1817 = vunpack.c.l.b16 %v601
        %v1818 = vunpack.c.h.b16 %v601
        %v1819 = vunpack.c.l.b16 %v602
        %v1820 = vunpack.c.h.b16 %v602
        %v1821 = vunpack.c.l.b16 %v603
        %v1822 = vunpack.c.h.b16 %v603
        %v1823 = vunpack.c.l.b16 %v604
        %v1824 = vunpack.c.h.b16 %v604
        %v1825 = vunpack.c.l.b16 %v605
        %v1826 = vunpack.c.h.b16 %v605
        %v1827 = vunpack.c.l.b16 %v606
        %v1828 = vunpack.c.h.b16 %v606
        %v1829 = vunpack.c.l.b16 %v607
        %v1830 = vunpack.c.h.b16 %v607
        %v1831 = vunpack.c.l.b16 %v608
        %v1832 = vunpack.c.h.b16 %v608
        %v1833 = vunpack.c.l.b16 %v609
        %v1834 = vunpack.c.h.b16 %v609
        %v1835 = vunpack.c.l.b16 %v610
        %v1836 = vunpack.c.h.b16 %v610
        %v1837 = vunpack.c.l.b16 %v611
        %v1838 = vunpack.c.h.b16 %v611
        %v1839 = vunpack.c.l.b16 %v612
        %v1840 = vunpack.c.h.b16 %v612
        %v1841 = vunpack.c.l.b16 %v613
        %v1842 = vunpack.c.h.b16 %v613
        %v1843 = vunpack.c.l.b16 %v614
        %v1844 = vunpack.c.h.b16 %v614
        %v1845 = vunpack.c.l.b16 %v615
        %v1846 = vunpack.c.h.b16 %v615
        %v1847 = vunpack.c.l.b16 %v616
        %v1848 = vunpack.c.h.b16 %v616
        %v1849 = vunpack.c.l.b16 %v617
        %v1850 = vunpack.c.h.b16 %v617
        %v1851 = vunpack.c.l.b16 %v618
        %v1852 = vunpack.c.h.b16 %v618
        %v1853 = vunpack.c.l.b16 %v619
        %v1854 = vunpack.c.h.b16 %v619
        %v1855 = vunpack.c.l.b16 %v620
        %v1856 = vunpack.c.h.b16 %v620
        %v1857 = vunpack.c.l.b16 %v621
        %v1858 = vunpack.c.h.b16 %v621
        %v1859 = vunpack.c.l.b16 %v622
        %v1860 = vunpack.c.h.b16 %v622
        %v1861 = vunpack.c.l.b16 %v623
        %v1862 = vunpack.c.h.b16 %v623
        %v1863 = vunpack.c.l.b16 %v624
        %v1864 = vunpack.c.h.b16 %v624
        %v1865 = vunpack.c.l.b16 %v625
        %v1866 = vunpack.c.h.b16 %v625
        %v1867 = vunpack.c.l.b16 %v626
        %v1868 = vunpack.c.h.b16 %v626
        %v1869 = vunpack.c.l.b16 %v627
        %v1870 = vunpack.c.h.b16 %v627
        %v1871 = vunpack.c.l.b16 %v628
        %v1872 = vunpack.c.h.b16 %v628
        %v1873 = vunpack.c.l.b16 %v629
        %v1874 = vunpack.c.h.b16 %v629
        %v1875 = vunpack.c.l.b16 %v630
        %v1876 = vunpack.c.h.b16 %v630
        %v1877 = vunpack.c.l.b16 %v631
        %v1878 = vunpack.c.h.b16 %v631
        %v1879 = vunpack.c.l.b16 %v632
        %v1880 = vunpack.c.h.b16 %v632
        %v1881 = vunpack.c.l.b16 %v633
        %v1882 = vunpack.c.h.b16 %v633
        %v1883 = vunpack.c.l.b16 %v634
        %v1884 = vunpack.c.h.b16 %v634
        %v1885 = vunpack.c.l.b16 %v635
        %v1886 = vunpack.c.h.b16 %v635
        %v1887 = vunpack.c.l.b16 %v636
        %v1888 = vunpack.c.h.b16 %v636
        %v1889 = vunpack.c.l.b16 %v637
        %v1890 = vunpack.c.h.b16 %v637
        %v1891 = vunpack.c.l.b16 %v638
        %v1892 = vunpack.c.h.b16 %v638
        %v1893 = vunpack.c.l.b16 %v639
        %v1894 = vunpack.c.h.b16 %v639
        %v1895 = vunpack.c.l.b16 %v640
        %v1896 = vunpack.c.h.b16 %v640
        %v1897 = vunpack.c.l.b16 %v641
        %v1898 = vunpack.c.h.b16 %v641
        %v1899 = vunpack.c.l.b16 %v642
        %v1900 = vunpack.c.h.b16 %v642
        %v1901 = vunpack.c.l.b16 %v643
        %v1902 = vunpack.c.h.b16 %v643
        %v1903 = vunpack.c.l.b16 %v644
        %v1904 = vunpack.c.h.b16 %v644
        %v1905 = vunpack.c.l.b16 %v645
        %v1906 = vunpack.c.h.b16 %v645
        %v1907 = vunpack.c.l.b16 %v646
        %v1908 = vunpack.c.h.b16 %v646
        %v1909 = vunpack.c.l.b16 %v647
        %v1910 = vunpack.c.h.b16 %v647
        %v1911 = vunpack.c.l.b16 %v648
        %v1912 = vunpack.c.h.b16 %v648
        %v1913 = vunpack.c.l.b16 %v649
        %v1914 = vunpack.c.h.b16 %v649
        %v1915 = vunpack.c.l.b16 %v650
        %v1916 = vunpack.c.h.b16 %v650
        %v1917 = vunpack.c.l.b16 %v651
        %v1918 = vunpack.c.h.b16 %v651
        %v1919 = vunpack.c.l.b16 %v652
        %v1920 = vunpack.c.h.b16 %v652
        %v1921 = vunpack.c.l.b16 %v653
        %v1922 = vunpack.c.h.b16 %v653
        %v1923 = vunpack.c.l.b16 %v654
        %v1924 = vunpack.c.h.b16 %v654
        %v1925 = vunpack.c.l.b16 %v655
        %v1926 = vunpack.c.h.b16 %v655
        %v1927 = vunpack.c.l.b16 %v656
        %v1928 = vunpack.c.h.b16 %v656
        %v1929 = vunpack.c.l.b16 %v657
        %v1930 = vunpack.c.h.b16 %v657
        %v1931 = vunpack.c.l.b16 %v658
        %v1932 = vunpack.c.h.b16 %v658
        %v1933 = vunpack.c.l.b16 %v659
        %v1934 = vunpack.c.h.b16 %v659
        %v1935 = vunpack.c.l.b16 %v660
        %v1936 = vunpack.c.h.b16 %v660
        %v1937 = vunpack.c.l.b16 %v661
        %v1938 = vunpack.c.h.b16 %v661
        %v1939 = vunpack.c.l.b16 %v662
        %v1940 = vunpack.c.h.b16 %v662
        %v1941 = vunpack.c.l.b16 %v663
        %v1942 = vunpack.c.h.b16 %v663
        %v1943 = vunpack.c.l.b16 %v664
        %v1944 = vunpack.c.h.b16 %v664
        %v1945 = vunpack.c.l.b16 %v665
        %v1946 = vunpack.c.h.b16 %v665
        %v1947 = vunpack.c.l.b16 %v666
        %v1948 = vunpack.c.h.b16 %v666
        %v1949 = vunpack.c.l.b16 %v667
        %v1950 = vunpack.c.h.b16 %v667
        %v1951 = vunpack.c.l.b16 %v668
        %v1952 = vunpack.c.h.b16 %v668
        %v1953 = vunpack.c.l.b16 %v669
        %v1954 = vunpack.c.h.b16 %v669
        %v1955 = vunpack.c.l.b16 %v670
        %v1956 = vunpack.c.h.b16 %v670
        %v1957 = vunpack.c.l.b16 %v671
        %v1958 = vunpack.c.h.b16 %v671
        %v1959 = vunpack.c.l.b16 %v672
        %v1960 = vunpack.c.h.b16 %v672
        %v1961 = vunpack.c.l.b16 %v673
        %v1962 = vunpack.c.h.b16 %v673
        %v1963 = vunpack.c.l.b16 %v674
        %v1964 = vunpack.c.h.b16 %v674
        %v1965 = vunpack.c.l.b16 %v675
        %v1966 = vunpack.c.h.b16 %v675
        %v1967 = vunpack.c.l.b16 %v676
        %v1968 = vunpack.c.h.b16 %v676
        %v1969 = vunpack.c.l.b16 %v677
        %v1970 = vunpack.c.h.b16 %v677
        %v1971 = vunpack.c.l.b16 %v678
        %v1972 = vunpack.c.h.b16 %v678
        %v1973 = vunpack.c.l.b16 %v679
        %v1974 = vunpack.c.h.b16 %v679
        %v1975 = vunpack.c.l.b16 %v680
        %v1976 = vunpack.c.h.b16 %v680
        %v1977 = vunpack.c.l.b16 %v681
        %v1978 = vunpack.c.h.b16 %v681
        %v1979 = vunpack.c.l.b16 %v682
        %v1980 = vunpack.c.h.b16 %v682
        %v1981 = vunpack.c.l.b16 %v683
        %v1982 = vunpack.c.h.b16 %v683
        %v1983 = vunpack.c.l.b16 %v684
        %v1984 = vunpack.c.h.b16 %v684
        %v1985 = vunpack.c.l.b16 %v685
        %v1986 = vunpack.c.h.b16 %v685
        %v1987 = vunpack.c.l.b16 %v686
        %v1988 = vunpack.c.h.b16 %v686
        %v1989 = vunpack.c.l.b16 %v687
        %v1990 = vunpack.c.h.b16 %v687
        %v1991 = vunpack.c.l.b16 %v688
        %v1992 = vunpack.c.h.b16 %v688
        %v1993 = vunpack.c.l.b16 %v689
        %v1994 = vunpack.c.h.b16 %v689
        %v1995 = vunpack.c.l.b16 %v690
        %v1996 = vunpack.c.h.b16 %v690
        %v1997 = vunpack.c.l.b16 %v691
        %v1998 = vunpack.c.h.b16 %v691
        %v1999 = vunpack.c.l.b16 %v692
        %v2000 = vunpack.c.h.b16 %v692
        %v2001 = vunpack.c.l.b16 %v693
        %v2002 = vunpack.c.h.b16 %v693
        %v2003 = vunpack.c.l.b16 %v694
        %v2004 = vunpack.c.h.b16 %v694
        %v2005 = vunpack.c.l.b16 %v695
        %v2006 = vunpack.c.h.b16 %v695
        %v2007 = vunpack.c.l.b16 %v696
        %v2008 = vunpack.c.h.b16 %v696
        %v2009 = vunpack.c.l.b16 %v697
        %v2010 = vunpack.c.h.b16 %v697
        %v2011 = vunpack.c.l.b16 %v698
        %v2012 = vunpack.c.h.b16 %v698
        %v2013 = vunpack.c.l.b16 %v699
        %v2014 = vunpack.c.h.b16 %v699
        %v2015 = vunpack.c.l.b16 %v700
        %v2016 = vunpack.c.h.b16 %v700
        %v2017 = vunpack.c.l.b16 %v701
        %v2018 = vunpack.c.h.b16 %v701
        %v2019 = vunpack.c.l.b16 %v702
        %v2020 = vunpack.c.h.b16 %v702
        %v2021 = vunpack.c.l.b16 %v703
        %v2022 = vunpack.c.h.b16 %v703
        %v2023 = vunpack.c.l.b16 %v704
        %v2024 = vunpack.c.h.b16 %v704
        %v2025 = vunpack.c.l.b16 %v705
        %v2026 = vunpack.c.h.b16 %v705
        %v2027 = vunpack.c.l.b16 %v706
        %v2028 = vunpack.c.h.b16 %v706
        %v2029 = vunpack.c.l.b16 %v707
        %v2030 = vunpack.c.h.b16 %v707
        %v2031 = vunpack.c.l.b16 %v708
        %v2032 = vunpack.c.h.b16 %v708
        %v2033 = vunpack.c.l.b16 %v709
        %v2034 = vunpack.c.h.b16 %v709
        %v2035 = vunpack.c.l.b16 %v710
        %v2036 = vunpack.c.h.b16 %v710
        %v2037 = vunpack.c.l.b16 %v711
        %v2038 = vunpack.c.h.b16 %v711
        %v2039 = vunpack.c.l.b16 %v712
        %v2040 = vunpack.c.h.b16 %v712
        %v2041 = vunpack.c.l.b16 %v713
        %v2042 = vunpack.c.h.b16 %v713
        %v2043 = vunpack.c.l.b16 %v714
        %v2044 = vunpack.c.h.b16 %v714
        %v2045 = vunpack.c.l.b16 %v715
        %v2046 = vunpack.c.h.b16 %v715
        %v2047 = vunpack.c.l.b16 %v716
        %v2048 = vunpack.c.h.b16 %v716
        %v2049 = vunpack.c.l.b16 %v717
        %v2050 = vunpack.c.h.b16 %v717
        %v2051 = vunpack.c.l.b16 %v718
        %v2052 = vunpack.c.h.b16 %v718
        %v2053 = vunpack.c.l.b16 %v719
        %v2054 = vunpack.c.h.b16 %v719
        %v2055 = vunpack.c.l.b16 %v720
        %v2056 = vunpack.c.h.b16 %v720
        %v2057 = vunpack.c.l.b16 %v721
        %v2058 = vunpack.c.h.b16 %v721
        %v2059 = vunpack.c.l.b16 %v722
        %v2060 = vunpack.c.h.b16 %v722
        %v2061 = vunpack.c.l.b16 %v723
        %v2062 = vunpack.c.h.b16 %v723
        %v2063 = vunpack.c.l.b16 %v724
        %v2064 = vunpack.c.h.b16 %v724
        %v2065 = vunpack.c.l.b16 %v725
        %v2066 = vunpack.c.h.b16 %v725
        %v2067 = vunpack.c.l.b16 %v726
        %v2068 = vunpack.c.h.b16 %v726
        %v2069 = vunpack.c.l.b16 %v727
        %v2070 = vunpack.c.h.b16 %v727
        %v2071 = vunpack.c.l.b16 %v728
        %v2072 = vunpack.c.h.b16 %v728
        %v2073 = vunpack.c.l.b16 %v729
        %v2074 = vunpack.c.h.b16 %v729
        %v2075 = vunpack.c.l.b16 %v730
        %v2076 = vunpack.c.h.b16 %v730
        %v2077 = vunpack.c.l.b16 %v731
        %v2078 = vunpack.c.h.b16 %v731
        %v2079 = vunpack.c.l.b16 %v732
        %v2080 = vunpack.c.h.b16 %v732
        %v2081 = vunpack.c.l.b16 %v733
        %v2082 = vunpack.c.h.b16 %v733
        %v2083 = vunpack.c.l.b16 %v734
        %v2084 = vunpack.c.h.b16 %v734
        %v2085 = vunpack.c.l.b16 %v735
        %v2086 = vunpack.c.h.b16 %v735
        %v2087 = vunpack.c.l.b16 %v736
        %v2088 = vunpack.c.h.b16 %v736
        %v2089 = vunpack.c.l.b16 %v737
        %v2090 = vunpack.c.h.b16 %v737
        %v2091 = vunpack.c.l.b16 %v738
        %v2092 = vunpack.c.h.b16 %v738
        %v2093 = vunpack.c.l.b16 %v739
        %v2094 = vunpack.c.h.b16 %v739
        %v2095 = vunpack.c.l.b16 %v740
        %v2096 = vunpack.c.h.b16 %v740
        %v2097 = vunpack.c.l.b16 %v741
        %v2098 = vunpack.c.h.b16 %v741
        %v2099 = vunpack.c.l.b16 %v742
        %v2100 = vunpack.c.h.b16 %v742
        %v2101 = vunpack.c.l.b16 %v743
        %v2102 = vunpack.c.h.b16 %v743
        %v2103 = vunpack.c.l.b16 %v744
        %v2104 = vunpack.c.h.b16 %v744
        %v2105 = vunpack.c.l.b16 %v745
        %v2106 = vunpack.c.h.b16 %v745
        %v2107 = vunpack.c.l.b16 %v746
        %v2108 = vunpack.c.h.b16 %v746
        %v2109 = vunpack.c.l.b16 %v747
        %v2110 = vunpack.c.h.b16 %v747
        %v2111 = vunpack.c.l.b16 %v748
        %v2112 = vunpack.c.h.b16 %v748
        %v2113 = vunpack.c.l.b16 %v749
        %v2114 = vunpack.c.h.b16 %v749
        %v2115 = vunpack.c.l.b16 %v750
        %v2116 = vunpack.c.h.b16 %v750
        %v2117 = vunpack.c.l.b16 %v751
        %v2118 = vunpack.c.h.b16 %v751
        %v2119 = vunpack.c.l.b16 %v752
        %v2120 = vunpack.c.h.b16 %v752
        %v2121 = vunpack.c.l.b16 %v753
        %v2122 = vunpack.c.h.b16 %v753
        %v2123 = vunpack.c.l.b16 %v754
        %v2124 = vunpack.c.h.b16 %v754
        %v2125 = vunpack.c.l.b16 %v755
        %v2126 = vunpack.c.h.b16 %v755
        %v2127 = vunpack.c.l.b16 %v756
        %v2128 = vunpack.c.h.b16 %v756
        %v2129 = vunpack.c.l.b16 %v757
        %v2130 = vunpack.c.h.b16 %v757
        %v2131 = vunpack.c.l.b16 %v758
        %v2132 = vunpack.c.h.b16 %v758
        %v2133 = vunpack.c.l.b16 %v759
        %v2134 = vunpack.c.h.b16 %v759
        %v2135 = vunpack.c.l.b16 %v760
        %v2136 = vunpack.c.h.b16 %v760
        %v2137 = vunpack.c.l.b16 %v761
        %v2138 = vunpack.c.h.b16 %v761
        %v2139 = vunpack.c.l.b16 %v762
        %v2140 = vunpack.c.h.b16 %v762
        %v2141 = vunpack.c.l.b16 %v763
        %v2142 = vunpack.c.h.b16 %v763
        %v2143 = vunpack.c.l.b16 %v764
        %v2144 = vunpack.c.h.b16 %v764
        %v2145 = vunpack.c.l.b16 %v765
        %v2146 = vunpack.c.h.b16 %v765
        %v2147 = vunpack.c.l.b16 %v766
        %v2148 = vunpack.c.h.b16 %v766
        %v2149 = vunpack.c.l.b16 %v767
        %v2150 = vunpack.c.h.b16 %v767
        %v2151 = vunpack.c.l.b16 %v768
        %v2152 = vunpack.c.h.b16 %v768
        %v2153 = vunpack.c.l.b16 %v769
        %v2154 = vunpack.c.h.b16 %v769
        %v2155 = vunpack.c.l.b16 %v770
        %v2156 = vunpack.c.h.b16 %v770
        %v2157 = vunpack.c.l.b16 %v771
        %v2158 = vunpack.c.h.b16 %v771
        %v2159 = vunpack.c.l.b16 %v772
        %v2160 = vunpack.c.h.b16 %v772
        %v2161 = vunpack.c.l.b16 %v773
        %v2162 = vunpack.c.h.b16 %v773
        %v2163 = vunpack.c.l.b16 %v774
        %v2164 = vunpack.c.h.b16 %v774
        %v2165 = vunpack.c.l.b16 %v775
        %v2166 = vunpack.c.h.b16 %v775
        %v2167 = vunpack.c.l.b16 %v776
        %v2168 = vunpack.c.h.b16 %v776
        %v2169 = vunpack.c.l.b16 %v777
        %v2170 = vunpack.c.h.b16 %v777
        %v2171 = vunpack.c.l.b16 %v778
        %v2172 = vunpack.c.h.b16 %v778
        %v2173 = vunpack.c.l.b16 %v779
        %v2174 = vunpack.c.h.b16 %v779
        %v2175 = vunpack.c.l.b16 %v780
        %v2176 = vunpack.c.h.b16 %v780
        %v2177 = vunpack.c.l.b16 %v781
        %v2178 = vunpack.c.h.b16 %v781
        %v2179 = vunpack.c.l.b16 %v782
        %v2180 = vunpack.c.h.b16 %v782
        %v2181 = vunpack.c.l.b16 %v783
        %v2182 = vunpack.c.h.b16 %v783
        %v2183 = vunpack.c.l.b16 %v784
        %v2184 = vunpack.c.h.b16 %v784
        %v2185 = vunpack.c.l.b16 %v785
        %v2186 = vunpack.c.h.b16 %v785
        %v2187 = vunpack.c.l.b16 %v786
        %v2188 = vunpack.c.h.b16 %v786
        %v2189 = vunpack.c.l.b16 %v787
        %v2190 = vunpack.c.h.b16 %v787
        %v2191 = vunpack.c.l.b16 %v788
        %v2192 = vunpack.c.h.b16 %v788
        %v2193 = vunpack.c.l.b16 %v789
        %v2194 = vunpack.c.h.b16 %v789
        %v2195 = vunpack.c.l.b16 %v790
        %v2196 = vunpack.c.h.b16 %v790
        %v2197 = vunpack.c.l.b16 %v791
        %v2198 = vunpack.c.h.b16 %v791
        %v2199 = vunpack.c.l.b16 %v792
        %v2200 = vunpack.c.h.b16 %v792
        %v2201 = vunpack.c.l.b16 %v793
        %v2202 = vunpack.c.h.b16 %v793
        %v2203 = vunpack.c.l.b16 %v794
        %v2204 = vunpack.c.h.b16 %v794
        %v2205 = vunpack.c.l.b16 %v795
        %v2206 = vunpack.c.h.b16 %v795
        %v2207 = vunpack.c.l.b16 %v796
        %v2208 = vunpack.c.h.b16 %v796
        %v2209 = vunpack.c.l.b16 %v797
        %v2210 = vunpack.c.h.b16 %v797
        %v2211 = vunpack.c.l.b16 %v798
        %v2212 = vunpack.c.h.b16 %v798
        %v2213 = vunpack.c.l.b16 %v799
        %v2214 = vunpack.c.h.b16 %v799
        %v2215 = vunpack.c.l.b16 %v800
        %v2216 = vunpack.c.h.b16 %v800
        %v2217 = vunpack.c.l.b16 %v801
        %v2218 = vunpack.c.h.b16 %v801
        %v2219 = vunpack.c.l.b16 %v802
        %v2220 = vunpack.c.h.b16 %v802
        %v2221 = vunpack.c.l.b16 %v803
        %v2222 = vunpack.c.h.b16 %v803
        %v2223 = vunpack.c.l.b16 %v804
        %v2224 = vunpack.c.h.b16 %v804
        %v2225 = vunpack.c.l.b16 %v805
        %v2226 = vunpack.c.h.b16 %v805
        %v2227 = vunpack.c.l.b16 %v806
        %v2228 = vunpack.c.h.b16 %v806
        %v2229 = vunpack.c.l.b16 %v807
        %v2230 = vunpack.c.h.b16 %v807
        %v2231 = vunpack.c.l.b16 %v808
        %v2232 = vunpack.c.h.b16 %v808
        %v2233 = vunpack.c.l.b16 %v809
        %v2234 = vunpack.c.h.b16 %v809
        %v2235 = vunpack.c.l.b16 %v810
        %v2236 = vunpack.c.h.b16 %v810
        %v2237 = vunpack.c.l.b16 %v811
        %v2238 = vunpack.c.h.b16 %v811
        %v2239 = vunpack.c.l.b16 %v812
        %v2240 = vunpack.c.h.b16 %v812
        %v2241 = vunpack.c.l.b16 %v813
        %v2242 = vunpack.c.h.b16 %v813
        %v2243 = vunpack.c.l.b16 %v814
        %v2244 = vunpack.c.h.b16 %v814
        %v2245 = vunpack.c.l.b16 %v815
        %v2246 = vunpack.c.h.b16 %v815
        %v2247 = vunpack.c.l.b16 %v816
        %v2248 = vunpack.c.h.b16 %v816
        %v2249 = vunpack.c.l.b16 %v817
        %v2250 = vunpack.c.h.b16 %v817
        %v2251 = vunpack.c.l.b16 %v818
        %v2252 = vunpack.c.h.b16 %v818
        %v2253 = vunpack.c.l.b16 %v819
        %v2254 = vunpack.c.h.b16 %v819
        %v2255 = vunpack.c.l.b16 %v820
        %v2256 = vunpack.c.h.b16 %v820
        %v2257 = vunpack.c.l.b16 %v821
        %v2258 = vunpack.c.h.b16 %v821
        %v2259 = vunpack.c.l.b16 %v822
        %v2260 = vunpack.c.h.b16 %v822
        %v2261 = vunpack.c.l.b16 %v823
        %v2262 = vunpack.c.h.b16 %v823
        %v2263 = vunpack.c.l.b16 %v824
        %v2264 = vunpack.c.h.b16 %v824
        %v2265 = vunpack.c.l.b16 %v825
        %v2266 = vunpack.c.h.b16 %v825
        %v2267 = vunpack.c.l.b16 %v826
        %v2268 = vunpack.c.h.b16 %v826
        %v2269 = vunpack.c.l.b16 %v827
        %v2270 = vunpack.c.h.b16 %v827
        %v2271 = vunpack.c.l.b16 %v828
        %v2272 = vunpack.c.h.b16 %v828
        %v2273 = vunpack.c.l.b16 %v829
        %v2274 = vunpack.c.h.b16 %v829
        %v2275 = vunpack.c.l.b16 %v830
        %v2276 = vunpack.c.h.b16 %v830
        %v2277 = vunpack.c.l.b16 %v831
        %v2278 = vunpack.c.h.b16 %v831
        %v2279 = vunpack.c.l.b16 %v832
        %v2280 = vunpack.c.h.b16 %v832
        %v2281 = vunpack.c.l.b16 %v833
        %v2282 = vunpack.c.h.b16 %v833
        %v2283 = vunpack.c.l.b16 %v834
        %v2284 = vunpack.c.h.b16 %v834
        %v2285 = vunpack.c.l.b16 %v835
        %v2286 = vunpack.c.h.b16 %v835
        %v2287 = vunpack.c.l.b16 %v836
        %v2288 = vunpack.c.h.b16 %v836
        %v2289 = vunpack.c.l.b16 %v837
        %v2290 = vunpack.c.h.b16 %v837
        %v2291 = vunpack.c.l.b16 %v838
        %v2292 = vunpack.c.h.b16 %v838
        %v2293 = vunpack.c.l.b16 %v839
        %v2294 = vunpack.c.h.b16 %v839
        %v2295 = vunpack.c.l.b16 %v840
        %v2296 = vunpack.c.h.b16 %v840
        %v2297 = vunpack.c.l.b16 %v841
        %v2298 = vunpack.c.h.b16 %v841
        %v2299 = vunpack.c.l.b16 %v842
        %v2300 = vunpack.c.h.b16 %v842
        %v2301 = vunpack.c.l.b16 %v843
        %v2302 = vunpack.c.h.b16 %v843
        %v2303 = vunpack.c.l.b16 %v844
        %v2304 = vunpack.c.h.b16 %v844
        %v2305 = vunpack.c.l.b16 %v845
        %v2306 = vunpack.c.h.b16 %v845
        %v2307 = vunpack.c.l.b16 %v846
        %v2308 = vunpack.c.h.b16 %v846
        %v2309 = vunpack.c.l.b16 %v847
        %v2310 = vunpack.c.h.b16 %v847
        %v2311 = vunpack.c.l.b16 %v848
        %v2312 = vunpack.c.h.b16 %v848
        %v2313 = vunpack.c.l.b16 %v849
        %v2314 = vunpack.c.h.b16 %v849
        %v2315 = vunpack.c.l.b16 %v850
        %v2316 = vunpack.c.h.b16 %v850
        %v2317 = vunpack.c.l.b16 %v851
        %v2318 = vunpack.c.h.b16 %v851
        %v2319 = vunpack.c.l.b16 %v852
        %v2320 = vunpack.c.h.b16 %v852
        %v2321 = vunpack.c.l.b16 %v853
        %v2322 = vunpack.c.h.b16 %v853
        %v2323 = vunpack.c.l.b16 %v854
        %v2324 = vunpack.c.h.b16 %v854
        %v2325 = vunpack.c.l.b16 %v855
        %v2326 = vunpack.c.h.b16 %v855
        %v2327 = vunpack.c.l.b16 %v856
        %v2328 = vunpack.c.h.b16 %v856
        %v2329 = vunpack.c.l.b16 %v857
        %v2330 = vunpack.c.h.b16 %v857
        %v2331 = vunpack.c.l.b16 %v858
        %v2332 = vunpack.c.h.b16 %v858
        %v2333 = vunpack.c.l.b16 %v859
        %v2334 = vunpack.c.h.b16 %v859
        %v2335 = vunpack.c.l.b16 %v860
        %v2336 = vunpack.c.h.b16 %v860
        %v2337 = vunpack.c.l.b16 %v861
        %v2338 = vunpack.c.h.b16 %v861
        %v2339 = vunpack.c.l.b16 %v862
        %v2340 = vunpack.c.h.b16 %v862
        %v2341 = vunpack.c.l.b16 %v863
        %v2342 = vunpack.c.h.b16 %v863
        %v2343 = vunpack.c.l.b16 %v864
        %v2344 = vunpack.c.h.b16 %v864
        %v2345 = vunpack.c.l.b16 %v865
        %v2346 = vunpack.c.h.b16 %v865
        %v2347 = vunpack.c.l.b16 %v866
        %v2348 = vunpack.c.h.b16 %v866
        %v2349 = vunpack.c.l.b16 %v867
        %v2350 = vunpack.c.h.b16 %v867
        %v2351 = vunpack.c.l.b16 %v868
        %v2352 = vunpack.c.h.b16 %v868
        %v2353 = vunpack.c.l.b16 %v869
        %v2354 = vunpack.c.h.b16 %v869
        %v2355 = vunpack.c.l.b16 %v870
        %v2356 = vunpack.c.h.b16 %v870
        %v2357 = vunpack.c.l.b16 %v871
        %v2358 = vunpack.c.h.b16 %v871
        %v2359 = vunpack.c.l.b16 %v872
        %v2360 = vunpack.c.h.b16 %v872
        %v2361 = vunpack.c.l.b16 %v873
        %v2362 = vunpack.c.h.b16 %v873
        %v2363 = vunpack.c.l.b16 %v874
        %v2364 = vunpack.c.h.b16 %v874
        %v2365 = vunpack.c.l.b16 %v875
        %v2366 = vunpack.c.h.b16 %v875
        %v2367 = vunpack.c.l.b16 %v876
        %v2368 = vunpack.c.h.b16 %v876
        %v2369 = vunpack.c.l.b16 %v877
        %v2370 = vunpack.c.h.b16 %v877
        %v2371 = vunpack.c.l.b16 %v878
        %v2372 = vunpack.c.h.b16 %v878
        %v2373 = vunpack.c.l.b16 %v879
        %v2374 = vunpack.c.h.b16 %v879
        %v2375 = vunpack.c.l.b16 %v880
        %v2376 = vunpack.c.h.b16 %v880
        %v2377 = vunpack.c.l.b16 %v881
        %v2378 = vunpack.c.h.b16 %v881
        %v2379 = vunpack.c.l.b16 %v882
        %v2380 = vunpack.c.h.b16 %v882
        %v2381 = vunpack.c.l.b16 %v883
        %v2382 = vunpack.c.h.b16 %v883
        %v2383 = vunpack.c.l.b16 %v884
        %v2384 = vunpack.c.h.b16 %v884
        %v2385 = vunpack.c.l.b16 %v885
        %v2386 = vunpack.c.h.b16 %v885
        %v2387 = vunpack.c.l.b16 %v886
        %v2388 = vunpack.c.h.b16 %v886
        %v2389 = vunpack.c.l.b16 %v887
        %v2390 = vunpack.c.h.b16 %v887
        %v2391 = vunpack.c.l.b16 %v888
        %v2392 = vunpack.c.h.b16 %v888
        %v2393 = vunpack.c.l.b16 %v889
        %v2394 = vunpack.c.h.b16 %v889
        %v2395 = vunpack.c.l.b16 %v890
        %v2396 = vunpack.c.h.b16 %v890
        %v2397 = vunpack.c.l.b16 %v891
        %v2398 = vunpack.c.h.b16 %v891
        %v2399 = vunpack.c.l.b16 %v892
        %v2400 = vunpack.c.h.b16 %v892
        %v2401 = vunpack.c.l.b16 %v893
        %v2402 = vunpack.c.h.b16 %v893
        %v2403 = vunpack.c.l.b16 %v894
        %v2404 = vunpack.c.h.b16 %v894
        %v2405 = vunpack.c.l.b16 %v895
        %v2406 = vunpack.c.h.b16 %v895
        %v2407 = vunpack.c.l.b16 %v896
        %v2408 = vunpack.c.h.b16 %v896
        %v2409 = vunpack.c.l.b16 %v897
        %v2410 = vunpack.c.h.b16 %v897
        %v2411 = vunpack.c.l.b16 %v898
        %v2412 = vunpack.c.h.b16 %v898
        %v2413 = vunpack.c.l.b16 %v899
        %v2414 = vunpack.c.h.b16 %v899
        %v2415 = vunpack.c.l.b16 %v900
        %v2416 = vunpack.c.h.b16 %v900
        %v2417 = vunpack.c.l.b16 %v901
        %v2418 = vunpack.c.h.b16 %v901
        %v2419 = vunpack.c.l.b16 %v902
        %v2420 = vunpack.c.h.b16 %v902
        %v2421 = vunpack.c.l.b16 %v903
        %v2422 = vunpack.c.h.b16 %v903
        %v2423 = vunpack.c.l.b16 %v904
        %v2424 = vunpack.c.h.b16 %v904
        %v2425 = vunpack.c.l.b16 %v905
        %v2426 = vunpack.c.h.b16 %v905
        %v2427 = vunpack.c.l.b16 %v906
        %v2428 = vunpack.c.h.b16 %v906
        %v2429 = vunpack.c.l.b16 %v907
        %v2430 = vunpack.c.h.b16 %v907
        %v2431 = vunpack.c.l.b16 %v908
        %v2432 = vunpack.c.h.b16 %v908
        %v2433 = vunpack.c.l.b16 %v909
        %v2434 = vunpack.c.h.b16 %v909
        %v2435 = vunpack.c.l.b16 %v910
        %v2436 = vunpack.c.h.b16 %v910
        %v2437 = vunpack.c.l.b16 %v911
        %v2438 = vunpack.c.h.b16 %v911
        %v2439 = vunpack.c.l.b16 %v912
        %v2440 = vunpack.c.h.b16 %v912
        %v2441 = vunpack.c.l.b16 %v913
        %v2442 = vunpack.c.h.b16 %v913
        %v2443 = vunpack.c.l.b16 %v914
        %v2444 = vunpack.c.h.b16 %v914
        %v2445 = vunpack.c.l.b16 %v915
        %v2446 = vunpack.c.h.b16 %v915
        %v2447 = vunpack.c.l.b16 %v916
        %v2448 = vunpack.c.h.b16 %v916
        %v2449 = vunpack.c.l.b16 %v917
        %v2450 = vunpack.c.h.b16 %v917
        %v2451 = vunpack.c.l.b16 %v918
        %v2452 = vunpack.c.h.b16 %v918
        %v2453 = vunpack.c.l.b16 %v919
        %v2454 = vunpack.c.h.b16 %v919
        %v2455 = vunpack.c.l.b16 %v920
        %v2456 = vunpack.c.h.b16 %v920
        %v2457 = vunpack.c.l.b16 %v921
        %v2458 = vunpack.c.h.b16 %v921
        %v2459 = vunpack.c.l.b16 %v922
        %v2460 = vunpack.c.h.b16 %v922
        %v2461 = vunpack.c.l.b16 %v923
        %v2462 = vunpack.c.h.b16 %v923
        %v2463 = vunpack.c.l.b16 %v924
        %v2464 = vunpack.c.h.b16 %v924
        %v2465 = vunpack.c.l.b16 %v925
        %v2466 = vunpack.c.h.b16 %v925
        %v2467 = vunpack.c.l.b16 %v926
        %v2468 = vunpack.c.h.b16 %v926
        %v2469 = vunpack.c.l.b16 %v927
        %v2470 = vunpack.c.h.b16 %v927
        %v2471 = vunpack.c.l.b16 %v928
        %v2472 = vunpack.c.h.b16 %v928
        %v2473 = vunpack.c.l.b16 %v929
        %v2474 = vunpack.c.h.b16 %v929
        %v2475 = vunpack.c.l.b16 %v930
        %v2476 = vunpack.c.h.b16 %v930
        %v2477 = vunpack.c.l.b16 %v931
        %v2478 = vunpack.c.h.b16 %v931
        %v2479 = vunpack.c.l.b16 %v932
        %v2480 = vunpack.c.h.b16 %v932
        %v2481 = vunpack.c.l.b16 %v933
        %v2482 = vunpack.c.h.b16 %v933
        %v2483 = vunpack.c.l.b16 %v934
        %v2484 = vunpack.c.h.b16 %v934
        %v2485 = vunpack.c.l.b16 %v935
        %v2486 = vunpack.c.h.b16 %v935
        %v2487 = vunpack.c.l.b16 %v936
        %v2488 = vunpack.c.h.b16 %v936
        %v2489 = vunpack.c.l.b16 %v937
        %v2490 = vunpack.c.h.b16 %v937
        %v2491 = vunpack.c.l.b16 %v938
        %v2492 = vunpack.c.h.b16 %v938
        %v2493 = vunpack.c.l.b16 %v939
        %v2494 = vunpack.c.h.b16 %v939
        %v2495 = vunpack.c.l.b16 %v940
        %v2496 = vunpack.c.h.b16 %v940
        %v2497 = vunpack.c.l.b16 %v941
        %v2498 = vunpack.c.h.b16 %v941
        %v2499 = vunpack.c.l.b16 %v942
        %v2500 = vunpack.c.h.b16 %v942
        %v2501 = vunpack.c.l.b16 %v943
        %v2502 = vunpack.c.h.b16 %v943
        %v2503 = vunpack.c.l.b16 %v944
        %v2504 = vunpack.c.h.b16 %v944
        %v2505 = vunpack.c.l.b16 %v945
        %v2506 = vunpack.c.h.b16 %v945
        %v2507 = vunpack.c.l.b16 %v946
        %v2508 = vunpack.c.h.b16 %v946
        %v2509 = vunpack.c.l.b16 %v947
        %v2510 = vunpack.c.h.b16 %v947
        %v2511 = vunpack.c.l.b16 %v948
        %v2512 = vunpack.c.h.b16 %v948
        %v2513 = vpack.c.b16 %v1497, %v1489
        %v2514 = vpack.c.b16 %v1498, %v1490
        %v2515 = vpack.c.b16 %v1499, %v1491
        %v2516 = vpack.c.b16 %v1500, %v1492
        %v2517 = vpack.c.b16 %v1501, %v1493
        %v2518 = vpack.c.b16 %v1502, %v1494
        %v2519 = vpack.c.b16 %v1503, %v1495
        %v2520 = vpack.c.b16 %v1504, %v1496
        %v2521 = vpack.c.b16 %v1513, %v1505
        %v2522 = vpack.c.b16 %v1514, %v1506
        %v2523 = vpack.c.b16 %v1515, %v1507
        %v2524 = vpack.c.b16 %v1516, %v1508
        %v2525 = vpack.c.b16 %v1517, %v1509
        %v2526 = vpack.c.b16 %v1518, %v1510
        %v2527 = vpack.c.b16 %v1519, %v1511
        %v2528 = vpack.c.b16 %v1520, %v1512
        %v2529 = vpack.c.b16 %v1529, %v1521
        %v2530 = vpack.c.b16 %v1530, %v1522
        %v2531 = vpack.c.b16 %v1531, %v1523
        %v2532 = vpack.c.b16 %v1532, %v1524
        %v2533 = vpack.c.b16 %v1533, %v1525
        %v2534 = vpack.c.b16 %v1534, %v1526
        %v2535 = vpack.c.b16 %v1535, %v1527
        %v2536 = vpack.c.b16 %v1536, %v1528
        %v2537 = vpack.c.b16 %v1545, %v1537
        %v2538 = vpack.c.b16 %v1546, %v1538
        %v2539 = vpack.c.b16 %v1547, %v1539
        %v2540 = vpack.c.b16 %v1548, %v1540
        %v2541 = vpack.c.b16 %v1549, %v1541
        %v2542 = vpack.c.b16 %v1550, %v1542
        %v2543 = vpack.c.b16 %v1551, %v1543
        %v2544 = vpack.c.b16 %v1552, %v1544
        %v2545 = vpack.c.b16 %v1561, %v1553
        %v2546 = vpack.c.b16 %v1562, %v1554
        %v2547 = vpack.c.b16 %v1563, %v1555
        %v2548 = vpack.c.b16 %v1564, %v1556
        %v2549 = vpack.c.b16 %v1565, %v1557
        %v2550 = vpack.c.b16 %v1566, %v1558
        %v2551 = vpack.c.b16 %v1567, %v1559
        %v2552 = vpack.c.b16 %v1568, %v1560
        %v2553 = vpack.c.b16 %v1577, %v1569
        %v2554 = vpack.c.b16 %v1578, %v1570
        %v2555 = vpack.c.b16 %v1579, %v1571
        %v2556 = vpack.c.b16 %v1580, %v1572
        %v2557 = vpack.c.b16 %v1581, %v1573
        %v2558 = vpack.c.b16 %v1582, %v1574
        %v2559 = vpack.c.b16 %v1583, %v1575
        %v2560 = vpack.c.b16 %v1584, %v1576
        %v2561 = vpack.c.b16 %v1593, %v1585
        %v2562 = vpack.c.b16 %v1594, %v1586
        %v2563 = vpack.c.b16 %v1595, %v1587
        %v2564 = vpack.c.b16 %v1596, %v1588
        %v2565 = vpack.c.b16 %v1597, %v1589
        %v2566 = vpack.c.b16 %v1598, %v1590
        %v2567 = vpack.c.b16 %v1599, %v1591
        %v2568 = vpack.c.b16 %v1600, %v1592
        %v2569 = vpack.c.b16 %v1609, %v1601
        %v2570 = vpack.c.b16 %v1610, %v1602
        %v2571 = vpack.c.b16 %v1611, %v1603
        %v2572 = vpack.c.b16 %v1612, %v1604
        %v2573 = vpack.c.b16 %v1613, %v1605
        %v2574 = vpack.c.b16 %v1614, %v1606
        %v2575 = vpack.c.b16 %v1615, %v1607
        %v2576 = vpack.c.b16 %v1616, %v1608
        %v2577 = vpack.c.b16 %v1625, %v1617
        %v2578 = vpack.c.b16 %v1626, %v1618
        %v2579 = vpack.c.b16 %v1627, %v1619
        %v2580 = vpack.c.b16 %v1628, %v1620
        %v2581 = vpack.c.b16 %v1629, %v1621
        %v2582 = vpack.c.b16 %v1630, %v1622
        %v2583 = vpack.c.b16 %v1631, %v1623
        %v2584 = vpack.c.b16 %v1632, %v1624
        %v2585 = vpack.c.b16 %v1641, %v1633
        %v2586 = vpack.c.b16 %v1642, %v1634
        %v2587 = vpack.c.b16 %v1643, %v1635
        %v2588 = vpack.c.b16 %v1644, %v1636
        %v2589 = vpack.c.b16 %v1645, %v1637
        %v2590 = vpack.c.b16 %v1646, %v1638
        %v2591 = vpack.c.b16 %v1647, %v1639
        %v2592 = vpack.c.b16 %v1648, %v1640
        %v2593 = vpack.c.b16 %v1657, %v1649
        %v2594 = vpack.c.b16 %v1658, %v1650
        %v2595 = vpack.c.b16 %v1659, %v1651
        %v2596 = vpack.c.b16 %v1660, %v1652
        %v2597 = vpack.c.b16 %v1661, %v1653
        %v2598 = vpack.c.b16 %v1662, %v1654
        %v2599 = vpack.c.b16 %v1663, %v1655
        %v2600 = vpack.c.b16 %v1664, %v1656
        %v2601 = vpack.c.b16 %v1673, %v1665
        %v2602 = vpack.c.b16 %v1674, %v1666
        %v2603 = vpack.c.b16 %v1675, %v1667
        %v2604 = vpack.c.b16 %v1676, %v1668
        %v2605 = vpack.c.b16 %v1677, %v1669
        %v2606 = vpack.c.b16 %v1678, %v1670
        %v2607 = vpack.c.b16 %v1679, %v1671
        %v2608 = vpack.c.b16 %v1680, %v1672
        %v2609 = vpack.c.b16 %v1689, %v1681
        %v2610 = vpack.c.b16 %v1690, %v1682
        %v2611 = vpack.c.b16 %v1691, %v1683
        %v2612 = vpack.c.b16 %v1692, %v1684
        %v2613 = vpack.c.b16 %v1693, %v1685
        %v2614 = vpack.c.b16 %v1694, %v1686
        %v2615 = vpack.c.b16 %v1695, %v1687
        %v2616 = vpack.c.b16 %v1696, %v1688
        %v2617 = vpack.c.b16 %v1705, %v1697
        %v2618 = vpack.c.b16 %v1706, %v1698
        %v2619 = vpack.c.b16 %v1707, %v1699
        %v2620 = vpack.c.b16 %v1708, %v1700
        %v2621 = vpack.c.b16 %v1709, %v1701
        %v2622 = vpack.c.b16 %v1710, %v1702
        %v2623 = vpack.c.b16 %v1711, %v1703
        %v2624 = vpack.c.b16 %v1712, %v1704
        %v2625 = vpack.c.b16 %v1721, %v1713
        %v2626 = vpack.c.b16 %v1722, %v1714
        %v2627 = vpack.c.b16 %v1723, %v1715
        %v2628 = vpack.c.b16 %v1724, %v1716
        %v2629 = vpack.c.b16 %v1725, %v1717
        %v2630 = vpack.c.b16 %v1726, %v1718
        %v2631 = vpack.c.b16 %v1727, %v1719
        %v2632 = vpack.c.b16 %v1728, %v1720
        %v2633 = vpack.c.b16 %v1737, %v1729
        %v2634 = vpack.c.b16 %v1738, %v1730
        %v2635 = vpack.c.b16 %v1739, %v1731
        %v2636 = vpack.c.b16 %v1740, %v1732
        %v2637 = vpack.c.b16 %v1741, %v1733
        %v2638 = vpack.c.b16 %v1742, %v1734
        %v2639 = vpack.c.b16 %v1743, %v1735
        %v2640 = vpack.c.b16 %v1744, %v1736
        %v2641 = vpack.c.b16 %v1753, %v1745
        %v2642 = vpack.c.b16 %v1754, %v1746
        %v2643 = vpack.c.b16 %v1755, %v1747
        %v2644 = vpack.c.b16 %v1756, %v1748
        %v2645 = vpack.c.b16 %v1757, %v1749
        %v2646 = vpack.c.b16 %v1758, %v1750
        %v2647 = vpack.c.b16 %v1759, %v1751
        %v2648 = vpack.c.b16 %v1760, %v1752
        %v2649 = vpack.c.b16 %v1769, %v1761
        %v2650 = vpack.c.b16 %v1770, %v1762
        %v2651 = vpack.c.b16 %v1771, %v1763
        %v2652 = vpack.c.b16 %v1772, %v1764
        %v2653 = vpack.c.b16 %v1773, %v1765
        %v2654 = vpack.c.b16 %v1774, %v1766
        %v2655 = vpack.c.b16 %v1775, %v1767
        %v2656 = vpack.c.b16 %v1776, %v1768
        %v2657 = vpack.c.b16 %v1785, %v1777
        %v2658 = vpack.c.b16 %v1786, %v1778
        %v2659 = vpack.c.b16 %v1787, %v1779
        %v2660 = vpack.c.b16 %v1788, %v1780
        %v2661 = vpack.c.b16 %v1789, %v1781
        %v2662 = vpack.c.b16 %v1790, %v1782
        %v2663 = vpack.c.b16 %v1791, %v1783
        %v2664 = vpack.c.b16 %v1792, %v1784
        %v2665 = vpack.c.b16 %v1801, %v1793
        %v2666 = vpack.c.b16 %v1802, %v1794
        %v2667 = vpack.c.b16 %v1803, %v1795
        %v2668 = vpack.c.b16 %v1804, %v1796
        %v2669 = vpack.c.b16 %v1805, %v1797
        %v2670 = vpack.c.b16 %v1806, %v1798
        %v2671 = vpack.c.b16 %v1807, %v1799
        %v2672 = vpack.c.b16 %v1808, %v1800
        %v2673 = vpack.c.b16 %v1817, %v1809
        %v2674 = vpack.c.b16 %v1818, %v1810
        %v2675 = vpack.c.b16 %v1819, %v1811
        %v2676 = vpack.c.b16 %v1820, %v1812
        %v2677 = vpack.c.b16 %v1821, %v1813
        %v2678 = vpack.c.b16 %v1822, %v1814
        %v2679 = vpack.c.b16 %v1823, %v1815
        %v2680 = vpack.c.b16 %v1824, %v1816
        %v2681 = vpack.c.b16 %v1833, %v1825
        %v2682 = vpack.c.b16 %v1834, %v1826
        %v2683 = vpack.c.b16 %v1835, %v1827
        %v2684 = vpack.c.b16 %v1836, %v1828
        %v2685 = vpack.c.b16 %v1837, %v1829
        %v2686 = vpack.c.b16 %v1838, %v1830
        %v2687 = vpack.c.b16 %v1839, %v1831
        %v2688 = vpack.c.b16 %v1840, %v1832
        %v2689 = vpack.c.b16 %v1849, %v1841
        %v2690 = vpack.c.b16 %v1850, %v1842
        %v2691 = vpack.c.b16 %v1851, %v1843
        %v2692 = vpack.c.b16 %v1852, %v1844
        %v2693 = vpack.c.b16 %v1853, %v1845
        %v2694 = vpack.c.b16 %v1854, %v1846
        %v2695 = vpack.c.b16 %v1855, %v1847
        %v2696 = vpack.c.b16 %v1856, %v1848
        %v2697 = vpack.c.b16 %v1865, %v1857
        %v2698 = vpack.c.b16 %v1866, %v1858
        %v2699 = vpack.c.b16 %v1867, %v1859
        %v2700 = vpack.c.b16 %v1868, %v1860
        %v2701 = vpack.c.b16 %v1869, %v1861
        %v2702 = vpack.c.b16 %v1870, %v1862
        %v2703 = vpack.c.b16 %v1871, %v1863
        %v2704 = vpack.c.b16 %v1872, %v1864
        %v2705 = vpack.c.b16 %v1881, %v1873
        %v2706 = vpack.c.b16 %v1882, %v1874
        %v2707 = vpack.c.b16 %v1883, %v1875
        %v2708 = vpack.c.b16 %v1884, %v1876
        %v2709 = vpack.c.b16 %v1885, %v1877
        %v2710 = vpack.c.b16 %v1886, %v1878
        %v2711 = vpack.c.b16 %v1887, %v1879
        %v2712 = vpack.c.b16 %v1888, %v1880
        %v2713 = vpack.c.b16 %v1897, %v1889
        %v2714 = vpack.c.b16 %v1898, %v1890
        %v2715 = vpack.c.b16 %v1899, %v1891
        %v2716 = vpack.c.b16 %v1900, %v1892
        %v2717 = vpack.c.b16 %v1901, %v1893
        %v2718 = vpack.c.b16 %v1902, %v1894
        %v2719 = vpack.c.b16 %v1903, %v1895
        %v2720 = vpack.c.b16 %v1904, %v1896
        %v2721 = vpack.c.b16 %v1913, %v1905
        %v2722 = vpack.c.b16 %v1914, %v1906
        %v2723 = vpack.c.b16 %v1915, %v1907
        %v2724 = vpack.c.b16 %v1916, %v1908
        %v2725 = vpack.c.b16 %v1917, %v1909
        %v2726 = vpack.c.b16 %v1918, %v1910
        %v2727 = vpack.c.b16 %v1919, %v1911
        %v2728 = vpack.c.b16 %v1920, %v1912
        %v2729 = vpack.c.b16 %v1929, %v1921
        %v2730 = vpack.c.b16 %v1930, %v1922
        %v2731 = vpack.c.b16 %v1931, %v1923
        %v2732 = vpack.c.b16 %v1932, %v1924
        %v2733 = vpack.c.b16 %v1933, %v1925
        %v2734 = vpack.c.b16 %v1934, %v1926
        %v2735 = vpack.c.b16 %v1935, %v1927
        %v2736 = vpack.c.b16 %v1936, %v1928
        %v2737 = vpack.c.b16 %v1945, %v1937
        %v2738 = vpack.c.b16 %v1946, %v1938
        %v2739 = vpack.c.b16 %v1947, %v1939
        %v2740 = vpack.c.b16 %v1948, %v1940
        %v2741 = vpack.c.b16 %v1949, %v1941
        %v2742 = vpack.c.b16 %v1950, %v1942
        %v2743 = vpack.c.b16 %v1951, %v1943
        %v2744 = vpack.c.b16 %v1952, %v1944
        %v2745 = vpack.c.b16 %v1961, %v1953
        %v2746 = vpack.c.b16 %v1962, %v1954
        %v2747 = vpack.c.b16 %v1963, %v1955
        %v2748 = vpack.c.b16 %v1964, %v1956
        %v2749 = vpack.c.b16 %v1965, %v1957
        %v2750 = vpack.c.b16 %v1966, %v1958
        %v2751 = vpack.c.b16 %v1967, %v1959
        %v2752 = vpack.c.b16 %v1968, %v1960
        %v2753 = vpack.c.b16 %v1977, %v1969
        %v2754 = vpack.c.b16 %v1978, %v1970
        %v2755 = vpack.c.b16 %v1979, %v1971
        %v2756 = vpack.c.b16 %v1980, %v1972
        %v2757 = vpack.c.b16 %v1981, %v1973
        %v2758 = vpack.c.b16 %v1982, %v1974
        %v2759 = vpack.c.b16 %v1983, %v1975
        %v2760 = vpack.c.b16 %v1984, %v1976
        %v2761 = vpack.c.b16 %v1993, %v1985
        %v2762 = vpack.c.b16 %v1994, %v1986
        %v2763 = vpack.c.b16 %v1995, %v1987
        %v2764 = vpack.c.b16 %v1996, %v1988
        %v2765 = vpack.c.b16 %v1997, %v1989
        %v2766 = vpack.c.b16 %v1998, %v1990
        %v2767 = vpack.c.b16 %v1999, %v1991
        %v2768 = vpack.c.b16 %v2000, %v1992
        %v2769 = vpack.c.b16 %v2009, %v2001
        %v2770 = vpack.c.b16 %v2010, %v2002
        %v2771 = vpack.c.b16 %v2011, %v2003
        %v2772 = vpack.c.b16 %v2012, %v2004
        %v2773 = vpack.c.b16 %v2013, %v2005
        %v2774 = vpack.c.b16 %v2014, %v2006
        %v2775 = vpack.c.b16 %v2015, %v2007
        %v2776 = vpack.c.b16 %v2016, %v2008
        %v2777 = vpack.c.b16 %v2025, %v2017
        %v2778 = vpack.c.b16 %v2026, %v2018
        %v2779 = vpack.c.b16 %v2027, %v2019
        %v2780 = vpack.c.b16 %v2028, %v2020
        %v2781 = vpack.c.b16 %v2029, %v2021
        %v2782 = vpack.c.b16 %v2030, %v2022
        %v2783 = vpack.c.b16 %v2031, %v2023
        %v2784 = vpack.c.b16 %v2032, %v2024
        %v2785 = vpack.c.b16 %v2041, %v2033
        %v2786 = vpack.c.b16 %v2042, %v2034
        %v2787 = vpack.c.b16 %v2043, %v2035
        %v2788 = vpack.c.b16 %v2044, %v2036
        %v2789 = vpack.c.b16 %v2045, %v2037
        %v2790 = vpack.c.b16 %v2046, %v2038
        %v2791 = vpack.c.b16 %v2047, %v2039
        %v2792 = vpack.c.b16 %v2048, %v2040
        %v2793 = vpack.c.b16 %v2057, %v2049
        %v2794 = vpack.c.b16 %v2058, %v2050
        %v2795 = vpack.c.b16 %v2059, %v2051
        %v2796 = vpack.c.b16 %v2060, %v2052
        %v2797 = vpack.c.b16 %v2061, %v2053
        %v2798 = vpack.c.b16 %v2062, %v2054
        %v2799 = vpack.c.b16 %v2063, %v2055
        %v2800 = vpack.c.b16 %v2064, %v2056
        %v2801 = vpack.c.b16 %v2073, %v2065
        %v2802 = vpack.c.b16 %v2074, %v2066
        %v2803 = vpack.c.b16 %v2075, %v2067
        %v2804 = vpack.c.b16 %v2076, %v2068
        %v2805 = vpack.c.b16 %v2077, %v2069
        %v2806 = vpack.c.b16 %v2078, %v2070
        %v2807 = vpack.c.b16 %v2079, %v2071
        %v2808 = vpack.c.b16 %v2080, %v2072
        %v2809 = vpack.c.b16 %v2089, %v2081
        %v2810 = vpack.c.b16 %v2090, %v2082
        %v2811 = vpack.c.b16 %v2091, %v2083
        %v2812 = vpack.c.b16 %v2092, %v2084
        %v2813 = vpack.c.b16 %v2093, %v2085
        %v2814 = vpack.c.b16 %v2094, %v2086
        %v2815 = vpack.c.b16 %v2095, %v2087
        %v2816 = vpack.c.b16 %v2096, %v2088
        %v2817 = vpack.c.b16 %v2105, %v2097
        %v2818 = vpack.c.b16 %v2106, %v2098
        %v2819 = vpack.c.b16 %v2107, %v2099
        %v2820 = vpack.c.b16 %v2108, %v2100
        %v2821 = vpack.c.b16 %v2109, %v2101
        %v2822 = vpack.c.b16 %v2110, %v2102
        %v2823 = vpack.c.b16 %v2111, %v2103
        %v2824 = vpack.c.b16 %v2112, %v2104
        %v2825 = vpack.c.b16 %v2121, %v2113
        %v2826 = vpack.c.b16 %v2122, %v2114
        %v2827 = vpack.c.b16 %v2123, %v2115
        %v2828 = vpack.c.b16 %v2124, %v2116
        %v2829 = vpack.c.b16 %v2125, %v2117
        %v2830 = vpack.c.b16 %v2126, %v2118
        %v2831 = vpack.c.b16 %v2127, %v2119
        %v2832 = vpack.c.b16 %v2128, %v2120
        %v2833 = vpack.c.b16 %v2137, %v2129
        %v2834 = vpack.c.b16 %v2138, %v2130
        %v2835 = vpack.c.b16 %v2139, %v2131
        %v2836 = vpack.c.b16 %v2140, %v2132
        %v2837 = vpack.c.b16 %v2141, %v2133
        %v2838 = vpack.c.b16 %v2142, %v2134
        %v2839 = vpack.c.b16 %v2143, %v2135
        %v2840 = vpack.c.b16 %v2144, %v2136
        %v2841 = vpack.c.b16 %v2153, %v2145
        %v2842 = vpack.c.b16 %v2154, %v2146
        %v2843 = vpack.c.b16 %v2155, %v2147
        %v2844 = vpack.c.b16 %v2156, %v2148
        %v2845 = vpack.c.b16 %v2157, %v2149
        %v2846 = vpack.c.b16 %v2158, %v2150
        %v2847 = vpack.c.b16 %v2159, %v2151
        %v2848 = vpack.c.b16 %v2160, %v2152
        %v2849 = vpack.c.b16 %v2169, %v2161
        %v2850 = vpack.c.b16 %v2170, %v2162
        %v2851 = vpack.c.b16 %v2171, %v2163
        %v2852 = vpack.c.b16 %v2172, %v2164
        %v2853 = vpack.c.b16 %v2173, %v2165
        %v2854 = vpack.c.b16 %v2174, %v2166
        %v2855 = vpack.c.b16 %v2175, %v2167
        %v2856 = vpack.c.b16 %v2176, %v2168
        %v2857 = vpack.c.b16 %v2185, %v2177
        %v2858 = vpack.c.b16 %v2186, %v2178
        %v2859 = vpack.c.b16 %v2187, %v2179
        %v2860 = vpack.c.b16 %v2188, %v2180
        %v2861 = vpack.c.b16 %v2189, %v2181
        %v2862 = vpack.c.b16 %v2190, %v2182
        %v2863 = vpack.c.b16 %v2191, %v2183
        %v2864 = vpack.c.b16 %v2192, %v2184
        %v2865 = vpack.c.b16 %v2201, %v2193
        %v2866 = vpack.c.b16 %v2202, %v2194
        %v2867 = vpack.c.b16 %v2203, %v2195
        %v2868 = vpack.c.b16 %v2204, %v2196
        %v2869 = vpack.c.b16 %v2205, %v2197
        %v2870 = vpack.c.b16 %v2206, %v2198
        %v2871 = vpack.c.b16 %v2207, %v2199
        %v2872 = vpack.c.b16 %v2208, %v2200
        %v2873 = vpack.c.b16 %v2217, %v2209
        %v2874 = vpack.c.b16 %v2218, %v2210
        %v2875 = vpack.c.b16 %v2219, %v2211
        %v2876 = vpack.c.b16 %v2220, %v2212
        %v2877 = vpack.c.b16 %v2221, %v2213
        %v2878 = vpack.c.b16 %v2222, %v2214
        %v2879 = vpack.c.b16 %v2223, %v2215
        %v2880 = vpack.c.b16 %v2224, %v2216
        %v2881 = vpack.c.b16 %v2233, %v2225
        %v2882 = vpack.c.b16 %v2234, %v2226
        %v2883 = vpack.c.b16 %v2235, %v2227
        %v2884 = vpack.c.b16 %v2236, %v2228
        %v2885 = vpack.c.b16 %v2237, %v2229
        %v2886 = vpack.c.b16 %v2238, %v2230
        %v2887 = vpack.c.b16 %v2239, %v2231
        %v2888 = vpack.c.b16 %v2240, %v2232
        %v2889 = vpack.c.b16 %v2249, %v2241
        %v2890 = vpack.c.b16 %v2250, %v2242
        %v2891 = vpack.c.b16 %v2251, %v2243
        %v2892 = vpack.c.b16 %v2252, %v2244
        %v2893 = vpack.c.b16 %v2253, %v2245
        %v2894 = vpack.c.b16 %v2254, %v2246
        %v2895 = vpack.c.b16 %v2255, %v2247
        %v2896 = vpack.c.b16 %v2256, %v2248
        %v2897 = vpack.c.b16 %v2265, %v2257
        %v2898 = vpack.c.b16 %v2266, %v2258
        %v2899 = vpack.c.b16 %v2267, %v2259
        %v2900 = vpack.c.b16 %v2268, %v2260
        %v2901 = vpack.c.b16 %v2269, %v2261
        %v2902 = vpack.c.b16 %v2270, %v2262
        %v2903 = vpack.c.b16 %v2271, %v2263
        %v2904 = vpack.c.b16 %v2272, %v2264
        %v2905 = vpack.c.b16 %v2281, %v2273
        %v2906 = vpack.c.b16 %v2282, %v2274
        %v2907 = vpack.c.b16 %v2283, %v2275
        %v2908 = vpack.c.b16 %v2284, %v2276
        %v2909 = vpack.c.b16 %v2285, %v2277
        %v2910 = vpack.c.b16 %v2286, %v2278
        %v2911 = vpack.c.b16 %v2287, %v2279
        %v2912 = vpack.c.b16 %v2288, %v2280
        %v2913 = vpack.c.b16 %v2297, %v2289
        %v2914 = vpack.c.b16 %v2298, %v2290
        %v2915 = vpack.c.b16 %v2299, %v2291
        %v2916 = vpack.c.b16 %v2300, %v2292
        %v2917 = vpack.c.b16 %v2301, %v2293
        %v2918 = vpack.c.b16 %v2302, %v2294
        %v2919 = vpack.c.b16 %v2303, %v2295
        %v2920 = vpack.c.b16 %v2304, %v2296
        %v2921 = vpack.c.b16 %v2313, %v2305
        %v2922 = vpack.c.b16 %v2314, %v2306
        %v2923 = vpack.c.b16 %v2315, %v2307
        %v2924 = vpack.c.b16 %v2316, %v2308
        %v2925 = vpack.c.b16 %v2317, %v2309
        %v2926 = vpack.c.b16 %v2318, %v2310
        %v2927 = vpack.c.b16 %v2319, %v2311
        %v2928 = vpack.c.b16 %v2320, %v2312
        %v2929 = vpack.c.b16 %v2329, %v2321
        %v2930 = vpack.c.b16 %v2330, %v2322
        %v2931 = vpack.c.b16 %v2331, %v2323
        %v2932 = vpack.c.b16 %v2332, %v2324
        %v2933 = vpack.c.b16 %v2333, %v2325
        %v2934 = vpack.c.b16 %v2334, %v2326
        %v2935 = vpack.c.b16 %v2335, %v2327
        %v2936 = vpack.c.b16 %v2336, %v2328
        %v2937 = vpack.c.b16 %v2345, %v2337
        %v2938 = vpack.c.b16 %v2346, %v2338
        %v2939 = vpack.c.b16 %v2347, %v2339
        %v2940 = vpack.c.b16 %v2348, %v2340
        %v2941 = vpack.c.b16 %v2349, %v2341
        %v2942 = vpack.c.b16 %v2350, %v2342
        %v2943 = vpack.c.b16 %v2351, %v2343
        %v2944 = vpack.c.b16 %v2352, %v2344
        %v2945 = vpack.c.b16 %v2361, %v2353
        %v2946 = vpack.c.b16 %v2362, %v2354
        %v2947 = vpack.c.b16 %v2363, %v2355
        %v2948 = vpack.c.b16 %v2364, %v2356
        %v2949 = vpack.c.b16 %v2365, %v2357
        %v2950 = vpack.c.b16 %v2366, %v2358
        %v2951 = vpack.c.b16 %v2367, %v2359
        %v2952 = vpack.c.b16 %v2368, %v2360
        %v2953 = vpack.c.b16 %v2377, %v2369
        %v2954 = vpack.c.b16 %v2378, %v2370
        %v2955 = vpack.c.b16 %v2379, %v2371
        %v2956 = vpack.c.b16 %v2380, %v2372
        %v2957 = vpack.c.b16 %v2381, %v2373
        %v2958 = vpack.c.b16 %v2382, %v2374
        %v2959 = vpack.c.b16 %v2383, %v2375
        %v2960 = vpack.c.b16 %v2384, %v2376
        %v2961 = vpack.c.b16 %v2393, %v2385
        %v2962 = vpack.c.b16 %v2394, %v2386
        %v2963 = vpack.c.b16 %v2395, %v2387
        %v2964 = vpack.c.b16 %v2396, %v2388
        %v2965 = vpack.c.b16 %v2397, %v2389
        %v2966 = vpack.c.b16 %v2398, %v2390
        %v2967 = vpack.c.b16 %v2399, %v2391
        %v2968 = vpack.c.b16 %v2400, %v2392
        %v2969 = vpack.c.b16 %v2409, %v2401
        %v2970 = vpack.c.b16 %v2410, %v2402
        %v2971 = vpack.c.b16 %v2411, %v2403
        %v2972 = vpack.c.b16 %v2412, %v2404
        %v2973 = vpack.c.b16 %v2413, %v2405
        %v2974 = vpack.c.b16 %v2414, %v2406
        %v2975 = vpack.c.b16 %v2415, %v2407
        %v2976 = vpack.c.b16 %v2416, %v2408
        %v2977 = vpack.c.b16 %v2425, %v2417
        %v2978 = vpack.c.b16 %v2426, %v2418
        %v2979 = vpack.c.b16 %v2427, %v2419
        %v2980 = vpack.c.b16 %v2428, %v2420
        %v2981 = vpack.c.b16 %v2429, %v2421
        %v2982 = vpack.c.b16 %v2430, %v2422
        %v2983 = vpack.c.b16 %v2431, %v2423
        %v2984 = vpack.c.b16 %v2432, %v2424
        %v2985 = vpack.c.b16 %v2441, %v2433
        %v2986 = vpack.c.b16 %v2442, %v2434
        %v2987 = vpack.c.b16 %v2443, %v2435
        %v2988 = vpack.c.b16 %v2444, %v2436
        %v2989 = vpack.c.b16 %v2445, %v2437
        %v2990 = vpack.c.b16 %v2446, %v2438
        %v2991 = vpack.c.b16 %v2447, %v2439
        %v2992 = vpack.c.b16 %v2448, %v2440
        %v2993 = vpack.c.b16 %v2457, %v2449
        %v2994 = vpack.c.b16 %v2458, %v2450
        %v2995 = vpack.c.b16 %v2459, %v2451
        %v2996 = vpack.c.b16 %v2460, %v2452
        %v2997 = vpack.c.b16 %v2461, %v2453
        %v2998 = vpack.c.b16 %v2462, %v2454
        %v2999 = vpack.c.b16 %v2463, %v2455
        %v3000 = vpack.c.b16 %v2464, %v2456
        %v3001 = vpack.c.b16 %v2473, %v2465
        %v3002 = vpack.c.b16 %v2474, %v2466
        %v3003 = vpack.c.b16 %v2475, %v2467
        %v3004 = vpack.c.b16 %v2476, %v2468
        %v3005 = vpack.c.b16 %v2477, %v2469
        %v3006 = vpack.c.b16 %v2478, %v2470
        %v3007 = vpack.c.b16 %v2479, %v2471
        %v3008 = vpack.c.b16 %v2480, %v2472
        %v3009 = vpack.c.b16 %v2489, %v2481
        %v3010 = vpack.c.b16 %v2490, %v2482
        %v3011 = vpack.c.b16 %v2491, %v2483
        %v3012 = vpack.c.b16 %v2492, %v2484
        %v3013 = vpack.c.b16 %v2493, %v2485
        %v3014 = vpack.c.b16 %v2494, %v2486
        %v3015 = vpack.c.b16 %v2495, %v2487
        %v3016 = vpack.c.b16 %v2496, %v2488
        %v3017 = vpack.c.b16 %v2505, %v2497
        %v3018 = vpack.c.b16 %v2506, %v2498
        %v3019 = vpack.c.b16 %v2507, %v2499
        %v3020 = vpack.c.b16 %v2508, %v2500
        %v3021 = vpack.c.b16 %v2509, %v2501
        %v3022 = vpack.c.b16 %v2510, %v2502
        %v3023 = vpack.c.b16 %v2511, %v2503
        %v3024 = vpack.c.b16 %v2512, %v2504
        %3537 = vmatprep.subr.bf16.mxu0 %v2514
        %3538 = vmatpush1.bf16.msra.mxu0 %v2513
        %3539 = vmatprep.subr.bf16.mxu0 %v2522
        %3540 = vmatpush1.bf16.msra.mxu0 %v2521
        %3541 = vmatprep.subr.bf16.mxu0 %v2530
        %3542 = vmatpush1.bf16.msra.mxu0 %v2529
        %3543 = vmatprep.subr.bf16.mxu0 %v2538
        %3544 = vmatpush1.bf16.msra.mxu0 %v2537
        %3545 = vmatprep.subr.bf16.mxu0 %v2546
        %3546 = vmatpush1.bf16.msra.mxu0 %v2545
        %3547 = vmatprep.subr.bf16.mxu0 %v2554
        %3548 = vmatpush1.bf16.msra.mxu0 %v2553
        %3549 = vmatprep.subr.bf16.mxu0 %v2562
        %3550 = vmatpush1.bf16.msra.mxu0 %v2561
        %3551 = vmatprep.subr.bf16.mxu0 %v2570
        %3552 = vmatpush1.bf16.msra.mxu0 %v2569
        %3553 = vmatprep.subr.bf16.mxu0 %v2578
        %3554 = vmatpush1.bf16.msra.mxu0 %v2577
        %3555 = vmatprep.subr.bf16.mxu0 %v2586
        %3556 = vmatpush1.bf16.msra.mxu0 %v2585
        %3557 = vmatprep.subr.bf16.mxu0 %v2594
        %3558 = vmatpush1.bf16.msra.mxu0 %v2593
        %3559 = vmatprep.subr.bf16.mxu0 %v2602
        %3560 = vmatpush1.bf16.msra.mxu0 %v2601
        %3561 = vmatprep.subr.bf16.mxu0 %v2610
        %3562 = vmatpush1.bf16.msra.mxu0 %v2609
        %3563 = vmatprep.subr.bf16.mxu0 %v2618
        %3564 = vmatpush1.bf16.msra.mxu0 %v2617
        %3565 = vmatprep.subr.bf16.mxu0 %v2626
        %3566 = vmatpush1.bf16.msra.mxu0 %v2625
        %3567 = vmatprep.subr.bf16.mxu0 %v2634
        %3568 = vmatpush1.bf16.msra.mxu0 %v2633
        %3569 = vmatprep.mubr.bf16.mxu0 %v962
        %3570 = vmatmul.mubr.bf16.gmra.mrb[0].mxu0 %v961
        %v3571 = vpop.f32.mrb[0].mxu0
        %v3572 = vadd.f32 0.0, %v3571
        %v3573 = vpop.f32.mrb[0].mxu0
        %v3574 = vadd.f32 0.0, %v3573
        %v3575 = vpop.f32.mrb[0].mxu0
        %v3576 = vpop.f32.mrb[0].mxu0
        %3577 = vdwg.mxu0
        %3578 = vmatprep.subr.bf16.mxu0 %v2642
        %3579 = vmatpush1.bf16.msra.mxu0 %v2641
        %3580 = vmatprep.subr.bf16.mxu0 %v2650
        %3581 = vmatpush1.bf16.msra.mxu0 %v2649
        %3582 = vmatprep.subr.bf16.mxu0 %v2658
        %3583 = vmatpush1.bf16.msra.mxu0 %v2657
        %3584 = vmatprep.subr.bf16.mxu0 %v2666
        %3585 = vmatpush1.bf16.msra.mxu0 %v2665
        %3586 = vmatprep.subr.bf16.mxu0 %v2674
        %3587 = vmatpush1.bf16.msra.mxu0 %v2673
        %3588 = vmatprep.subr.bf16.mxu0 %v2682
        %3589 = vmatpush1.bf16.msra.mxu0 %v2681
        %3590 = vmatprep.subr.bf16.mxu0 %v2690
        %3591 = vmatpush1.bf16.msra.mxu0 %v2689
        %3592 = vmatprep.subr.bf16.mxu0 %v2698
        %3593 = vmatpush1.bf16.msra.mxu0 %v2697
        %3594 = vmatprep.subr.bf16.mxu0 %v2706
        %3595 = vmatpush1.bf16.msra.mxu0 %v2705
        %3596 = vmatprep.subr.bf16.mxu0 %v2714
        %3597 = vmatpush1.bf16.msra.mxu0 %v2713
        %3598 = vmatprep.subr.bf16.mxu0 %v2722
        %3599 = vmatpush1.bf16.msra.mxu0 %v2721
        %3600 = vmatprep.subr.bf16.mxu0 %v2730
        %3601 = vmatpush1.bf16.msra.mxu0 %v2729
        %3602 = vmatprep.subr.bf16.mxu0 %v2738
        %3603 = vmatpush1.bf16.msra.mxu0 %v2737
        %3604 = vmatprep.subr.bf16.mxu0 %v2746
        %3605 = vmatpush1.bf16.msra.mxu0 %v2745
        %3606 = vmatprep.subr.bf16.mxu0 %v2754
        %3607 = vmatpush1.bf16.msra.mxu0 %v2753
        %3608 = vmatprep.subr.bf16.mxu0 %v2762
        %3609 = vmatpush1.bf16.msra.mxu0 %v2761
        %3610 = vmatprep.mubr.bf16.mxu0 %v964
        %3611 = vmatmul.mubr.bf16.gmra.mrb[0].mxu0 %v963
        %v3612 = vpop.f32.mrb[0].mxu0
        %v3613 = vadd.f32 %v3572, %v3612
        %v3614 = vpop.f32.mrb[0].mxu0
        %v3615 = vadd.f32 %v3574, %v3614
        %v3616 = vpop.f32.mrb[0].mxu0
        %v3617 = vpop.f32.mrb[0].mxu0
        %3618 = vdwg.mxu0
        %3619 = vmatprep.subr.bf16.mxu0 %v2770
        %3620 = vmatpush1.bf16.msra.mxu0 %v2769
        %3621 = vmatprep.subr.bf16.mxu0 %v2778
        %3622 = vmatpush1.bf16.msra.mxu0 %v2777
        %3623 = vmatprep.subr.bf16.mxu0 %v2786
        %3624 = vmatpush1.bf16.msra.mxu0 %v2785
        %3625 = vmatprep.subr.bf16.mxu0 %v2794
        %3626 = vmatpush1.bf16.msra.mxu0 %v2793
        %3627 = vmatprep.subr.bf16.mxu0 %v2802
        %3628 = vmatpush1.bf16.msra.mxu0 %v2801
        %3629 = vmatprep.subr.bf16.mxu0 %v2810
        %3630 = vmatpush1.bf16.msra.mxu0 %v2809
        %3631 = vmatprep.subr.bf16.mxu0 %v2818
        %3632 = vmatpush1.bf16.msra.mxu0 %v2817
        %3633 = vmatprep.subr.bf16.mxu0 %v2826
        %3634 = vmatpush1.bf16.msra.mxu0 %v2825
        %3635 = vmatprep.subr.bf16.mxu0 %v2834
        %3636 = vmatpush1.bf16.msra.mxu0 %v2833
        %3637 = vmatprep.subr.bf16.mxu0 %v2842
        %3638 = vmatpush1.bf16.msra.mxu0 %v2841
        %3639 = vmatprep.subr.bf16.mxu0 %v2850
        %3640 = vmatpush1.bf16.msra.mxu0 %v2849
        %3641 = vmatprep.subr.bf16.mxu0 %v2858
        %3642 = vmatpush1.bf16.msra.mxu0 %v2857
        %3643 = vmatprep.subr.bf16.mxu0 %v2866
        %3644 = vmatpush1.bf16.msra.mxu0 %v2865
        %3645 = vmatprep.subr.bf16.mxu0 %v2874
        %3646 = vmatpush1.bf16.msra.mxu0 %v2873
        %3647 = vmatprep.subr.bf16.mxu0 %v2882
        %3648 = vmatpush1.bf16.msra.mxu0 %v2881
        %3649 = vmatprep.subr.bf16.mxu0 %v2890
        %3650 = vmatpush1.bf16.msra.mxu0 %v2889
        %3651 = vmatprep.mubr.bf16.mxu0 %v966
        %3652 = vmatmul.mubr.bf16.gmra.mrb[0].mxu0 %v965
        %v3653 = vpop.f32.mrb[0].mxu0
        %v3654 = vadd.f32 %v3613, %v3653
        %v3655 = vpop.f32.mrb[0].mxu0
        %v3656 = vadd.f32 %v3615, %v3655
        %v3657 = vpop.f32.mrb[0].mxu0
        %v3658 = vpop.f32.mrb[0].mxu0
        %3659 = vdwg.mxu0
        %3660 = vmatprep.subr.bf16.mxu0 %v2898
        %3661 = vmatpush1.bf16.msra.mxu0 %v2897
        %3662 = vmatprep.subr.bf16.mxu0 %v2906
        %3663 = vmatpush1.bf16.msra.mxu0 %v2905
        %3664 = vmatprep.subr.bf16.mxu0 %v2914
        %3665 = vmatpush1.bf16.msra.mxu0 %v2913
        %3666 = vmatprep.subr.bf16.mxu0 %v2922
        %3667 = vmatpush1.bf16.msra.mxu0 %v2921
        %3668 = vmatprep.subr.bf16.mxu0 %v2930
        %3669 = vmatpush1.bf16.msra.mxu0 %v2929
        %3670 = vmatprep.subr.bf16.mxu0 %v2938
        %3671 = vmatpush1.bf16.msra.mxu0 %v2937
        %3672 = vmatprep.subr.bf16.mxu0 %v2946
        %3673 = vmatpush1.bf16.msra.mxu0 %v2945
        %3674 = vmatprep.subr.bf16.mxu0 %v2954
        %3675 = vmatpush1.bf16.msra.mxu0 %v2953
        %3676 = vmatprep.subr.bf16.mxu0 %v2962
        %3677 = vmatpush1.bf16.msra.mxu0 %v2961
        %3678 = vmatprep.subr.bf16.mxu0 %v2970
        %3679 = vmatpush1.bf16.msra.mxu0 %v2969
        %3680 = vmatprep.subr.bf16.mxu0 %v2978
        %3681 = vmatpush1.bf16.msra.mxu0 %v2977
        %3682 = vmatprep.subr.bf16.mxu0 %v2986
        %3683 = vmatpush1.bf16.msra.mxu0 %v2985
        %3684 = vmatprep.subr.bf16.mxu0 %v2994
        %3685 = vmatpush1.bf16.msra.mxu0 %v2993
        %3686 = vmatprep.subr.bf16.mxu0 %v3002
        %3687 = vmatpush1.bf16.msra.mxu0 %v3001
        %3688 = vmatprep.subr.bf16.mxu0 %v3010
        %3689 = vmatpush1.bf16.msra.mxu0 %v3009
        %3690 = vmatprep.subr.bf16.mxu0 %v3018
        %3691 = vmatpush1.bf16.msra.mxu0 %v3017
        %3692 = vmatprep.mubr.bf16.mxu0 %v968
        %3693 = vmatmul.mubr.bf16.gmra.mrb[0].mxu0 %v967
        %v3694 = vpop.f32.mrb[0].mxu0
        %v3695 = vadd.f32 %v3654, %v3694
        %v3696 = vpop.f32.mrb[0].mxu0
        %v3697 = vadd.f32 %v3656, %v3696
        %v3698 = vpop.f32.mrb[0].mxu0
        %v3699 = vpop.f32.mrb[0].mxu0
        %3700 = vdwg.mxu0
        %3701 = vmatprep.subr.bf16.mxu0 %v2516
        %3702 = vmatpush1.bf16.msra.mxu0 %v2515
        %3703 = vmatprep.subr.bf16.mxu0 %v2524
        %3704 = vmatpush1.bf16.msra.mxu0 %v2523
        %3705 = vmatprep.subr.bf16.mxu0 %v2532
        %3706 = vmatpush1.bf16.msra.mxu0 %v2531
        %3707 = vmatprep.subr.bf16.mxu0 %v2540
        %3708 = vmatpush1.bf16.msra.mxu0 %v2539
        %3709 = vmatprep.subr.bf16.mxu0 %v2548
        %3710 = vmatpush1.bf16.msra.mxu0 %v2547
        %3711 = vmatprep.subr.bf16.mxu0 %v2556
        %3712 = vmatpush1.bf16.msra.mxu0 %v2555
        %3713 = vmatprep.subr.bf16.mxu0 %v2564
        %3714 = vmatpush1.bf16.msra.mxu0 %v2563
        %3715 = vmatprep.subr.bf16.mxu0 %v2572
        %3716 = vmatpush1.bf16.msra.mxu0 %v2571
        %3717 = vmatprep.subr.bf16.mxu0 %v2580
        %3718 = vmatpush1.bf16.msra.mxu0 %v2579
        %3719 = vmatprep.subr.bf16.mxu0 %v2588
        %3720 = vmatpush1.bf16.msra.mxu0 %v2587
        %3721 = vmatprep.subr.bf16.mxu0 %v2596
        %3722 = vmatpush1.bf16.msra.mxu0 %v2595
        %3723 = vmatprep.subr.bf16.mxu0 %v2604
        %3724 = vmatpush1.bf16.msra.mxu0 %v2603
        %3725 = vmatprep.subr.bf16.mxu0 %v2612
        %3726 = vmatpush1.bf16.msra.mxu0 %v2611
        %3727 = vmatprep.subr.bf16.mxu0 %v2620
        %3728 = vmatpush1.bf16.msra.mxu0 %v2619
        %3729 = vmatprep.subr.bf16.mxu0 %v2628
        %3730 = vmatpush1.bf16.msra.mxu0 %v2627
        %3731 = vmatprep.subr.bf16.mxu0 %v2636
        %3732 = vmatpush1.bf16.msra.mxu0 %v2635
        %3733 = vmatprep.mubr.bf16.mxu0 %v962
        %3734 = vmatmul.mubr.bf16.gmra.mrb[0].mxu0 %v961
        %v3735 = vpop.f32.mrb[0].mxu0
        %v3736 = vadd.f32 0.0, %v3735
        %v3737 = vpop.f32.mrb[0].mxu0
        %v3738 = vadd.f32 0.0, %v3737
        %v3739 = vpop.f32.mrb[0].mxu0
        %v3740 = vpop.f32.mrb[0].mxu0
        %3741 = vdwg.mxu0
        %3742 = vmatprep.subr.bf16.mxu0 %v2644
        %3743 = vmatpush1.bf16.msra.mxu0 %v2643
        %3744 = vmatprep.subr.bf16.mxu0 %v2652
        %3745 = vmatpush1.bf16.msra.mxu0 %v2651
        %3746 = vmatprep.subr.bf16.mxu0 %v2660
        %3747 = vmatpush1.bf16.msra.mxu0 %v2659
        %3748 = vmatprep.subr.bf16.mxu0 %v2668
        %3749 = vmatpush1.bf16.msra.mxu0 %v2667
        %3750 = vmatprep.subr.bf16.mxu0 %v2676
        %3751 = vmatpush1.bf16.msra.mxu0 %v2675
        %3752 = vmatprep.subr.bf16.mxu0 %v2684
        %3753 = vmatpush1.bf16.msra.mxu0 %v2683
        %3754 = vmatprep.subr.bf16.mxu0 %v2692
        %3755 = vmatpush1.bf16.msra.mxu0 %v2691
        %3756 = vmatprep.subr.bf16.mxu0 %v2700
        %3757 = vmatpush1.bf16.msra.mxu0 %v2699
        %3758 = vmatprep.subr.bf16.mxu0 %v2708
        %3759 = vmatpush1.bf16.msra.mxu0 %v2707
        %3760 = vmatprep.subr.bf16.mxu0 %v2716
        %3761 = vmatpush1.bf16.msra.mxu0 %v2715
        %3762 = vmatprep.subr.bf16.mxu0 %v2724
        %3763 = vmatpush1.bf16.msra.mxu0 %v2723
        %3764 = vmatprep.subr.bf16.mxu0 %v2732
        %3765 = vmatpush1.bf16.msra.mxu0 %v2731
        %3766 = vmatprep.subr.bf16.mxu0 %v2740
        %3767 = vmatpush1.bf16.msra.mxu0 %v2739
        %3768 = vmatprep.subr.bf16.mxu0 %v2748
        %3769 = vmatpush1.bf16.msra.mxu0 %v2747
        %3770 = vmatprep.subr.bf16.mxu0 %v2756
        %3771 = vmatpush1.bf16.msra.mxu0 %v2755
        %3772 = vmatprep.subr.bf16.mxu0 %v2764
        %3773 = vmatpush1.bf16.msra.mxu0 %v2763
        %3774 = vmatprep.mubr.bf16.mxu0 %v964
        %3775 = vmatmul.mubr.bf16.gmra.mrb[0].mxu0 %v963
        %v3776 = vpop.f32.mrb[0].mxu0
        %v3777 = vadd.f32 %v3736, %v3776
        %v3778 = vpop.f32.mrb[0].mxu0
        %v3779 = vadd.f32 %v3738, %v3778
        %v3780 = vpop.f32.mrb[0].mxu0
        %v3781 = vpop.f32.mrb[0].mxu0
        %3782 = vdwg.mxu0
        %3783 = vmatprep.subr.bf16.mxu0 %v2772
        %3784 = vmatpush1.bf16.msra.mxu0 %v2771
        %3785 = vmatprep.subr.bf16.mxu0 %v2780
        %3786 = vmatpush1.bf16.msra.mxu0 %v2779
        %3787 = vmatprep.subr.bf16.mxu0 %v2788
        %3788 = vmatpush1.bf16.msra.mxu0 %v2787
        %3789 = vmatprep.subr.bf16.mxu0 %v2796
        %3790 = vmatpush1.bf16.msra.mxu0 %v2795
        %3791 = vmatprep.subr.bf16.mxu0 %v2804
        %3792 = vmatpush1.bf16.msra.mxu0 %v2803
        %3793 = vmatprep.subr.bf16.mxu0 %v2812
        %3794 = vmatpush1.bf16.msra.mxu0 %v2811
        %3795 = vmatprep.subr.bf16.mxu0 %v2820
        %3796 = vmatpush1.bf16.msra.mxu0 %v2819
        %3797 = vmatprep.subr.bf16.mxu0 %v2828
        %3798 = vmatpush1.bf16.msra.mxu0 %v2827
        %3799 = vmatprep.subr.bf16.mxu0 %v2836
        %3800 = vmatpush1.bf16.msra.mxu0 %v2835
        %3801 = vmatprep.subr.bf16.mxu0 %v2844
        %3802 = vmatpush1.bf16.msra.mxu0 %v2843
        %3803 = vmatprep.subr.bf16.mxu0 %v2852
        %3804 = vmatpush1.bf16.msra.mxu0 %v2851
        %3805 = vmatprep.subr.bf16.mxu0 %v2860
        %3806 = vmatpush1.bf16.msra.mxu0 %v2859
        %3807 = vmatprep.subr.bf16.mxu0 %v2868
        %3808 = vmatpush1.bf16.msra.mxu0 %v2867
        %3809 = vmatprep.subr.bf16.mxu0 %v2876
        %3810 = vmatpush1.bf16.msra.mxu0 %v2875
        %3811 = vmatprep.subr.bf16.mxu0 %v2884
        %3812 = vmatpush1.bf16.msra.mxu0 %v2883
        %3813 = vmatprep.subr.bf16.mxu0 %v2892
        %3814 = vmatpush1.bf16.msra.mxu0 %v2891
        %3815 = vmatprep.mubr.bf16.mxu0 %v966
        %3816 = vmatmul.mubr.bf16.gmra.mrb[0].mxu0 %v965
        %v3817 = vpop.f32.mrb[0].mxu0
        %v3818 = vadd.f32 %v3777, %v3817
        %v3819 = vpop.f32.mrb[0].mxu0
        %v3820 = vadd.f32 %v3779, %v3819
        %v3821 = vpop.f32.mrb[0].mxu0
        %v3822 = vpop.f32.mrb[0].mxu0
        %3823 = vdwg.mxu0
        %3824 = vmatprep.subr.bf16.mxu0 %v2900
        %3825 = vmatpush1.bf16.msra.mxu0 %v2899
        %3826 = vmatprep.subr.bf16.mxu0 %v2908
        %3827 = vmatpush1.bf16.msra.mxu0 %v2907
        %3828 = vmatprep.subr.bf16.mxu0 %v2916
        %3829 = vmatpush1.bf16.msra.mxu0 %v2915
        %3830 = vmatprep.subr.bf16.mxu0 %v2924
        %3831 = vmatpush1.bf16.msra.mxu0 %v2923
        %3832 = vmatprep.subr.bf16.mxu0 %v2932
        %3833 = vmatpush1.bf16.msra.mxu0 %v2931
        %3834 = vmatprep.subr.bf16.mxu0 %v2940
        %3835 = vmatpush1.bf16.msra.mxu0 %v2939
        %3836 = vmatprep.subr.bf16.mxu0 %v2948
        %3837 = vmatpush1.bf16.msra.mxu0 %v2947
        %3838 = vmatprep.subr.bf16.mxu0 %v2956
        %3839 = vmatpush1.bf16.msra.mxu0 %v2955
        %3840 = vmatprep.subr.bf16.mxu0 %v2964
        %3841 = vmatpush1.bf16.msra.mxu0 %v2963
        %3842 = vmatprep.subr.bf16.mxu0 %v2972
        %3843 = vmatpush1.bf16.msra.mxu0 %v2971
        %3844 = vmatprep.subr.bf16.mxu0 %v2980
        %3845 = vmatpush1.bf16.msra.mxu0 %v2979
        %3846 = vmatprep.subr.bf16.mxu0 %v2988
        %3847 = vmatpush1.bf16.msra.mxu0 %v2987
        %3848 = vmatprep.subr.bf16.mxu0 %v2996
        %3849 = vmatpush1.bf16.msra.mxu0 %v2995
        %3850 = vmatprep.subr.bf16.mxu0 %v3004
        %3851 = vmatpush1.bf16.msra.mxu0 %v3003
        %3852 = vmatprep.subr.bf16.mxu0 %v3012
        %3853 = vmatpush1.bf16.msra.mxu0 %v3011
        %3854 = vmatprep.subr.bf16.mxu0 %v3020
        %3855 = vmatpush1.bf16.msra.mxu0 %v3019
        %3856 = vmatprep.mubr.bf16.mxu0 %v968
        %3857 = vmatmul.mubr.bf16.gmra.mrb[0].mxu0 %v967
        %v3858 = vpop.f32.mrb[0].mxu0
        %v3859 = vadd.f32 %v3818, %v3858
        %v3860 = vpop.f32.mrb[0].mxu0
        %v3861 = vadd.f32 %v3820, %v3860
        %v3862 = vpop.f32.mrb[0].mxu0
        %v3863 = vpop.f32.mrb[0].mxu0
        %3864 = vdwg.mxu0
        %3865 = vmatprep.subr.bf16.mxu0 %v2518
        %3866 = vmatpush1.bf16.msra.mxu0 %v2517
        %3867 = vmatprep.subr.bf16.mxu0 %v2526
        %3868 = vmatpush1.bf16.msra.mxu0 %v2525
        %3869 = vmatprep.subr.bf16.mxu0 %v2534
        %3870 = vmatpush1.bf16.msra.mxu0 %v2533
        %3871 = vmatprep.subr.bf16.mxu0 %v2542
        %3872 = vmatpush1.bf16.msra.mxu0 %v2541
        %3873 = vmatprep.subr.bf16.mxu0 %v2550
        %3874 = vmatpush1.bf16.msra.mxu0 %v2549
        %3875 = vmatprep.subr.bf16.mxu0 %v2558
        %3876 = vmatpush1.bf16.msra.mxu0 %v2557
        %3877 = vmatprep.subr.bf16.mxu0 %v2566
        %3878 = vmatpush1.bf16.msra.mxu0 %v2565
        %3879 = vmatprep.subr.bf16.mxu0 %v2574
        %3880 = vmatpush1.bf16.msra.mxu0 %v2573
        %3881 = vmatprep.subr.bf16.mxu0 %v2582
        %3882 = vmatpush1.bf16.msra.mxu0 %v2581
        %3883 = vmatprep.subr.bf16.mxu0 %v2590
        %3884 = vmatpush1.bf16.msra.mxu0 %v2589
        %3885 = vmatprep.subr.bf16.mxu0 %v2598
        %3886 = vmatpush1.bf16.msra.mxu0 %v2597
        %3887 = vmatprep.subr.bf16.mxu0 %v2606
        %3888 = vmatpush1.bf16.msra.mxu0 %v2605
        %3889 = vmatprep.subr.bf16.mxu0 %v2614
        %3890 = vmatpush1.bf16.msra.mxu0 %v2613
        %3891 = vmatprep.subr.bf16.mxu0 %v2622
        %3892 = vmatpush1.bf16.msra.mxu0 %v2621
        %3893 = vmatprep.subr.bf16.mxu0 %v2630
        %3894 = vmatpush1.bf16.msra.mxu0 %v2629
        %3895 = vmatprep.subr.bf16.mxu0 %v2638
        %3896 = vmatpush1.bf16.msra.mxu0 %v2637
        %3897 = vmatprep.mubr.bf16.mxu0 %v962
        %3898 = vmatmul.mubr.bf16.gmra.mrb[0].mxu0 %v961
        %v3899 = vpop.f32.mrb[0].mxu0
        %v3900 = vadd.f32 0.0, %v3899
        %v3901 = vpop.f32.mrb[0].mxu0
        %v3902 = vadd.f32 0.0, %v3901
        %v3903 = vpop.f32.mrb[0].mxu0
        %v3904 = vpop.f32.mrb[0].mxu0
        %3905 = vdwg.mxu0
        %3906 = vmatprep.subr.bf16.mxu0 %v2646
        %3907 = vmatpush1.bf16.msra.mxu0 %v2645
        %3908 = vmatprep.subr.bf16.mxu0 %v2654
        %3909 = vmatpush1.bf16.msra.mxu0 %v2653
        %3910 = vmatprep.subr.bf16.mxu0 %v2662
        %3911 = vmatpush1.bf16.msra.mxu0 %v2661
        %3912 = vmatprep.subr.bf16.mxu0 %v2670
        %3913 = vmatpush1.bf16.msra.mxu0 %v2669
        %3914 = vmatprep.subr.bf16.mxu0 %v2678
        %3915 = vmatpush1.bf16.msra.mxu0 %v2677
        %3916 = vmatprep.subr.bf16.mxu0 %v2686
        %3917 = vmatpush1.bf16.msra.mxu0 %v2685
        %3918 = vmatprep.subr.bf16.mxu0 %v2694
        %3919 = vmatpush1.bf16.msra.mxu0 %v2693
        %3920 = vmatprep.subr.bf16.mxu0 %v2702
        %3921 = vmatpush1.bf16.msra.mxu0 %v2701
        %3922 = vmatprep.subr.bf16.mxu0 %v2710
        %3923 = vmatpush1.bf16.msra.mxu0 %v2709
        %3924 = vmatprep.subr.bf16.mxu0 %v2718
        %3925 = vmatpush1.bf16.msra.mxu0 %v2717
        %3926 = vmatprep.subr.bf16.mxu0 %v2726
        %3927 = vmatpush1.bf16.msra.mxu0 %v2725
        %3928 = vmatprep.subr.bf16.mxu0 %v2734
        %3929 = vmatpush1.bf16.msra.mxu0 %v2733
        %3930 = vmatprep.subr.bf16.mxu0 %v2742
        %3931 = vmatpush1.bf16.msra.mxu0 %v2741
        %3932 = vmatprep.subr.bf16.mxu0 %v2750
        %3933 = vmatpush1.bf16.msra.mxu0 %v2749
        %3934 = vmatprep.subr.bf16.mxu0 %v2758
        %3935 = vmatpush1.bf16.msra.mxu0 %v2757
        %3936 = vmatprep.subr.bf16.mxu0 %v2766
        %3937 = vmatpush1.bf16.msra.mxu0 %v2765
        %3938 = vmatprep.mubr.bf16.mxu0 %v964
        %3939 = vmatmul.mubr.bf16.gmra.mrb[0].mxu0 %v963
        %v3940 = vpop.f32.mrb[0].mxu0
        %v3941 = vadd.f32 %v3900, %v3940
        %v3942 = vpop.f32.mrb[0].mxu0
        %v3943 = vadd.f32 %v3902, %v3942
        %v3944 = vpop.f32.mrb[0].mxu0
        %v3945 = vpop.f32.mrb[0].mxu0
        %3946 = vdwg.mxu0
        %3947 = vmatprep.subr.bf16.mxu0 %v2774
        %3948 = vmatpush1.bf16.msra.mxu0 %v2773
        %3949 = vmatprep.subr.bf16.mxu0 %v2782
        %3950 = vmatpush1.bf16.msra.mxu0 %v2781
        %3951 = vmatprep.subr.bf16.mxu0 %v2790
        %3952 = vmatpush1.bf16.msra.mxu0 %v2789
        %3953 = vmatprep.subr.bf16.mxu0 %v2798
        %3954 = vmatpush1.bf16.msra.mxu0 %v2797
        %3955 = vmatprep.subr.bf16.mxu0 %v2806
        %3956 = vmatpush1.bf16.msra.mxu0 %v2805
        %3957 = vmatprep.subr.bf16.mxu0 %v2814
        %3958 = vmatpush1.bf16.msra.mxu0 %v2813
        %3959 = vmatprep.subr.bf16.mxu0 %v2822
        %3960 = vmatpush1.bf16.msra.mxu0 %v2821
        %3961 = vmatprep.subr.bf16.mxu0 %v2830
        %3962 = vmatpush1.bf16.msra.mxu0 %v2829
        %3963 = vmatprep.subr.bf16.mxu0 %v2838
        %3964 = vmatpush1.bf16.msra.mxu0 %v2837
        %3965 = vmatprep.subr.bf16.mxu0 %v2846
        %3966 = vmatpush1.bf16.msra.mxu0 %v2845
        %3967 = vmatprep.subr.bf16.mxu0 %v2854
        %3968 = vmatpush1.bf16.msra.mxu0 %v2853
        %3969 = vmatprep.subr.bf16.mxu0 %v2862
        %3970 = vmatpush1.bf16.msra.mxu0 %v2861
        %3971 = vmatprep.subr.bf16.mxu0 %v2870
        %3972 = vmatpush1.bf16.msra.mxu0 %v2869
        %3973 = vmatprep.subr.bf16.mxu0 %v2878
        %3974 = vmatpush1.bf16.msra.mxu0 %v2877
        %3975 = vmatprep.subr.bf16.mxu0 %v2886
        %3976 = vmatpush1.bf16.msra.mxu0 %v2885
        %3977 = vmatprep.subr.bf16.mxu0 %v2894
        %3978 = vmatpush1.bf16.msra.mxu0 %v2893
        %3979 = vmatprep.mubr.bf16.mxu0 %v966
        %3980 = vmatmul.mubr.bf16.gmra.mrb[0].mxu0 %v965
        %v3981 = vpop.f32.mrb[0].mxu0
        %v3982 = vadd.f32 %v3941, %v3981
        %v3983 = vpop.f32.mrb[0].mxu0
        %v3984 = vadd.f32 %v3943, %v3983
        %v3985 = vpop.f32.mrb[0].mxu0
        %v3986 = vpop.f32.mrb[0].mxu0
        %3987 = vdwg.mxu0
        %3988 = vmatprep.subr.bf16.mxu0 %v2902
        %3989 = vmatpush1.bf16.msra.mxu0 %v2901
        %3990 = vmatprep.subr.bf16.mxu0 %v2910
        %3991 = vmatpush1.bf16.msra.mxu0 %v2909
        %3992 = vmatprep.subr.bf16.mxu0 %v2918
        %3993 = vmatpush1.bf16.msra.mxu0 %v2917
        %3994 = vmatprep.subr.bf16.mxu0 %v2926
        %3995 = vmatpush1.bf16.msra.mxu0 %v2925
        %3996 = vmatprep.subr.bf16.mxu0 %v2934
        %3997 = vmatpush1.bf16.msra.mxu0 %v2933
        %3998 = vmatprep.subr.bf16.mxu0 %v2942
        %3999 = vmatpush1.bf16.msra.mxu0 %v2941
        %4000 = vmatprep.subr.bf16.mxu0 %v2950
        %4001 = vmatpush1.bf16.msra.mxu0 %v2949
        %4002 = vmatprep.subr.bf16.mxu0 %v2958
        %4003 = vmatpush1.bf16.msra.mxu0 %v2957
        %4004 = vmatprep.subr.bf16.mxu0 %v2966
        %4005 = vmatpush1.bf16.msra.mxu0 %v2965
        %4006 = vmatprep.subr.bf16.mxu0 %v2974
        %4007 = vmatpush1.bf16.msra.mxu0 %v2973
        %4008 = vmatprep.subr.bf16.mxu0 %v2982
        %4009 = vmatpush1.bf16.msra.mxu0 %v2981
        %4010 = vmatprep.subr.bf16.mxu0 %v2990
        %4011 = vmatpush1.bf16.msra.mxu0 %v2989
        %4012 = vmatprep.subr.bf16.mxu0 %v2998
        %4013 = vmatpush1.bf16.msra.mxu0 %v2997
        %4014 = vmatprep.subr.bf16.mxu0 %v3006
        %4015 = vmatpush1.bf16.msra.mxu0 %v3005
        %4016 = vmatprep.subr.bf16.mxu0 %v3014
        %4017 = vmatpush1.bf16.msra.mxu0 %v3013
        %4018 = vmatprep.subr.bf16.mxu0 %v3022
        %4019 = vmatpush1.bf16.msra.mxu0 %v3021
        %4020 = vmatprep.mubr.bf16.mxu0 %v968
        %4021 = vmatmul.mubr.bf16.gmra.mrb[0].mxu0 %v967
        %v4022 = vpop.f32.mrb[0].mxu0
        %v4023 = vadd.f32 %v3982, %v4022
        %v4024 = vpop.f32.mrb[0].mxu0
        %v4025 = vadd.f32 %v3984, %v4024
        %v4026 = vpop.f32.mrb[0].mxu0
        %v4027 = vpop.f32.mrb[0].mxu0
        %4028 = vdwg.mxu0
        %4029 = vmatprep.subr.bf16.mxu0 %v2520
        %4030 = vmatpush1.bf16.msra.mxu0 %v2519
        %4031 = vmatprep.subr.bf16.mxu0 %v2528
        %4032 = vmatpush1.bf16.msra.mxu0 %v2527
        %4033 = vmatprep.subr.bf16.mxu0 %v2536
        %4034 = vmatpush1.bf16.msra.mxu0 %v2535
        %4035 = vmatprep.subr.bf16.mxu0 %v2544
        %4036 = vmatpush1.bf16.msra.mxu0 %v2543
        %4037 = vmatprep.subr.bf16.mxu0 %v2552
        %4038 = vmatpush1.bf16.msra.mxu0 %v2551
        %4039 = vmatprep.subr.bf16.mxu0 %v2560
        %4040 = vmatpush1.bf16.msra.mxu0 %v2559
        %4041 = vmatprep.subr.bf16.mxu0 %v2568
        %4042 = vmatpush1.bf16.msra.mxu0 %v2567
        %4043 = vmatprep.subr.bf16.mxu0 %v2576
        %4044 = vmatpush1.bf16.msra.mxu0 %v2575
        %4045 = vmatprep.subr.bf16.mxu0 %v2584
        %4046 = vmatpush1.bf16.msra.mxu0 %v2583
        %4047 = vmatprep.subr.bf16.mxu0 %v2592
        %4048 = vmatpush1.bf16.msra.mxu0 %v2591
        %4049 = vmatprep.subr.bf16.mxu0 %v2600
        %4050 = vmatpush1.bf16.msra.mxu0 %v2599
        %4051 = vmatprep.subr.bf16.mxu0 %v2608
        %4052 = vmatpush1.bf16.msra.mxu0 %v2607
        %4053 = vmatprep.subr.bf16.mxu0 %v2616
        %4054 = vmatpush1.bf16.msra.mxu0 %v2615
        %4055 = vmatprep.subr.bf16.mxu0 %v2624
        %4056 = vmatpush1.bf16.msra.mxu0 %v2623
        %4057 = vmatprep.subr.bf16.mxu0 %v2632
        %4058 = vmatpush1.bf16.msra.mxu0 %v2631
        %4059 = vmatprep.subr.bf16.mxu0 %v2640
        %4060 = vmatpush1.bf16.msra.mxu0 %v2639
        %4061 = vmatprep.mubr.bf16.mxu0 %v962
        %4062 = vmatmul.mubr.bf16.gmra.mrb[0].mxu0 %v961
        %v4063 = vpop.f32.mrb[0].mxu0
        %v4064 = vadd.f32 0.0, %v4063
        %v4065 = vpop.f32.mrb[0].mxu0
        %v4066 = vadd.f32 0.0, %v4065
        %v4067 = vpop.f32.mrb[0].mxu0
        %v4068 = vpop.f32.mrb[0].mxu0
        %4069 = vdwg.mxu0
        %4070 = vmatprep.subr.bf16.mxu0 %v2648
        %4071 = vmatpush1.bf16.msra.mxu0 %v2647
        %4072 = vmatprep.subr.bf16.mxu0 %v2656
        %4073 = vmatpush1.bf16.msra.mxu0 %v2655
        %4074 = vmatprep.subr.bf16.mxu0 %v2664
        %4075 = vmatpush1.bf16.msra.mxu0 %v2663
        %4076 = vmatprep.subr.bf16.mxu0 %v2672
        %4077 = vmatpush1.bf16.msra.mxu0 %v2671
        %4078 = vmatprep.subr.bf16.mxu0 %v2680
        %4079 = vmatpush1.bf16.msra.mxu0 %v2679
        %4080 = vmatprep.subr.bf16.mxu0 %v2688
        %4081 = vmatpush1.bf16.msra.mxu0 %v2687
        %4082 = vmatprep.subr.bf16.mxu0 %v2696
        %4083 = vmatpush1.bf16.msra.mxu0 %v2695
        %4084 = vmatprep.subr.bf16.mxu0 %v2704
        %4085 = vmatpush1.bf16.msra.mxu0 %v2703
        %4086 = vmatprep.subr.bf16.mxu0 %v2712
        %4087 = vmatpush1.bf16.msra.mxu0 %v2711
        %4088 = vmatprep.subr.bf16.mxu0 %v2720
        %4089 = vmatpush1.bf16.msra.mxu0 %v2719
        %4090 = vmatprep.subr.bf16.mxu0 %v2728
        %4091 = vmatpush1.bf16.msra.mxu0 %v2727
        %4092 = vmatprep.subr.bf16.mxu0 %v2736
        %4093 = vmatpush1.bf16.msra.mxu0 %v2735
        %4094 = vmatprep.subr.bf16.mxu0 %v2744
        %4095 = vmatpush1.bf16.msra.mxu0 %v2743
        %4096 = vmatprep.subr.bf16.mxu0 %v2752
        %4097 = vmatpush1.bf16.msra.mxu0 %v2751
        %4098 = vmatprep.subr.bf16.mxu0 %v2760
        %4099 = vmatpush1.bf16.msra.mxu0 %v2759
        %4100 = vmatprep.subr.bf16.mxu0 %v2768
        %4101 = vmatpush1.bf16.msra.mxu0 %v2767
        %4102 = vmatprep.mubr.bf16.mxu0 %v964
        %4103 = vmatmul.mubr.bf16.gmra.mrb[0].mxu0 %v963
        %v4104 = vpop.f32.mrb[0].mxu0
        %v4105 = vadd.f32 %v4064, %v4104
        %v4106 = vpop.f32.mrb[0].mxu0
        %v4107 = vadd.f32 %v4066, %v4106
        %v4108 = vpop.f32.mrb[0].mxu0
        %v4109 = vpop.f32.mrb[0].mxu0
        %4110 = vdwg.mxu0
        %4111 = vmatprep.subr.bf16.mxu0 %v2776
        %4112 = vmatpush1.bf16.msra.mxu0 %v2775
        %4113 = vmatprep.subr.bf16.mxu0 %v2784
        %4114 = vmatpush1.bf16.msra.mxu0 %v2783
        %4115 = vmatprep.subr.bf16.mxu0 %v2792
        %4116 = vmatpush1.bf16.msra.mxu0 %v2791
        %4117 = vmatprep.subr.bf16.mxu0 %v2800
        %4118 = vmatpush1.bf16.msra.mxu0 %v2799
        %4119 = vmatprep.subr.bf16.mxu0 %v2808
        %4120 = vmatpush1.bf16.msra.mxu0 %v2807
        %4121 = vmatprep.subr.bf16.mxu0 %v2816
        %4122 = vmatpush1.bf16.msra.mxu0 %v2815
        %4123 = vmatprep.subr.bf16.mxu0 %v2824
        %4124 = vmatpush1.bf16.msra.mxu0 %v2823
        %4125 = vmatprep.subr.bf16.mxu0 %v2832
        %4126 = vmatpush1.bf16.msra.mxu0 %v2831
        %4127 = vmatprep.subr.bf16.mxu0 %v2840
        %4128 = vmatpush1.bf16.msra.mxu0 %v2839
        %4129 = vmatprep.subr.bf16.mxu0 %v2848
        %4130 = vmatpush1.bf16.msra.mxu0 %v2847
        %4131 = vmatprep.subr.bf16.mxu0 %v2856
        %4132 = vmatpush1.bf16.msra.mxu0 %v2855
        %4133 = vmatprep.subr.bf16.mxu0 %v2864
        %4134 = vmatpush1.bf16.msra.mxu0 %v2863
        %4135 = vmatprep.subr.bf16.mxu0 %v2872
        %4136 = vmatpush1.bf16.msra.mxu0 %v2871
        %4137 = vmatprep.subr.bf16.mxu0 %v2880
        %4138 = vmatpush1.bf16.msra.mxu0 %v2879
        %4139 = vmatprep.subr.bf16.mxu0 %v2888
        %4140 = vmatpush1.bf16.msra.mxu0 %v2887
        %4141 = vmatprep.subr.bf16.mxu0 %v2896
        %4142 = vmatpush1.bf16.msra.mxu0 %v2895
        %4143 = vmatprep.mubr.bf16.mxu0 %v966
        %4144 = vmatmul.mubr.bf16.gmra.mrb[0].mxu0 %v965
        %v4145 = vpop.f32.mrb[0].mxu0
        %v4146 = vadd.f32 %v4105, %v4145
        %v4147 = vpop.f32.mrb[0].mxu0
        %v4148 = vadd.f32 %v4107, %v4147
        %v4149 = vpop.f32.mrb[0].mxu0
        %v4150 = vpop.f32.mrb[0].mxu0
        %4151 = vdwg.mxu0
        %4152 = vmatprep.subr.bf16.mxu0 %v2904
        %4153 = vmatpush1.bf16.msra.mxu0 %v2903
        %4154 = vmatprep.subr.bf16.mxu0 %v2912
        %4155 = vmatpush1.bf16.msra.mxu0 %v2911
        %4156 = vmatprep.subr.bf16.mxu0 %v2920
        %4157 = vmatpush1.bf16.msra.mxu0 %v2919
        %4158 = vmatprep.subr.bf16.mxu0 %v2928
        %4159 = vmatpush1.bf16.msra.mxu0 %v2927
        %4160 = vmatprep.subr.bf16.mxu0 %v2936
        %4161 = vmatpush1.bf16.msra.mxu0 %v2935
        %4162 = vmatprep.subr.bf16.mxu0 %v2944
        %4163 = vmatpush1.bf16.msra.mxu0 %v2943
        %4164 = vmatprep.subr.bf16.mxu0 %v2952
        %4165 = vmatpush1.bf16.msra.mxu0 %v2951
        %4166 = vmatprep.subr.bf16.mxu0 %v2960
        %4167 = vmatpush1.bf16.msra.mxu0 %v2959
        %4168 = vmatprep.subr.bf16.mxu0 %v2968
        %4169 = vmatpush1.bf16.msra.mxu0 %v2967
        %4170 = vmatprep.subr.bf16.mxu0 %v2976
        %4171 = vmatpush1.bf16.msra.mxu0 %v2975
        %4172 = vmatprep.subr.bf16.mxu0 %v2984
        %4173 = vmatpush1.bf16.msra.mxu0 %v2983
        %4174 = vmatprep.subr.bf16.mxu0 %v2992
        %4175 = vmatpush1.bf16.msra.mxu0 %v2991
        %4176 = vmatprep.subr.bf16.mxu0 %v3000
        %4177 = vmatpush1.bf16.msra.mxu0 %v2999
        %4178 = vmatprep.subr.bf16.mxu0 %v3008
        %4179 = vmatpush1.bf16.msra.mxu0 %v3007
        %4180 = vmatprep.subr.bf16.mxu0 %v3016
        %4181 = vmatpush1.bf16.msra.mxu0 %v3015
        %4182 = vmatprep.subr.bf16.mxu0 %v3024
        %4183 = vmatpush1.bf16.msra.mxu0 %v3023
        %4184 = vmatprep.mubr.bf16.mxu0 %v968
        %4185 = vmatmul.mubr.bf16.gmra.mrb[0].mxu0 %v967
        %v4186 = vpop.f32.mrb[0].mxu0
        %v4187 = vadd.f32 %v4146, %v4186
        %v4188 = vpop.f32.mrb[0].mxu0
        %v4189 = vadd.f32 %v4148, %v4188
        %v4190 = vpop.f32.mrb[0].mxu0
        %v4191 = vpop.f32.mrb[0].mxu0
        %4192 = vdwg.mxu0
        %v4193 = vadd.f32 %v425, %v3695
        %v4194 = vadd.f32 %v426, %v3697
        %v4195 = vadd.f32 %v427, %v3859
        %v4196 = vadd.f32 %v428, %v3861
        %v4197 = vadd.f32 %v429, %v4023
        %v4198 = vadd.f32 %v430, %v4025
        %v4199 = vadd.f32 %v431, %v4187
        %v4200 = vadd.f32 %v432, %v4189
        %4201 = vst [vmem:[#allocation2] sm:$0xff] %v4193
        %4202 = vst [vmem:[#allocation2 + $0x8] sm:$0xff] %v4194
        %4203 = vst [vmem:[#allocation2 + $0x10] sm:$0xff] %v4195
        %4204 = vst [vmem:[#allocation2 + $0x18] sm:$0xff] %v4196
        %4205 = vst [vmem:[#allocation2 + $0x20] sm:$0xff] %v4197
        %4206 = vst [vmem:[#allocation2 + $0x28] sm:$0xff] %v4198
        %4207 = vst [vmem:[#allocation2 + $0x30] sm:$0xff] %v4199
        %4208 = vst [vmem:[#allocation2 + $0x38] sm:$0xff] %v4200
        %p4209 = scmp.eq.s32.totalorder %s32, 3
        // Predicated region
        $region81: #{tpu_custom_call.1} parent=47 // pred_check
          %p4210 = pneg %p4209
        $region82: #{tpu_custom_call.1} parent=47 // pred_check_branch
          %4212 = sbr.rel (%p4210) target = $region84
        $region83: #{tpu_custom_call.1} parent=47 // pred_region
          %v4213 = vld [vmem:[#allocation2] sm:$0xff]
          %v4214 = vld [vmem:[#allocation2 + $0x8] sm:$0xff]
          %v4215 = vld [vmem:[#allocation2 + $0x10] sm:$0xff]
          %v4216 = vld [vmem:[#allocation2 + $0x18] sm:$0xff]
          %v4217 = vld [vmem:[#allocation2 + $0x20] sm:$0xff]
          %v4218 = vld [vmem:[#allocation2 + $0x28] sm:$0xff]
          %v4219 = vld [vmem:[#allocation2 + $0x30] sm:$0xff]
          %v4220 = vld [vmem:[#allocation2 + $0x38] sm:$0xff]
          %v4221 = vld [vmem:[#allocation8] sm:$0xff]
          %v4223 = vlaneseq
          %v4224 = vshrl.u32 %v4223, 7
          %v4225 = vsub.s32 0, %v4224
          %v4226 = vrot.slane %v4221, %v4225
          %v4227 = vlaneseq
          %v4228 = vshrl.u32 %v4227, 7
          %v4229 = vsub.s32 1, %v4228
          %v4230 = vrot.slane %v4221, %v4229
          %v4231 = vlaneseq
          %v4232 = vshrl.u32 %v4231, 7
          %v4233 = vsub.s32 2, %v4232
          %v4234 = vrot.slane %v4221, %v4233
          %v4235 = vlaneseq
          %v4236 = vshrl.u32 %v4235, 7
          %v4237 = vsub.s32 3, %v4236
          %v4238 = vrot.slane %v4221, %v4237
          %v4239 = vlaneseq
          %v4240 = vshrl.u32 %v4239, 7
          %v4241 = vsub.s32 4, %v4240
          %v4242 = vrot.slane %v4221, %v4241
          %v4243 = vlaneseq
          %v4244 = vshrl.u32 %v4243, 7
          %v4245 = vsub.s32 5, %v4244
          %v4246 = vrot.slane %v4221, %v4245
          %v4247 = vlaneseq
          %v4248 = vshrl.u32 %v4247, 7
          %v4249 = vsub.s32 6, %v4248
          %v4250 = vrot.slane %v4221, %v4249
          %v4251 = vlaneseq
          %v4252 = vshrl.u32 %v4251, 7
          %v4253 = vsub.s32 7, %v4252
          %v4254 = vrot.slane %v4221, %v4253
          %v4263 = vadd.f32 %v4213, %v4226
          %v4264 = vadd.f32 %v4214, %v4230
          %v4265 = vadd.f32 %v4215, %v4234
          %v4266 = vadd.f32 %v4216, %v4238
          %v4267 = vadd.f32 %v4217, %v4242
          %v4268 = vadd.f32 %v4218, %v4246
          %v4269 = vadd.f32 %v4219, %v4250
          %v4270 = vadd.f32 %v4220, %v4254
          %v4271 = vmax.f32 %v4263, 0.0
          %v4272 = vmax.f32 %v4264, 0.0
          %v4273 = vmax.f32 %v4265, 0.0
          %v4274 = vmax.f32 %v4266, 0.0
          %v4275 = vmax.f32 %v4267, 0.0
          %v4276 = vmax.f32 %v4268, 0.0
          %v4277 = vmax.f32 %v4269, 0.0
          %v4278 = vmax.f32 %v4270, 0.0
          %v4279 = vld [vmem:[#allocation9] sm:$0xff]
          %v4280 = vld [vmem:[#allocation9 + $0x8] sm:$0xff]
          %v4281 = vld [vmem:[#allocation9 + $0x10] sm:$0xff]
          %v4282 = vld [vmem:[#allocation9 + $0x18] sm:$0xff]
          %v4283 = vld [vmem:[#allocation9 + $0x20] sm:$0xff]
          %v4284 = vld [vmem:[#allocation9 + $0x28] sm:$0xff]
          %v4285 = vld [vmem:[#allocation9 + $0x30] sm:$0xff]
          %v4286 = vld [vmem:[#allocation9 + $0x38] sm:$0xff]
          %v4287 = vld [vmem:[#allocation9 + $0x40] sm:$0xff]
          %v4288 = vld [vmem:[#allocation9 + $0x48] sm:$0xff]
          %v4289 = vld [vmem:[#allocation9 + $0x50] sm:$0xff]
          %v4290 = vld [vmem:[#allocation9 + $0x58] sm:$0xff]
          %v4291 = vld [vmem:[#allocation9 + $0x60] sm:$0xff]
          %v4292 = vld [vmem:[#allocation9 + $0x68] sm:$0xff]
          %v4293 = vld [vmem:[#allocation9 + $0x70] sm:$0xff]
          %v4294 = vld [vmem:[#allocation9 + $0x78] sm:$0xff]
          %v4295 = vld [vmem:[#allocation9 + $0x80] sm:$0xff]
          %v4296 = vld [vmem:[#allocation9 + $0x88] sm:$0xff]
          %v4297 = vld [vmem:[#allocation9 + $0x90] sm:$0xff]
          %v4298 = vld [vmem:[#allocation9 + $0x98] sm:$0xff]
          %v4299 = vld [vmem:[#allocation9 + $0xa0] sm:$0xff]
          %v4300 = vld [vmem:[#allocation9 + $0xa8] sm:$0xff]
          %v4301 = vld [vmem:[#allocation9 + $0xb0] sm:$0xff]
          %v4302 = vld [vmem:[#allocation9 + $0xb8] sm:$0xff]
          %v4303 = vld [vmem:[#allocation9 + $0xc0] sm:$0xff]
          %v4304 = vld [vmem:[#allocation9 + $0xc8] sm:$0xff]
          %v4305 = vld [vmem:[#allocation9 + $0xd0] sm:$0xff]
          %v4306 = vld [vmem:[#allocation9 + $0xd8] sm:$0xff]
          %v4307 = vld [vmem:[#allocation9 + $0xe0] sm:$0xff]
          %v4308 = vld [vmem:[#allocation9 + $0xe8] sm:$0xff]
          %v4309 = vld [vmem:[#allocation9 + $0xf0] sm:$0xff]
          %v4310 = vld [vmem:[#allocation9 + $0xf8] sm:$0xff]
          %v4311 = vld [vmem:[#allocation9 + $0x100] sm:$0xff]
          %v4312 = vld [vmem:[#allocation9 + $0x108] sm:$0xff]
          %v4313 = vld [vmem:[#allocation9 + $0x110] sm:$0xff]
          %v4314 = vld [vmem:[#allocation9 + $0x118] sm:$0xff]
          %v4315 = vld [vmem:[#allocation9 + $0x120] sm:$0xff]
          %v4316 = vld [vmem:[#allocation9 + $0x128] sm:$0xff]
          %v4317 = vld [vmem:[#allocation9 + $0x130] sm:$0xff]
          %v4318 = vld [vmem:[#allocation9 + $0x138] sm:$0xff]
          %v4319 = vld [vmem:[#allocation9 + $0x140] sm:$0xff]
          %v4320 = vld [vmem:[#allocation9 + $0x148] sm:$0xff]
          %v4321 = vld [vmem:[#allocation9 + $0x150] sm:$0xff]
          %v4322 = vld [vmem:[#allocation9 + $0x158] sm:$0xff]
          %v4323 = vld [vmem:[#allocation9 + $0x160] sm:$0xff]
          %v4324 = vld [vmem:[#allocation9 + $0x168] sm:$0xff]
          %v4325 = vld [vmem:[#allocation9 + $0x170] sm:$0xff]
          %v4326 = vld [vmem:[#allocation9 + $0x178] sm:$0xff]
          %v4327 = vld [vmem:[#allocation9 + $0x180] sm:$0xff]
          %v4328 = vld [vmem:[#allocation9 + $0x188] sm:$0xff]
          %v4329 = vld [vmem:[#allocation9 + $0x190] sm:$0xff]
          %v4330 = vld [vmem:[#allocation9 + $0x198] sm:$0xff]
          %v4331 = vld [vmem:[#allocation9 + $0x1a0] sm:$0xff]
          %v4332 = vld [vmem:[#allocation9 + $0x1a8] sm:$0xff]
          %v4333 = vld [vmem:[#allocation9 + $0x1b0] sm:$0xff]
          %v4334 = vld [vmem:[#allocation9 + $0x1b8] sm:$0xff]
          %v4335 = vld [vmem:[#allocation9 + $0x1c0] sm:$0xff]
          %v4336 = vld [vmem:[#allocation9 + $0x1c8] sm:$0xff]
          %v4337 = vld [vmem:[#allocation9 + $0x1d0] sm:$0xff]
          %v4338 = vld [vmem:[#allocation9 + $0x1d8] sm:$0xff]
          %v4339 = vld [vmem:[#allocation9 + $0x1e0] sm:$0xff]
          %v4340 = vld [vmem:[#allocation9 + $0x1e8] sm:$0xff]
          %v4341 = vld [vmem:[#allocation9 + $0x1f0] sm:$0xff]
          %v4342 = vld [vmem:[#allocation9 + $0x1f8] sm:$0xff]
          %v4343 = vld [vmem:[#allocation9 + $0x200] sm:$0xff]
          %v4344 = vld [vmem:[#allocation9 + $0x208] sm:$0xff]
          %v4345 = vld [vmem:[#allocation9 + $0x210] sm:$0xff]
          %v4346 = vld [vmem:[#allocation9 + $0x218] sm:$0xff]
          %v4347 = vld [vmem:[#allocation9 + $0x220] sm:$0xff]
          %v4348 = vld [vmem:[#allocation9 + $0x228] sm:$0xff]
          %v4349 = vld [vmem:[#allocation9 + $0x230] sm:$0xff]
          %v4350 = vld [vmem:[#allocation9 + $0x238] sm:$0xff]
          %v4351 = vld [vmem:[#allocation9 + $0x240] sm:$0xff]
          %v4352 = vld [vmem:[#allocation9 + $0x248] sm:$0xff]
          %v4353 = vld [vmem:[#allocation9 + $0x250] sm:$0xff]
          %v4354 = vld [vmem:[#allocation9 + $0x258] sm:$0xff]
          %v4355 = vld [vmem:[#allocation9 + $0x260] sm:$0xff]
          %v4356 = vld [vmem:[#allocation9 + $0x268] sm:$0xff]
          %v4357 = vld [vmem:[#allocation9 + $0x270] sm:$0xff]
          %v4358 = vld [vmem:[#allocation9 + $0x278] sm:$0xff]
          %v4359 = vld [vmem:[#allocation9 + $0x280] sm:$0xff]
          %v4360 = vld [vmem:[#allocation9 + $0x288] sm:$0xff]
          %v4361 = vld [vmem:[#allocation9 + $0x290] sm:$0xff]
          %v4362 = vld [vmem:[#allocation9 + $0x298] sm:$0xff]
          %v4363 = vld [vmem:[#allocation9 + $0x2a0] sm:$0xff]
          %v4364 = vld [vmem:[#allocation9 + $0x2a8] sm:$0xff]
          %v4365 = vld [vmem:[#allocation9 + $0x2b0] sm:$0xff]
          %v4366 = vld [vmem:[#allocation9 + $0x2b8] sm:$0xff]
          %v4367 = vld [vmem:[#allocation9 + $0x2c0] sm:$0xff]
          %v4368 = vld [vmem:[#allocation9 + $0x2c8] sm:$0xff]
          %v4369 = vld [vmem:[#allocation9 + $0x2d0] sm:$0xff]
          %v4370 = vld [vmem:[#allocation9 + $0x2d8] sm:$0xff]
          %v4371 = vld [vmem:[#allocation9 + $0x2e0] sm:$0xff]
          %v4372 = vld [vmem:[#allocation9 + $0x2e8] sm:$0xff]
          %v4373 = vld [vmem:[#allocation9 + $0x2f0] sm:$0xff]
          %v4374 = vld [vmem:[#allocation9 + $0x2f8] sm:$0xff]
          %v4375 = vld [vmem:[#allocation9 + $0x300] sm:$0xff]
          %v4376 = vld [vmem:[#allocation9 + $0x308] sm:$0xff]
          %v4377 = vld [vmem:[#allocation9 + $0x310] sm:$0xff]
          %v4378 = vld [vmem:[#allocation9 + $0x318] sm:$0xff]
          %v4379 = vld [vmem:[#allocation9 + $0x320] sm:$0xff]
          %v4380 = vld [vmem:[#allocation9 + $0x328] sm:$0xff]
          %v4381 = vld [vmem:[#allocation9 + $0x330] sm:$0xff]
          %v4382 = vld [vmem:[#allocation9 + $0x338] sm:$0xff]
          %v4383 = vld [vmem:[#allocation9 + $0x340] sm:$0xff]
          %v4384 = vld [vmem:[#allocation9 + $0x348] sm:$0xff]
          %v4385 = vld [vmem:[#allocation9 + $0x350] sm:$0xff]
          %v4386 = vld [vmem:[#allocation9 + $0x358] sm:$0xff]
          %v4387 = vld [vmem:[#allocation9 + $0x360] sm:$0xff]
          %v4388 = vld [vmem:[#allocation9 + $0x368] sm:$0xff]
          %v4389 = vld [vmem:[#allocation9 + $0x370] sm:$0xff]
          %v4390 = vld [vmem:[#allocation9 + $0x378] sm:$0xff]
          %v4391 = vld [vmem:[#allocation9 + $0x380] sm:$0xff]
          %v4392 = vld [vmem:[#allocation9 + $0x388] sm:$0xff]
          %v4393 = vld [vmem:[#allocation9 + $0x390] sm:$0xff]
          %v4394 = vld [vmem:[#allocation9 + $0x398] sm:$0xff]
          %v4395 = vld [vmem:[#allocation9 + $0x3a0] sm:$0xff]
          %v4396 = vld [vmem:[#allocation9 + $0x3a8] sm:$0xff]
          %v4397 = vld [vmem:[#allocation9 + $0x3b0] sm:$0xff]
          %v4398 = vld [vmem:[#allocation9 + $0x3b8] sm:$0xff]
          %v4399 = vld [vmem:[#allocation9 + $0x3c0] sm:$0xff]
          %v4400 = vld [vmem:[#allocation9 + $0x3c8] sm:$0xff]
          %v4401 = vld [vmem:[#allocation9 + $0x3d0] sm:$0xff]
          %v4402 = vld [vmem:[#allocation9 + $0x3d8] sm:$0xff]
          %v4403 = vld [vmem:[#allocation9 + $0x3e0] sm:$0xff]
          %v4404 = vld [vmem:[#allocation9 + $0x3e8] sm:$0xff]
          %v4405 = vld [vmem:[#allocation9 + $0x3f0] sm:$0xff]
          %v4406 = vld [vmem:[#allocation9 + $0x3f8] sm:$0xff]
          %v4407 = vld [vmem:[#allocation11] sm:$0x1]
          %v4409 = vlaneseq
          %v4410 = vshrl.u32 %v4409, 7
          %v4411 = vsub.s32 0, %v4410
          %v4412 = vrot.slane %v4407, %v4411
          %4414 = vmatprep.subr.mxu0 0.0
          %4415 = vmatpush1.msra.mxu0 %v4279
          %4416 = vmatprep.subr.mxu0 0.0
          %4417 = vmatpush1.msra.mxu0 %v4280
          %4418 = vmatprep.subr.mxu0 0.0
          %4419 = vmatpush1.msra.mxu0 %v4281
          %4420 = vmatprep.subr.mxu0 0.0
          %4421 = vmatpush1.msra.mxu0 %v4282
          %4422 = vmatprep.subr.mxu0 0.0
          %4423 = vmatpush1.msra.mxu0 %v4283
          %4424 = vmatprep.subr.mxu0 0.0
          %4425 = vmatpush1.msra.mxu0 %v4284
          %4426 = vmatprep.subr.mxu0 0.0
          %4427 = vmatpush1.msra.mxu0 %v4285
          %4428 = vmatprep.subr.mxu0 0.0
          %4429 = vmatpush1.msra.mxu0 %v4286
          %4430 = vmatprep.subr.mxu0 0.0
          %4431 = vmatpush1.msra.mxu0 %v4287
          %4432 = vmatprep.subr.mxu0 0.0
          %4433 = vmatpush1.msra.mxu0 %v4288
          %4434 = vmatprep.subr.mxu0 0.0
          %4435 = vmatpush1.msra.mxu0 %v4289
          %4436 = vmatprep.subr.mxu0 0.0
          %4437 = vmatpush1.msra.mxu0 %v4290
          %4438 = vmatprep.subr.mxu0 0.0
          %4439 = vmatpush1.msra.mxu0 %v4291
          %4440 = vmatprep.subr.mxu0 0.0
          %4441 = vmatpush1.msra.mxu0 %v4292
          %4442 = vmatprep.subr.mxu0 0.0
          %4443 = vmatpush1.msra.mxu0 %v4293
          %4444 = vmatprep.subr.mxu0 0.0
          %4445 = vmatpush1.msra.mxu0 %v4294
          %4446 = vmatprep.subr.mxu0 0.0
          %4447 = vmatpush1.msra.mxu0 %v4295
          %4448 = vmatprep.subr.mxu0 0.0
          %4449 = vmatpush1.msra.mxu0 %v4296
          %4450 = vmatprep.subr.mxu0 0.0
          %4451 = vmatpush1.msra.mxu0 %v4297
          %4452 = vmatprep.subr.mxu0 0.0
          %4453 = vmatpush1.msra.mxu0 %v4298
          %4454 = vmatprep.subr.mxu0 0.0
          %4455 = vmatpush1.msra.mxu0 %v4299
          %4456 = vmatprep.subr.mxu0 0.0
          %4457 = vmatpush1.msra.mxu0 %v4300
          %4458 = vmatprep.subr.mxu0 0.0
          %4459 = vmatpush1.msra.mxu0 %v4301
          %4460 = vmatprep.subr.mxu0 0.0
          %4461 = vmatpush1.msra.mxu0 %v4302
          %4462 = vmatprep.subr.mxu0 0.0
          %4463 = vmatpush1.msra.mxu0 %v4303
          %4464 = vmatprep.subr.mxu0 0.0
          %4465 = vmatpush1.msra.mxu0 %v4304
          %4466 = vmatprep.subr.mxu0 0.0
          %4467 = vmatpush1.msra.mxu0 %v4305
          %4468 = vmatprep.subr.mxu0 0.0
          %4469 = vmatpush1.msra.mxu0 %v4306
          %4470 = vmatprep.subr.mxu0 0.0
          %4471 = vmatpush1.msra.mxu0 %v4307
          %4472 = vmatprep.subr.mxu0 0.0
          %4473 = vmatpush1.msra.mxu0 %v4308
          %4474 = vmatprep.subr.mxu0 0.0
          %4475 = vmatpush1.msra.mxu0 %v4309
          %4476 = vmatprep.subr.mxu0 0.0
          %4477 = vmatpush1.msra.mxu0 %v4310
          %4478 = vmatprep.mubr.f32.mxu0 %v4272
          %4479 = vmatmul.mubr.f32.gmra.mrb[0].mxu0 %v4271
          %v4480 = vpop.f32.mrb[0].mxu0
          %v4481 = vadd.f32 %v4412, %v4480
          %v4482 = vpop.f32.mrb[0].mxu0
          %4483 = vdwg.mxu0
          %4484 = vmatprep.subr.mxu0 0.0
          %4485 = vmatpush1.msra.mxu0 %v4311
          %4486 = vmatprep.subr.mxu0 0.0
          %4487 = vmatpush1.msra.mxu0 %v4312
          %4488 = vmatprep.subr.mxu0 0.0
          %4489 = vmatpush1.msra.mxu0 %v4313
          %4490 = vmatprep.subr.mxu0 0.0
          %4491 = vmatpush1.msra.mxu0 %v4314
          %4492 = vmatprep.subr.mxu0 0.0
          %4493 = vmatpush1.msra.mxu0 %v4315
          %4494 = vmatprep.subr.mxu0 0.0
          %4495 = vmatpush1.msra.mxu0 %v4316
          %4496 = vmatprep.subr.mxu0 0.0
          %4497 = vmatpush1.msra.mxu0 %v4317
          %4498 = vmatprep.subr.mxu0 0.0
          %4499 = vmatpush1.msra.mxu0 %v4318
          %4500 = vmatprep.subr.mxu0 0.0
          %4501 = vmatpush1.msra.mxu0 %v4319
          %4502 = vmatprep.subr.mxu0 0.0
          %4503 = vmatpush1.msra.mxu0 %v4320
          %4504 = vmatprep.subr.mxu0 0.0
          %4505 = vmatpush1.msra.mxu0 %v4321
          %4506 = vmatprep.subr.mxu0 0.0
          %4507 = vmatpush1.msra.mxu0 %v4322
          %4508 = vmatprep.subr.mxu0 0.0
          %4509 = vmatpush1.msra.mxu0 %v4323
          %4510 = vmatprep.subr.mxu0 0.0
          %4511 = vmatpush1.msra.mxu0 %v4324
          %4512 = vmatprep.subr.mxu0 0.0
          %4513 = vmatpush1.msra.mxu0 %v4325
          %4514 = vmatprep.subr.mxu0 0.0
          %4515 = vmatpush1.msra.mxu0 %v4326
          %4516 = vmatprep.subr.mxu0 0.0
          %4517 = vmatpush1.msra.mxu0 %v4327
          %4518 = vmatprep.subr.mxu0 0.0
          %4519 = vmatpush1.msra.mxu0 %v4328
          %4520 = vmatprep.subr.mxu0 0.0
          %4521 = vmatpush1.msra.mxu0 %v4329
          %4522 = vmatprep.subr.mxu0 0.0
          %4523 = vmatpush1.msra.mxu0 %v4330
          %4524 = vmatprep.subr.mxu0 0.0
          %4525 = vmatpush1.msra.mxu0 %v4331
          %4526 = vmatprep.subr.mxu0 0.0
          %4527 = vmatpush1.msra.mxu0 %v4332
          %4528 = vmatprep.subr.mxu0 0.0
          %4529 = vmatpush1.msra.mxu0 %v4333
          %4530 = vmatprep.subr.mxu0 0.0
          %4531 = vmatpush1.msra.mxu0 %v4334
          %4532 = vmatprep.subr.mxu0 0.0
          %4533 = vmatpush1.msra.mxu0 %v4335
          %4534 = vmatprep.subr.mxu0 0.0
          %4535 = vmatpush1.msra.mxu0 %v4336
          %4536 = vmatprep.subr.mxu0 0.0
          %4537 = vmatpush1.msra.mxu0 %v4337
          %4538 = vmatprep.subr.mxu0 0.0
          %4539 = vmatpush1.msra.mxu0 %v4338
          %4540 = vmatprep.subr.mxu0 0.0
          %4541 = vmatpush1.msra.mxu0 %v4339
          %4542 = vmatprep.subr.mxu0 0.0
          %4543 = vmatpush1.msra.mxu0 %v4340
          %4544 = vmatprep.subr.mxu0 0.0
          %4545 = vmatpush1.msra.mxu0 %v4341
          %4546 = vmatprep.subr.mxu0 0.0
          %4547 = vmatpush1.msra.mxu0 %v4342
          %4548 = vmatprep.mubr.f32.mxu0 %v4274
          %4549 = vmatmul.mubr.f32.gmra.mrb[0].mxu0 %v4273
          %v4550 = vpop.f32.mrb[0].mxu0
          %v4551 = vadd.f32 %v4481, %v4550
          %v4552 = vpop.f32.mrb[0].mxu0
          %4553 = vdwg.mxu0
          %4554 = vmatprep.subr.mxu0 0.0
          %4555 = vmatpush1.msra.mxu0 %v4343
          %4556 = vmatprep.subr.mxu0 0.0
          %4557 = vmatpush1.msra.mxu0 %v4344
          %4558 = vmatprep.subr.mxu0 0.0
          %4559 = vmatpush1.msra.mxu0 %v4345
          %4560 = vmatprep.subr.mxu0 0.0
          %4561 = vmatpush1.msra.mxu0 %v4346
          %4562 = vmatprep.subr.mxu0 0.0
          %4563 = vmatpush1.msra.mxu0 %v4347
          %4564 = vmatprep.subr.mxu0 0.0
          %4565 = vmatpush1.msra.mxu0 %v4348
          %4566 = vmatprep.subr.mxu0 0.0
          %4567 = vmatpush1.msra.mxu0 %v4349
          %4568 = vmatprep.subr.mxu0 0.0
          %4569 = vmatpush1.msra.mxu0 %v4350
          %4570 = vmatprep.subr.mxu0 0.0
          %4571 = vmatpush1.msra.mxu0 %v4351
          %4572 = vmatprep.subr.mxu0 0.0
          %4573 = vmatpush1.msra.mxu0 %v4352
          %4574 = vmatprep.subr.mxu0 0.0
          %4575 = vmatpush1.msra.mxu0 %v4353
          %4576 = vmatprep.subr.mxu0 0.0
          %4577 = vmatpush1.msra.mxu0 %v4354
          %4578 = vmatprep.subr.mxu0 0.0
          %4579 = vmatpush1.msra.mxu0 %v4355
          %4580 = vmatprep.subr.mxu0 0.0
          %4581 = vmatpush1.msra.mxu0 %v4356
          %4582 = vmatprep.subr.mxu0 0.0
          %4583 = vmatpush1.msra.mxu0 %v4357
          %4584 = vmatprep.subr.mxu0 0.0
          %4585 = vmatpush1.msra.mxu0 %v4358
          %4586 = vmatprep.subr.mxu0 0.0
          %4587 = vmatpush1.msra.mxu0 %v4359
          %4588 = vmatprep.subr.mxu0 0.0
          %4589 = vmatpush1.msra.mxu0 %v4360
          %4590 = vmatprep.subr.mxu0 0.0
          %4591 = vmatpush1.msra.mxu0 %v4361
          %4592 = vmatprep.subr.mxu0 0.0
          %4593 = vmatpush1.msra.mxu0 %v4362
          %4594 = vmatprep.subr.mxu0 0.0
          %4595 = vmatpush1.msra.mxu0 %v4363
          %4596 = vmatprep.subr.mxu0 0.0
          %4597 = vmatpush1.msra.mxu0 %v4364
          %4598 = vmatprep.subr.mxu0 0.0
          %4599 = vmatpush1.msra.mxu0 %v4365
          %4600 = vmatprep.subr.mxu0 0.0
          %4601 = vmatpush1.msra.mxu0 %v4366
          %4602 = vmatprep.subr.mxu0 0.0
          %4603 = vmatpush1.msra.mxu0 %v4367
          %4604 = vmatprep.subr.mxu0 0.0
          %4605 = vmatpush1.msra.mxu0 %v4368
          %4606 = vmatprep.subr.mxu0 0.0
          %4607 = vmatpush1.msra.mxu0 %v4369
          %4608 = vmatprep.subr.mxu0 0.0
          %4609 = vmatpush1.msra.mxu0 %v4370
          %4610 = vmatprep.subr.mxu0 0.0
          %4611 = vmatpush1.msra.mxu0 %v4371
          %4612 = vmatprep.subr.mxu0 0.0
          %4613 = vmatpush1.msra.mxu0 %v4372
          %4614 = vmatprep.subr.mxu0 0.0
          %4615 = vmatpush1.msra.mxu0 %v4373
          %4616 = vmatprep.subr.mxu0 0.0
          %4617 = vmatpush1.msra.mxu0 %v4374
          %4618 = vmatprep.mubr.f32.mxu0 %v4276
          %4619 = vmatmul.mubr.f32.gmra.mrb[0].mxu0 %v4275
          %v4620 = vpop.f32.mrb[0].mxu0
          %v4621 = vadd.f32 %v4551, %v4620
          %v4622 = vpop.f32.mrb[0].mxu0
          %4623 = vdwg.mxu0
          %4624 = vmatprep.subr.mxu0 0.0
          %4625 = vmatpush1.msra.mxu0 %v4375
          %4626 = vmatprep.subr.mxu0 0.0
          %4627 = vmatpush1.msra.mxu0 %v4376
          %4628 = vmatprep.subr.mxu0 0.0
          %4629 = vmatpush1.msra.mxu0 %v4377
          %4630 = vmatprep.subr.mxu0 0.0
          %4631 = vmatpush1.msra.mxu0 %v4378
          %4632 = vmatprep.subr.mxu0 0.0
          %4633 = vmatpush1.msra.mxu0 %v4379
          %4634 = vmatprep.subr.mxu0 0.0
          %4635 = vmatpush1.msra.mxu0 %v4380
          %4636 = vmatprep.subr.mxu0 0.0
          %4637 = vmatpush1.msra.mxu0 %v4381
          %4638 = vmatprep.subr.mxu0 0.0
          %4639 = vmatpush1.msra.mxu0 %v4382
          %4640 = vmatprep.subr.mxu0 0.0
          %4641 = vmatpush1.msra.mxu0 %v4383
          %4642 = vmatprep.subr.mxu0 0.0
          %4643 = vmatpush1.msra.mxu0 %v4384
          %4644 = vmatprep.subr.mxu0 0.0
          %4645 = vmatpush1.msra.mxu0 %v4385
          %4646 = vmatprep.subr.mxu0 0.0
          %4647 = vmatpush1.msra.mxu0 %v4386
          %4648 = vmatprep.subr.mxu0 0.0
          %4649 = vmatpush1.msra.mxu0 %v4387
          %4650 = vmatprep.subr.mxu0 0.0
          %4651 = vmatpush1.msra.mxu0 %v4388
          %4652 = vmatprep.subr.mxu0 0.0
          %4653 = vmatpush1.msra.mxu0 %v4389
          %4654 = vmatprep.subr.mxu0 0.0
          %4655 = vmatpush1.msra.mxu0 %v4390
          %4656 = vmatprep.subr.mxu0 0.0
          %4657 = vmatpush1.msra.mxu0 %v4391
          %4658 = vmatprep.subr.mxu0 0.0
          %4659 = vmatpush1.msra.mxu0 %v4392
          %4660 = vmatprep.subr.mxu0 0.0
          %4661 = vmatpush1.msra.mxu0 %v4393
          %4662 = vmatprep.subr.mxu0 0.0
          %4663 = vmatpush1.msra.mxu0 %v4394
          %4664 = vmatprep.subr.mxu0 0.0
          %4665 = vmatpush1.msra.mxu0 %v4395
          %4666 = vmatprep.subr.mxu0 0.0
          %4667 = vmatpush1.msra.mxu0 %v4396
          %4668 = vmatprep.subr.mxu0 0.0
          %4669 = vmatpush1.msra.mxu0 %v4397
          %4670 = vmatprep.subr.mxu0 0.0
          %4671 = vmatpush1.msra.mxu0 %v4398
          %4672 = vmatprep.subr.mxu0 0.0
          %4673 = vmatpush1.msra.mxu0 %v4399
          %4674 = vmatprep.subr.mxu0 0.0
          %4675 = vmatpush1.msra.mxu0 %v4400
          %4676 = vmatprep.subr.mxu0 0.0
          %4677 = vmatpush1.msra.mxu0 %v4401
          %4678 = vmatprep.subr.mxu0 0.0
          %4679 = vmatpush1.msra.mxu0 %v4402
          %4680 = vmatprep.subr.mxu0 0.0
          %4681 = vmatpush1.msra.mxu0 %v4403
          %4682 = vmatprep.subr.mxu0 0.0
          %4683 = vmatpush1.msra.mxu0 %v4404
          %4684 = vmatprep.subr.mxu0 0.0
          %4685 = vmatpush1.msra.mxu0 %v4405
          %4686 = vmatprep.subr.mxu0 0.0
          %4687 = vmatpush1.msra.mxu0 %v4406
          %4688 = vmatprep.mubr.f32.mxu0 %v4278
          %4689 = vmatmul.mubr.f32.gmra.mrb[0].mxu0 %v4277
          %v4690 = vpop.f32.mrb[0].mxu0
          %v4691 = vadd.f32 %v4621, %v4690
          %v4692 = vpop.f32.mrb[0].mxu0
          %4693 = vdwg.mxu0
          %v4694 = vmax.f32 %v4691, 0.0
          %v4695 = vld [vmem:[#allocation12] sm:$0xff]
          %v4696 = vld [vmem:[#allocation12 + $0x8] sm:$0xff]
          %v4697 = vld [vmem:[#allocation12 + $0x10] sm:$0xff]
          %v4698 = vld [vmem:[#allocation12 + $0x18] sm:$0xff]
          %v4699 = vld [vmem:[#allocation12 + $0x20] sm:$0xff]
          %v4700 = vld [vmem:[#allocation12 + $0x28] sm:$0xff]
          %v4701 = vld [vmem:[#allocation12 + $0x30] sm:$0xff]
          %v4702 = vld [vmem:[#allocation12 + $0x38] sm:$0xff]
          %v4703 = vld [vmem:[#allocation12 + $0x40] sm:$0xff]
          %v4704 = vld [vmem:[#allocation12 + $0x48] sm:$0xff]
          %v4705 = vld [vmem:[#allocation12 + $0x50] sm:$0xff]
          %v4706 = vld [vmem:[#allocation12 + $0x58] sm:$0xff]
          %v4707 = vld [vmem:[#allocation12 + $0x60] sm:$0xff]
          %v4708 = vld [vmem:[#allocation12 + $0x68] sm:$0xff]
          %v4709 = vld [vmem:[#allocation12 + $0x70] sm:$0xff]
          %v4710 = vld [vmem:[#allocation12 + $0x78] sm:$0xff]
          %v4711 = vld [vmem:[#allocation14] sm:$0x1]
          %v4713 = vlaneseq
          %v4714 = vshrl.u32 %v4713, 7
          %v4715 = vsub.s32 0, %v4714
          %v4716 = vrot.slane %v4711, %v4715
          %4718 = vmatprep.subr.mxu0 0.0
          %4719 = vmatpush1.msra.mxu0 %v4695
          %4720 = vmatprep.subr.mxu0 0.0
          %4721 = vmatpush1.msra.mxu0 %v4696
          %4722 = vmatprep.subr.mxu0 0.0
          %4723 = vmatpush1.msra.mxu0 %v4697
          %4724 = vmatprep.subr.mxu0 0.0
          %4725 = vmatpush1.msra.mxu0 %v4698
          %4726 = vmatprep.subr.mxu0 0.0
          %4727 = vmatpush1.msra.mxu0 %v4699
          %4728 = vmatprep.subr.mxu0 0.0
          %4729 = vmatpush1.msra.mxu0 %v4700
          %4730 = vmatprep.subr.mxu0 0.0
          %4731 = vmatpush1.msra.mxu0 %v4701
          %4732 = vmatprep.subr.mxu0 0.0
          %4733 = vmatpush1.msra.mxu0 %v4702
          %4734 = vmatprep.subr.mxu0 0.0
          %4735 = vmatpush1.msra.mxu0 %v4703
          %4736 = vmatprep.subr.mxu0 0.0
          %4737 = vmatpush1.msra.mxu0 %v4704
          %4738 = vmatprep.subr.mxu0 0.0
          %4739 = vmatpush1.msra.mxu0 %v4705
          %4740 = vmatprep.subr.mxu0 0.0
          %4741 = vmatpush1.msra.mxu0 %v4706
          %4742 = vmatprep.subr.mxu0 0.0
          %4743 = vmatpush1.msra.mxu0 %v4707
          %4744 = vmatprep.subr.mxu0 0.0
          %4745 = vmatpush1.msra.mxu0 %v4708
          %4746 = vmatprep.subr.mxu0 0.0
          %4747 = vmatpush1.msra.mxu0 %v4709
          %4748 = vmatprep.subr.mxu0 0.0
          %4749 = vmatpush1.msra.mxu0 %v4710
          %4750 = vmatprep.subr.mxu0 0.0
          %4751 = vmatpush1.msra.mxu0 0.0
          %4752 = vmatprep.subr.mxu0 0.0
          %4753 = vmatpush1.msra.mxu0 0.0
          %4754 = vmatprep.subr.mxu0 0.0
          %4755 = vmatpush1.msra.mxu0 0.0
          %4756 = vmatprep.subr.mxu0 0.0
          %4757 = vmatpush1.msra.mxu0 0.0
          %4758 = vmatprep.subr.mxu0 0.0
          %4759 = vmatpush1.msra.mxu0 0.0
          %4760 = vmatprep.subr.mxu0 0.0
          %4761 = vmatpush1.msra.mxu0 0.0
          %4762 = vmatprep.subr.mxu0 0.0
          %4763 = vmatpush1.msra.mxu0 0.0
          %4764 = vmatprep.subr.mxu0 0.0
          %4765 = vmatpush1.msra.mxu0 0.0
          %4766 = vmatprep.subr.mxu0 0.0
          %4767 = vmatpush1.msra.mxu0 0.0
          %4768 = vmatprep.subr.mxu0 0.0
          %4769 = vmatpush1.msra.mxu0 0.0
          %4770 = vmatprep.subr.mxu0 0.0
          %4771 = vmatpush1.msra.mxu0 0.0
          %4772 = vmatprep.subr.mxu0 0.0
          %4773 = vmatpush1.msra.mxu0 0.0
          %4774 = vmatprep.subr.mxu0 0.0
          %4775 = vmatpush1.msra.mxu0 0.0
          %4776 = vmatprep.subr.mxu0 0.0
          %4777 = vmatpush1.msra.mxu0 0.0
          %4778 = vmatprep.subr.mxu0 0.0
          %4779 = vmatpush1.msra.mxu0 0.0
          %4780 = vmatprep.subr.mxu0 0.0
          %4781 = vmatpush1.msra.mxu0 0.0
          %4782 = vmatprep.mubr.f32.mxu0 0.0
          %4783 = vmatmul.mubr.f32.gmra.mrb[0].mxu0 %v4694
          %v4784 = vpop.f32.mrb[0].mxu0
          %v4785 = vadd.f32 %v4716, %v4784
          %v4786 = vpop.f32.mrb[0].mxu0
          %4787 = vdwg.mxu0
          %4788 = vst [vmem:[#allocation15] sm:$0xff] %v4785
        $region84: #{tpu_custom_call.1} parent=47 // pred_fallthru
          _
        // Predicated region
        $region85: #{tpu_custom_call.1} parent=47 // pred_check
          %p4789 = pneg %p216
        $region86: #{tpu_custom_call.1} parent=47 // pred_check_branch
          %4791 = sbr.rel (%p4789) target = $region88
        $region87: #{tpu_custom_call.1} parent=47 // pred_region
          %s4793 = ssub.s32 128, 128
          %4794 = vsyncadd [#allocation5], %s4793
          %s4795 = smul.addr %s31, 128
          %s4796 = scalar_lea.hbm %s7, %s4795
          %s4798 = sshll.u32 [#allocation15], 4
          %s4799 = int_to_ptr.vmem [resolvable:$true] %s4798
          %4801 = dma.vmem_to_hbm [thread:$0]  %s4799, 128, %s4796, [#allocation5]
        $region88: #{tpu_custom_call.1} parent=47 // pred_fallthru
          _
        // Predicated region
        $region89: #{tpu_custom_call.1} parent=47 // pred_check
          %p4802 = pneg %p216
        $region90: #{tpu_custom_call.1} parent=47 // pred_check_branch
          %4804 = sbr.rel (%p4802) target = $region92
        $region91: #{tpu_custom_call.1} parent=47 // pred_region
          %4805 = dma.done [#allocation5], 128
        $region92: #{tpu_custom_call.1} parent=47 // pred_fallthru
          _
      $region48: #{tpu_custom_call.1} parent=5 // pred_fallthru
        _
      %p4806 = scmp.le.s32.totalorder 2, %s22
      // Predicated region
      $region93: #{tpu_custom_call.1} parent=5 // pred_check
        %p4807 = pneg %p4806
      $region94: #{tpu_custom_call.1} parent=5 // pred_check_branch
        %4809 = sbr.rel (%p4807) target = $region96
      $region95: #{tpu_custom_call.1} parent=5 // pred_region
        %s4810 = ssub.s32 %s22, 2
      $region96: #{tpu_custom_call.1} parent=5 // pred_fallthru
        _
    $region6: #{tpu_custom_call.1} parent=1 // loop_footer
      %s26 = sadd.s32 1, %s22
    $region7: #{tpu_custom_call.1} parent=1 // loop_footer_branch
      %21 = sbr.rel target = $region3
    $region8: #{tpu_custom_call.1} parent=1 // loop_exit
      _
    %4811 = vsyncpa [#allocation4], 1
    %s4812 = scalar_lea.sflag [#allocation4], 1
    %4813 = vsyncpa %s4812, 1
    %4814 = vsyncpa [#allocation7], 1
    %s4815 = scalar_lea.sflag [#allocation7], 1
    %4816 = vsyncpa %s4815, 1
    %4817 = vsyncpa [#allocation10], 1
    %4818 = vsyncpa [#allocation13], 1
    %4819 = vsyncpa [#allocation5], 1
    %s4820 = scalar_lea.sflag [#allocation5], 1
    %4821 = vsyncpa %s4820, 1

</llo_original>
